<compile_context>
chip_gen: v7x
topology: tpu7x:2x2x1
jax: 0.10.0
libtpu: 0.0.40
codegen_flags: <defaults>
</compile_context>

<pallas_src>
import functools

import numpy as np
import jax
import jax.numpy as jnp
from jax.experimental import pallas as pl
from jax.experimental.pallas import tpu as pltpu

LN_EPS = 1e-5


# ----------------------------- Pallas kernel ---------------------------------
def _transformer_block_kernel(x_ref, mod_ref, wqkv_ref, wp_ref, bp_ref,
                              w1_ref, b1_ref, w2_ref, b2_ref, out_ref, att_ref,
                              *, num_heads, dk, mod_rep):
    TN, S, D = x_ref.shape
    R = TN * S
    H = num_heads
    MB = mod_ref.shape[0]

    x3 = x_ref[...]                              # (TN, S, D) f32
    mod = mod_ref[...]                           # (MB, 3, D) f32

    # Per-sequence modulation (sequence j in the block uses condition row
    # j % MB).  Broadcast ONCE to (TN, S, D): JAX does not CSE broadcasts and
    # each row is reused by both sub-layers.
    def expand(j):                               # -> (TN, S, D)
        row = mod[:, j, :]                       # (MB, D)
        return jnp.broadcast_to(row[None, :, None, :],
                                (mod_rep, MB, S, D)).reshape(TN, S, D)

    scale = expand(0)                            # gama * ln_w
    shift = expand(1)                            # gama * ln_b + beta
    alpha = expand(2)                            # AdaLN output gate

    def mod_layer_norm(v):                       # two-pass LN, AdaLN folded into affine
        mu = jnp.mean(v, axis=-1, keepdims=True)
        c = v - mu
        var = jnp.mean(c * c, axis=-1, keepdims=True)
        return c * jax.lax.rsqrt(var + LN_EPS) * scale + shift

    def gelu_exact(v):                           # torch.nn.functional.gelu (erf form)
        return 0.5 * v * (1.0 + jax.lax.erf(v * (2.0 ** -0.5)))

    # --- sub-layer 1: modulated LN -> fused QKV -> head-batched MHA -> residual
    y = mod_layer_norm(x3).reshape(R, D).astype(jnp.bfloat16)
    qkv = jnp.dot(y, wqkv_ref[...], preferred_element_type=jnp.float32)   # (R, 3D) f32

    # 128-lane-aligned q/k/v views; 1/sqrt(dk) folded into q once; bf16 operands.
    qf = (qkv[:, :D] * (dk ** -0.5)).astype(jnp.bfloat16)
    kf = qkv[:, D:2 * D].astype(jnp.bfloat16)
    vf = qkv[:, 2 * D:].astype(jnp.bfloat16)

    # (R, D) -> (H*TN, S, dk): static per-head lane slices stacked on the major
    # batch axis, so ALL heads share one batched score / AV einsum + softmax.
    def heads(t):
        return jnp.concatenate(
            [t[:, h * dk:(h + 1) * dk].reshape(TN, S, dk) for h in range(H)],
            axis=0)

    q = heads(qf)
    k = heads(kf)
    v = heads(vf)

    s = jnp.einsum('bsd,btd->bst', q, k,
                   preferred_element_type=jnp.float32)           # (H*TN, S, S) f32
    m = jnp.max(s, axis=-1, keepdims=True)
    p = jnp.exp(s - m)                                            # no mask (MASK=False)
    w = p * pl.reciprocal(jnp.sum(p, axis=-1, keepdims=True), approx=True)
    o = jnp.einsum('bst,btd->bsd', w.astype(jnp.bfloat16), v,
                   preferred_element_type=jnp.float32)            # (H*TN, S, dk)

    # Materialize head outputs contiguously (lane offset h*dk) in VMEM scratch so
    # the output projection is ONE (R, D) @ (D, D) K=128 matmul.
    for h in range(H):
        att_ref[:, h * dk:(h + 1) * dk] = o[h * TN:(h + 1) * TN].reshape(R, dk)
    proj = jnp.dot(att_ref[...].astype(jnp.bfloat16), wp_ref[...],
                   preferred_element_type=jnp.float32) + bp_ref[...]
    mha3 = proj.reshape(TN, S, D) * alpha + x3

    # --- sub-layer 2: modulated LN -> FeedForward(GELU) -> residual -----------
    z = mod_layer_norm(mha3).reshape(R, D).astype(jnp.bfloat16)
    h1 = gelu_exact(jnp.dot(z, w1_ref[...], preferred_element_type=jnp.float32)
                    + b1_ref[...])
    ff = jnp.dot(h1.astype(jnp.bfloat16), w2_ref[...],
                 preferred_element_type=jnp.float32) + b2_ref[...]
    out_ref[...] = ff.reshape(TN, S, D) * alpha + mha3


# ------------------------------ wrapper ---------------------------------------
def _pick_tn(N, S, cB, max_rows=1024):
    """Largest TN dividing N with TN*S <= max_rows rows per block, compatible
    with the condition-table mapping (TN % cB == 0 or cB % TN == 0), preferring
    >= 4 grid steps (>= 2 per TensorCore on v7x, keeps the BlockSpec pipeline
    prefetching), then >= 2, then 1.  max_rows can be raised toward ~2048 on
    v5e/v6e (128 MiB VMEM) at production sizes."""
    cands = [t for t in range(1, N + 1)
             if N % t == 0 and (t % cB == 0 or cB % t == 0)]
    fits = [t for t in cands if t * S <= max_rows] or [1]
    for min_steps in (4, 2, 1):
        ok = [t for t in fits if N // t >= min_steps]
        if ok:
            return max(ok)
    return max(fits)


def prepare_params(p):
    """One-time weight fusion / transposition (torch (out,in) -> matmul (in,out)).
    Matmul weights are stored bf16 (MXU-native, half the DMA/VMEM); biases and
    LN/AdaLN parameters stay f32."""
    bf16 = jnp.bfloat16
    return dict(
        w_mod=jnp.concatenate([p['Wg'], p['Wb'], p['Wa']], axis=0),           # (3D, E)
        ln_w=p['ln_w'], ln_b=p['ln_b'],
        wqkv=jnp.concatenate([p['Wq'].T, p['Wk'].T, p['Wv'].T], axis=1).astype(bf16),
        wp=p['Wp'].T.astype(bf16),
        bp=p['bp'][None, :].astype(jnp.float32),
        w1=p['W1'].T.astype(bf16),
        b1=p['b1'][None, :].astype(jnp.float32),
        w2=p['W2'].T.astype(bf16),
        b2=p['b2'][None, :].astype(jnp.float32),
    )


def transformer_pallas(x, condition, kp, type_of_transformer, dk):
    B, F, P, D = x.shape
    if type_of_transformer == 'spatial':
        xr = x.reshape(B * F, P, D)
    else:
        # TODO(synk): at production sizes, fold this permute into the BlockSpec
        # index_map over the original (B, F, P, D) layout to drop the two
        # bracketing XLA transposes (pure HBM traffic).
        xr = jnp.transpose(x, (0, 2, 1, 3)).reshape(B * P, F, D)
    N, S, _ = xr.shape
    cB = condition.shape[0]
    H = D // dk
    assert D == H * dk and N % cB == 0

    # AdaLN condition projections (tiny, fused) with the AdaLN gain folded into
    # the LayerNorm affine: scale = gama*ln_w, shift = gama*ln_b + beta.
    # Only the small (cB, 3, D) table is materialized; the per-sequence mapping
    # n -> n % cB (torch .repeat semantics) is handled by index_map + in-kernel
    # broadcast — no (N, 3, D) HBM tensor, no per-step side DMA of tiled rows.
    gba = (condition @ kp['w_mod'].T).reshape(cB, 3, D)        # [gama, beta, alpha]
    gama, beta, alpha = gba[:, 0, :], gba[:, 1, :], gba[:, 2, :]
    mod = jnp.stack([gama * kp['ln_w'], gama * kp['ln_b'] + beta, alpha], axis=1)

    TN = _pick_tn(N, S, cB)
    MB = cB if TN % cB == 0 else TN            # modulation rows resident per block
    mod_rep = TN // MB

    kernel = functools.partial(_transformer_block_kernel,
                               num_heads=H, dk=dk, mod_rep=mod_rep)

    seq_spec = pl.BlockSpec((TN, S, D), lambda i: (i, 0, 0))
    if MB == cB:
        mod_idx = lambda i: (0, 0, 0)           # whole table each step, tiled in-kernel
    else:
        nb = cB // TN
        mod_idx = lambda i: (i % nb, 0, 0)      # consecutive chunk of the table
    mod_spec = pl.BlockSpec((MB, 3, D), mod_idx)

    def const_spec(shape):
        # NOTE: at production D, mark these pipeline_mode=pl.Buffered(1) and
        # K-tile the FFN weights to stay inside v7x's 64 MiB VMEM; at D=128
        # (bf16) they total < 0.5 MiB, so default pipelining is kept.
        return pl.BlockSpec(shape, lambda i: (0, 0))

    out = pl.pallas_call(
        kernel,
        out_shape=jax.ShapeDtypeStruct((N, S, D), jnp.float32),
        grid=(N // TN,),
        in_specs=[seq_spec, mod_spec,
                  const_spec((D, 3 * D)),      # fused Wqkv (bf16)
                  const_spec((D, D)),          # Wp (bf16)
                  const_spec((1, D)),          # bp
                  const_spec((D, 4 * D)),      # W1 (bf16)
                  const_spec((1, 4 * D)),      # b1
                  const_spec((4 * D, D)),      # W2 (bf16)
                  const_spec((1, D))],         # b2
        out_specs=seq_spec,
        scratch_shapes=[pltpu.VMEM((TN * S, D), jnp.float32)],   # contiguous head outs
        compiler_params=pltpu.CompilerParams(
            dimension_semantics=("parallel",),
            vmem_limit_bytes=32 * 1024 * 1024),
    )(xr, mod, kp['wqkv'], kp['wp'], kp['bp'],
      kp['w1'], kp['b1'], kp['w2'], kp['b2'])

    if type_of_transformer == 'spatial':
        return out.reshape(B, F, P, D)
    return jnp.transpose(out.reshape(B, P, F, D), (0, 2, 1, 3))


# -------------------------- pure-JAX reference --------------------------------
def transformer_reference(x, condition, params, type_of_transformer, dk):
    B, F, P, D = x.shape
    if type_of_transformer == 'spatial':
        xr = x.reshape(B * F, P, D)
    else:
        xr = jnp.transpose(x, (0, 2, 1, 3)).reshape(B * P, F, D)
    N, S, _ = xr.shape
    cB = condition.shape[0]
    r = N // cB
    H = D // dk

    def layer_norm(v):
        mu = v.mean(-1, keepdims=True)
        var = ((v - mu) ** 2).mean(-1, keepdims=True)
        return (v - mu) / jnp.sqrt(var + LN_EPS) * params['ln_w'] + params['ln_b']

    def adaln(v):
        a = jnp.tile(condition @ params['Wa'].T, (r, 1))[:, None, :]
        g = jnp.tile(condition @ params['Wg'].T, (r, 1))[:, None, :]
        b = jnp.tile(condition @ params['Wb'].T, (r, 1))[:, None, :]
        return g * v + b, a

    def mha(v):
        q = (v @ params['Wq'].T).reshape(N, S, H, dk).transpose(0, 2, 1, 3)
        k = (v @ params['Wk'].T).reshape(N, S, H, dk).transpose(0, 2, 1, 3)
        val = (v @ params['Wv'].T).reshape(N, S, H, dk).transpose(0, 2, 1, 3)
        sc = q @ jnp.swapaxes(k, -2, -1) / dk ** 0.5
        w = jax.nn.softmax(sc, -1)
        o = (w @ val).transpose(0, 2, 1, 3).reshape(N, S, D)
        return o @ params['Wp'].T + params['bp']

    def ff(v):
        h = jax.nn.gelu(v @ params['W1'].T + params['b1'], approximate=False)
        return h @ params['W2'].T + params['b2']

    ada1, alpha1 = adaln(layer_norm(xr))
    mha_out = mha(ada1) * alpha1 + xr
    ada2, alpha2 = adaln(layer_norm(mha_out))
    out = ff(ada2) * alpha2 + mha_out

    if type_of_transformer == 'spatial':
        return out.reshape(B, F, P, D)
    return jnp.transpose(out.reshape(B, P, F, D), (0, 2, 1, 3))


# ------------------------------ params ----------------------------------------
def init_params(key, embed_dim, d_model):
    ks = jax.random.split(key, 12)

    def w(k, shape, scale=0.05):
        return (scale * jax.random.normal(k, shape)).astype(jnp.float32)

    return dict(
        # AdaLN (bias=False linears), torch Linear weight layout (out, in)
        Wa=w(ks[0], (d_model, embed_dim)),
        Wg=w(ks[1], (d_model, embed_dim)),
        Wb=w(ks[2], (d_model, embed_dim)),
        # MHA
        Wq=w(ks[3], (d_model, d_model)),
        Wk=w(ks[4], (d_model, d_model)),
        Wv=w(ks[5], (d_model, d_model)),
        Wp=w(ks[6], (d_model, d_model)),
        bp=w(ks[7], (d_model,)),
        # FeedForward
        W1=w(ks[8], (4 * d_model, d_model)),
        b1=w(ks[9], (4 * d_model,)),
        W2=w(ks[10], (d_model, 4 * d_model)),
        b2=w(ks[11], (d_model,)),
        # LayerNorm (PyTorch default init)
        ln_w=jnp.ones((d_model,), jnp.float32),
        ln_b=jnp.zeros((d_model,), jnp.float32),
    )


if __name__ == "__main__":
    # Small but lane-dense shapes: D=128 (one full lane group), 4 heads of dk=32,
    # S a multiple of 8 for both the spatial (S=P=16) and temporal (S=F=8) views.
    B, F, P, D, E = 2, 8, 16, 128, 16
    dk = 32  # 4 heads

    key = jax.random.PRNGKey(0)
    kx, kc, kpk = jax.random.split(key, 3)
    x = jax.random.normal(kx, (B, F, P, D), jnp.float32)
    condition = jax.random.normal(kc, (B, E), jnp.float32)
    params = init_params(kpk, E, D)
    kparams = prepare_params(params)   # one-time weight fusion / bf16 cast

    fwd = jax.jit(transformer_pallas, static_argnums=(3, 4))
    for mode in ("spatial", "temporal"):
        out = jax.block_until_ready(fwd(x, condition, kparams, mode, dk))
        # Reference runs at full f32 matmul precision; tolerance covers the
        # in-kernel bf16 matmul operands, the approximate-reciprocal softmax
        # denominator and MXU rounding differences.
        with jax.default_matmul_precision("float32"):
            ref = transformer_reference(x, condition, params, mode, dk)
        np.testing.assert_allclose(np.asarray(out), np.asarray(ref),
                                   rtol=2e-2, atol=2e-2)

    print("KERNEL_OK")
</pallas_src>

<mosaic_0001>
module attributes {stable_mosaic.version = 11 : i64} {
  func.func @_transformer_block_kernel(%arg0: i32, %arg1: memref<4x16x128xf32, #tpu.memory_space<vmem>>, %arg2: memref<2x3x128xf32, #tpu.memory_space<vmem>>, %arg3: memref<128x384xbf16, #tpu.memory_space<vmem>>, %arg4: memref<128x128xbf16, #tpu.memory_space<vmem>>, %arg5: memref<1x128xf32, #tpu.memory_space<vmem>>, %arg6: memref<128x512xbf16, #tpu.memory_space<vmem>>, %arg7: memref<1x512xf32, #tpu.memory_space<vmem>>, %arg8: memref<512x128xbf16, #tpu.memory_space<vmem>>, %arg9: memref<1x128xf32, #tpu.memory_space<vmem>>, %arg10: memref<4x16x128xf32, #tpu.memory_space<vmem>>, %arg11: memref<64x128xf32, #tpu.memory_space<vmem>>) attributes {dimension_semantics = [#tpu.dimension_semantics<parallel>], iteration_bounds = array<i64: 4>, scalar_prefetch = 0 : i64, scratch_operands = 1 : i64, tpu.core_type = #tpu.core_type<tc>, window_params = [{transform_indices = @transform_0, window_bounds = array<i64: 4, 16, 128>}, {pipeline_mode = #tpu.pipeline_mode<synchronous>, transform_indices = @transform_1, window_bounds = array<i64: 2, 3, 128>}, {pipeline_mode = #tpu.pipeline_mode<synchronous>, transform_indices = @transform_2, window_bounds = array<i64: 128, 384>}, {pipeline_mode = #tpu.pipeline_mode<synchronous>, transform_indices = @transform_3, window_bounds = array<i64: 128, 128>}, {pipeline_mode = #tpu.pipeline_mode<synchronous>, transform_indices = @transform_4, window_bounds = array<i64: 1, 128>}, {pipeline_mode = #tpu.pipeline_mode<synchronous>, transform_indices = @transform_5, window_bounds = array<i64: 128, 512>}, {pipeline_mode = #tpu.pipeline_mode<synchronous>, transform_indices = @transform_6, window_bounds = array<i64: 1, 512>}, {pipeline_mode = #tpu.pipeline_mode<synchronous>, transform_indices = @transform_7, window_bounds = array<i64: 512, 128>}, {pipeline_mode = #tpu.pipeline_mode<synchronous>, transform_indices = @transform_8, window_bounds = array<i64: 1, 128>}, {transform_indices = @transform_9, window_bounds = array<i64: 4, 16, 128>}]} {
    %c0 = arith.constant 0 : index
    %c0_0 = arith.constant 0 : index
    %c0_1 = arith.constant 0 : index
    %0 = vector.load %arg1[%c0, %c0_0, %c0_1] : memref<4x16x128xf32, #tpu.memory_space<vmem>>, vector<4x16x128xf32>
    %c0_2 = arith.constant 0 : index
    %c0_3 = arith.constant 0 : index
    %c0_4 = arith.constant 0 : index
    %1 = vector.load %arg2[%c0_2, %c0_3, %c0_4] : memref<2x3x128xf32, #tpu.memory_space<vmem>>, vector<2x3x128xf32>
    %2 = vector.extract_strided_slice %1 {offsets = [0, 0, 0], sizes = [2, 1, 128], strides = [1, 1, 1]} : vector<2x3x128xf32> to vector<2x1x128xf32>
    %3 = vector.shape_cast %2 : vector<2x1x128xf32> to vector<2x128xf32>
    %4 = vector.shape_cast %3 : vector<2x128xf32> to vector<1x2x1x128xf32>
    %5 = vector.shape_cast %4 : vector<1x2x1x128xf32> to vector<1x2x1x128xf32>
    %6 = vector.broadcast %5 : vector<1x2x1x128xf32> to vector<2x2x16x128xf32>
    %7 = vector.shape_cast %6 : vector<2x2x16x128xf32> to vector<4x16x128xf32>
    %8 = vector.extract_strided_slice %1 {offsets = [0, 1, 0], sizes = [2, 1, 128], strides = [1, 1, 1]} : vector<2x3x128xf32> to vector<2x1x128xf32>
    %9 = vector.shape_cast %8 : vector<2x1x128xf32> to vector<2x128xf32>
    %10 = vector.shape_cast %9 : vector<2x128xf32> to vector<1x2x1x128xf32>
    %11 = vector.shape_cast %10 : vector<1x2x1x128xf32> to vector<1x2x1x128xf32>
    %12 = vector.broadcast %11 : vector<1x2x1x128xf32> to vector<2x2x16x128xf32>
    %13 = vector.shape_cast %12 : vector<2x2x16x128xf32> to vector<4x16x128xf32>
    %14 = vector.extract_strided_slice %1 {offsets = [0, 2, 0], sizes = [2, 1, 128], strides = [1, 1, 1]} : vector<2x3x128xf32> to vector<2x1x128xf32>
    %15 = vector.shape_cast %14 : vector<2x1x128xf32> to vector<2x128xf32>
    %16 = vector.shape_cast %15 : vector<2x128xf32> to vector<1x2x1x128xf32>
    %17 = vector.shape_cast %16 : vector<1x2x1x128xf32> to vector<1x2x1x128xf32>
    %18 = vector.broadcast %17 : vector<1x2x1x128xf32> to vector<2x2x16x128xf32>
    %19 = vector.shape_cast %18 : vector<2x2x16x128xf32> to vector<4x16x128xf32>
    %cst = arith.constant dense<0.000000e+00> : vector<4x16xf32>
    %20 = vector.multi_reduction <add>, %0, %cst [2] : vector<4x16x128xf32> to vector<4x16xf32>
    %21 = vector.shape_cast %20 : vector<4x16xf32> to vector<4x16x1xf32>
    %cst_5 = arith.constant 1.280000e+02 : f32
    %22 = vector.broadcast %cst_5 : f32 to vector<4x16x1xf32>
    %23 = arith.divf %21, %22 : vector<4x16x1xf32>
    %24 = vector.broadcast %23 : vector<4x16x1xf32> to vector<4x16x128xf32>
    %25 = arith.subf %0, %24 : vector<4x16x128xf32>
    %26 = arith.mulf %25, %25 : vector<4x16x128xf32>
    %cst_6 = arith.constant dense<0.000000e+00> : vector<4x16xf32>
    %27 = vector.multi_reduction <add>, %26, %cst_6 [2] : vector<4x16x128xf32> to vector<4x16xf32>
    %28 = vector.shape_cast %27 : vector<4x16xf32> to vector<4x16x1xf32>
    %cst_7 = arith.constant 1.280000e+02 : f32
    %29 = vector.broadcast %cst_7 : f32 to vector<4x16x1xf32>
    %30 = arith.divf %28, %29 : vector<4x16x1xf32>
    %cst_8 = arith.constant 9.99999974E-6 : f32
    %31 = vector.broadcast %cst_8 : f32 to vector<4x16x1xf32>
    %32 = arith.addf %30, %31 : vector<4x16x1xf32>
    %33 = math.rsqrt %32 : vector<4x16x1xf32>
    %34 = vector.broadcast %33 : vector<4x16x1xf32> to vector<4x16x128xf32>
    %35 = arith.mulf %25, %34 : vector<4x16x128xf32>
    %36 = arith.mulf %35, %7 : vector<4x16x128xf32>
    %37 = arith.addf %36, %13 : vector<4x16x128xf32>
    %38 = vector.shape_cast %37 : vector<4x16x128xf32> to vector<64x128xf32>
    %39 = arith.truncf %38 : vector<64x128xf32> to vector<64x128xbf16>
    %c0_9 = arith.constant 0 : index
    %c0_10 = arith.constant 0 : index
    %40 = vector.load %arg3[%c0_9, %c0_10] : memref<128x384xbf16, #tpu.memory_space<vmem>>, vector<128x384xbf16>
    %cst_11 = arith.constant dense<0.000000e+00> : vector<64x384xf32>
    %41 = tpu.matmul %39, %40, %cst_11 {dimension_numbers = #tpu.dot_dimension_numbers<[1], [0], [0], [1], [0, 0, 1, 1], [], []>} : vector<64x128xbf16>, vector<128x384xbf16>, vector<64x384xf32> -> vector<64x384xf32>
    %42 = vector.extract_strided_slice %41 {offsets = [0, 0], sizes = [64, 128], strides = [1, 1]} : vector<64x384xf32> to vector<64x128xf32>
    %cst_12 = arith.constant 0.176776692 : f32
    %43 = vector.broadcast %cst_12 : f32 to vector<64x128xf32>
    %44 = arith.mulf %42, %43 : vector<64x128xf32>
    %45 = arith.truncf %44 : vector<64x128xf32> to vector<64x128xbf16>
    %46 = vector.extract_strided_slice %41 {offsets = [0, 128], sizes = [64, 128], strides = [1, 1]} : vector<64x384xf32> to vector<64x128xf32>
    %47 = arith.truncf %46 : vector<64x128xf32> to vector<64x128xbf16>
    %48 = vector.extract_strided_slice %41 {offsets = [0, 256], sizes = [64, 128], strides = [1, 1]} : vector<64x384xf32> to vector<64x128xf32>
    %49 = arith.truncf %48 : vector<64x128xf32> to vector<64x128xbf16>
    %50 = vector.extract_strided_slice %45 {offsets = [0, 0], sizes = [64, 32], strides = [1, 1]} : vector<64x128xbf16> to vector<64x32xbf16>
    %51 = vector.shape_cast %50 : vector<64x32xbf16> to vector<4x16x32xbf16>
    %52 = vector.extract_strided_slice %45 {offsets = [0, 32], sizes = [64, 32], strides = [1, 1]} : vector<64x128xbf16> to vector<64x32xbf16>
    %53 = vector.shape_cast %52 : vector<64x32xbf16> to vector<4x16x32xbf16>
    %54 = vector.extract_strided_slice %45 {offsets = [0, 64], sizes = [64, 32], strides = [1, 1]} : vector<64x128xbf16> to vector<64x32xbf16>
    %55 = vector.shape_cast %54 : vector<64x32xbf16> to vector<4x16x32xbf16>
    %56 = vector.extract_strided_slice %45 {offsets = [0, 96], sizes = [64, 32], strides = [1, 1]} : vector<64x128xbf16> to vector<64x32xbf16>
    %57 = vector.shape_cast %56 : vector<64x32xbf16> to vector<4x16x32xbf16>
    %58 = tpu.concatenate %51, %53, %55, %57 in 0 : vector<4x16x32xbf16>, vector<4x16x32xbf16>, vector<4x16x32xbf16>, vector<4x16x32xbf16> -> vector<16x16x32xbf16>
    %59 = vector.extract_strided_slice %47 {offsets = [0, 0], sizes = [64, 32], strides = [1, 1]} : vector<64x128xbf16> to vector<64x32xbf16>
    %60 = vector.shape_cast %59 : vector<64x32xbf16> to vector<4x16x32xbf16>
    %61 = vector.extract_strided_slice %47 {offsets = [0, 32], sizes = [64, 32], strides = [1, 1]} : vector<64x128xbf16> to vector<64x32xbf16>
    %62 = vector.shape_cast %61 : vector<64x32xbf16> to vector<4x16x32xbf16>
    %63 = vector.extract_strided_slice %47 {offsets = [0, 64], sizes = [64, 32], strides = [1, 1]} : vector<64x128xbf16> to vector<64x32xbf16>
    %64 = vector.shape_cast %63 : vector<64x32xbf16> to vector<4x16x32xbf16>
    %65 = vector.extract_strided_slice %47 {offsets = [0, 96], sizes = [64, 32], strides = [1, 1]} : vector<64x128xbf16> to vector<64x32xbf16>
    %66 = vector.shape_cast %65 : vector<64x32xbf16> to vector<4x16x32xbf16>
    %67 = tpu.concatenate %60, %62, %64, %66 in 0 : vector<4x16x32xbf16>, vector<4x16x32xbf16>, vector<4x16x32xbf16>, vector<4x16x32xbf16> -> vector<16x16x32xbf16>
    %68 = vector.extract_strided_slice %49 {offsets = [0, 0], sizes = [64, 32], strides = [1, 1]} : vector<64x128xbf16> to vector<64x32xbf16>
    %69 = vector.shape_cast %68 : vector<64x32xbf16> to vector<4x16x32xbf16>
    %70 = vector.extract_strided_slice %49 {offsets = [0, 32], sizes = [64, 32], strides = [1, 1]} : vector<64x128xbf16> to vector<64x32xbf16>
    %71 = vector.shape_cast %70 : vector<64x32xbf16> to vector<4x16x32xbf16>
    %72 = vector.extract_strided_slice %49 {offsets = [0, 64], sizes = [64, 32], strides = [1, 1]} : vector<64x128xbf16> to vector<64x32xbf16>
    %73 = vector.shape_cast %72 : vector<64x32xbf16> to vector<4x16x32xbf16>
    %74 = vector.extract_strided_slice %49 {offsets = [0, 96], sizes = [64, 32], strides = [1, 1]} : vector<64x128xbf16> to vector<64x32xbf16>
    %75 = vector.shape_cast %74 : vector<64x32xbf16> to vector<4x16x32xbf16>
    %76 = tpu.concatenate %69, %71, %73, %75 in 0 : vector<4x16x32xbf16>, vector<4x16x32xbf16>, vector<4x16x32xbf16>, vector<4x16x32xbf16> -> vector<16x16x32xbf16>
    "tpu.trace_start"() <{level = 10 : i32, message = "bsd,btd->bst"}> : () -> ()
    %cst_13 = arith.constant dense<0.000000e+00> : vector<16x16x16xf32>
    %77 = tpu.matmul %58, %67, %cst_13 {dimension_numbers = #tpu.dot_dimension_numbers<[2], [2], [1], [1], [0, 0, 0, 1, 1, 1], [0], [0]>} : vector<16x16x32xbf16>, vector<16x16x32xbf16>, vector<16x16x16xf32> -> vector<16x16x16xf32>
    "tpu.trace_stop"() : () -> ()
    %cst_14 = arith.constant dense<0xFF800000> : vector<16x16xf32>
    %78 = vector.multi_reduction <maximumf>, %77, %cst_14 [2] : vector<16x16x16xf32> to vector<16x16xf32>
    %79 = vector.shape_cast %78 : vector<16x16xf32> to vector<16x16x1xf32>
    %80 = vector.broadcast %79 : vector<16x16x1xf32> to vector<16x16x16xf32>
    %81 = arith.subf %77, %80 : vector<16x16x16xf32>
    %82 = math.exp %81 : vector<16x16x16xf32>
    %cst_15 = arith.constant dense<0.000000e+00> : vector<16x16xf32>
    %83 = vector.multi_reduction <add>, %82, %cst_15 [2] : vector<16x16x16xf32> to vector<16x16xf32>
    %84 = vector.shape_cast %83 : vector<16x16xf32> to vector<16x16x1xf32>
    %85 = tpu.reciprocal %84 {approx = true} : vector<16x16x1xf32> -> vector<16x16x1xf32>
    %86 = vector.broadcast %85 : vector<16x16x1xf32> to vector<16x16x16xf32>
    %87 = arith.mulf %82, %86 : vector<16x16x16xf32>
    %88 = arith.truncf %87 : vector<16x16x16xf32> to vector<16x16x16xbf16>
    "tpu.trace_start"() <{level = 10 : i32, message = "bst,btd->bsd"}> : () -> ()
    %cst_16 = arith.constant dense<0.000000e+00> : vector<16x16x32xf32>
    %89 = tpu.matmul %88, %76, %cst_16 {dimension_numbers = #tpu.dot_dimension_numbers<[2], [1], [1], [2], [0, 0, 0, 1, 1, 2], [0], [0]>} : vector<16x16x16xbf16>, vector<16x16x32xbf16>, vector<16x16x32xf32> -> vector<16x16x32xf32>
    "tpu.trace_stop"() : () -> ()
    %90 = vector.extract_strided_slice %89 {offsets = [0, 0, 0], sizes = [4, 16, 32], strides = [1, 1, 1]} : vector<16x16x32xf32> to vector<4x16x32xf32>
    %91 = vector.shape_cast %90 : vector<4x16x32xf32> to vector<64x32xf32>
    %c0_17 = arith.constant 0 : index
    %c0_18 = arith.constant 0 : index
    %92 = vector.load %arg11[%c0_17, %c0_18] : memref<64x128xf32, #tpu.memory_space<vmem>>, vector<64x32xf32>
    tpu.vector_store %arg11[%c0_17, %c0_18], %91 {strides = array<i32>} : memref<64x128xf32, #tpu.memory_space<vmem>>, vector<64x32xf32>,
    %93 = vector.extract_strided_slice %89 {offsets = [4, 0, 0], sizes = [4, 16, 32], strides = [1, 1, 1]} : vector<16x16x32xf32> to vector<4x16x32xf32>
    %94 = vector.shape_cast %93 : vector<4x16x32xf32> to vector<64x32xf32>
    %c0_19 = arith.constant 0 : index
    %c32 = arith.constant 32 : index
    %95 = vector.load %arg11[%c0_19, %c32] : memref<64x128xf32, #tpu.memory_space<vmem>>, vector<64x32xf32>
    tpu.vector_store %arg11[%c0_19, %c32], %94 {strides = array<i32>} : memref<64x128xf32, #tpu.memory_space<vmem>>, vector<64x32xf32>,
    %96 = vector.extract_strided_slice %89 {offsets = [8, 0, 0], sizes = [4, 16, 32], strides = [1, 1, 1]} : vector<16x16x32xf32> to vector<4x16x32xf32>
    %97 = vector.shape_cast %96 : vector<4x16x32xf32> to vector<64x32xf32>
    %c0_20 = arith.constant 0 : index
    %c64 = arith.constant 64 : index
    %98 = vector.load %arg11[%c0_20, %c64] : memref<64x128xf32, #tpu.memory_space<vmem>>, vector<64x32xf32>
    tpu.vector_store %arg11[%c0_20, %c64], %97 {strides = array<i32>} : memref<64x128xf32, #tpu.memory_space<vmem>>, vector<64x32xf32>,
    %99 = vector.extract_strided_slice %89 {offsets = [12, 0, 0], sizes = [4, 16, 32], strides = [1, 1, 1]} : vector<16x16x32xf32> to vector<4x16x32xf32>
    %100 = vector.shape_cast %99 : vector<4x16x32xf32> to vector<64x32xf32>
    %c0_21 = arith.constant 0 : index
    %c96 = arith.constant 96 : index
    %101 = vector.load %arg11[%c0_21, %c96] : memref<64x128xf32, #tpu.memory_space<vmem>>, vector<64x32xf32>
    tpu.vector_store %arg11[%c0_21, %c96], %100 {strides = array<i32>} : memref<64x128xf32, #tpu.memory_space<vmem>>, vector<64x32xf32>,
    %c0_22 = arith.constant 0 : index
    %c0_23 = arith.constant 0 : index
    %102 = vector.load %arg11[%c0_22, %c0_23] : memref<64x128xf32, #tpu.memory_space<vmem>>, vector<64x128xf32>
    %103 = arith.truncf %102 : vector<64x128xf32> to vector<64x128xbf16>
    %c0_24 = arith.constant 0 : index
    %c0_25 = arith.constant 0 : index
    %104 = vector.load %arg4[%c0_24, %c0_25] : memref<128x128xbf16, #tpu.memory_space<vmem>>, vector<128x128xbf16>
    %cst_26 = arith.constant dense<0.000000e+00> : vector<64x128xf32>
    %105 = tpu.matmul %103, %104, %cst_26 {dimension_numbers = #tpu.dot_dimension_numbers<[1], [0], [0], [1], [0, 0, 1, 1], [], []>} : vector<64x128xbf16>, vector<128x128xbf16>, vector<64x128xf32> -> vector<64x128xf32>
    %c0_27 = arith.constant 0 : index
    %c0_28 = arith.constant 0 : index
    %106 = vector.load %arg5[%c0_27, %c0_28] : memref<1x128xf32, #tpu.memory_space<vmem>>, vector<1x128xf32>
    %107 = vector.broadcast %106 : vector<1x128xf32> to vector<64x128xf32>
    %108 = arith.addf %105, %107 : vector<64x128xf32>
    %109 = vector.shape_cast %108 : vector<64x128xf32> to vector<4x16x128xf32>
    %110 = arith.mulf %109, %19 : vector<4x16x128xf32>
    %111 = arith.addf %110, %0 : vector<4x16x128xf32>
    %cst_29 = arith.constant dense<0.000000e+00> : vector<4x16xf32>
    %112 = vector.multi_reduction <add>, %111, %cst_29 [2] : vector<4x16x128xf32> to vector<4x16xf32>
    %113 = vector.shape_cast %112 : vector<4x16xf32> to vector<4x16x1xf32>
    %cst_30 = arith.constant 1.280000e+02 : f32
    %114 = vector.broadcast %cst_30 : f32 to vector<4x16x1xf32>
    %115 = arith.divf %113, %114 : vector<4x16x1xf32>
    %116 = vector.broadcast %115 : vector<4x16x1xf32> to vector<4x16x128xf32>
    %117 = arith.subf %111, %116 : vector<4x16x128xf32>
    %118 = arith.mulf %117, %117 : vector<4x16x128xf32>
    %cst_31 = arith.constant dense<0.000000e+00> : vector<4x16xf32>
    %119 = vector.multi_reduction <add>, %118, %cst_31 [2] : vector<4x16x128xf32> to vector<4x16xf32>
    %120 = vector.shape_cast %119 : vector<4x16xf32> to vector<4x16x1xf32>
    %cst_32 = arith.constant 1.280000e+02 : f32
    %121 = vector.broadcast %cst_32 : f32 to vector<4x16x1xf32>
    %122 = arith.divf %120, %121 : vector<4x16x1xf32>
    %cst_33 = arith.constant 9.99999974E-6 : f32
    %123 = vector.broadcast %cst_33 : f32 to vector<4x16x1xf32>
    %124 = arith.addf %122, %123 : vector<4x16x1xf32>
    %125 = math.rsqrt %124 : vector<4x16x1xf32>
    %126 = vector.broadcast %125 : vector<4x16x1xf32> to vector<4x16x128xf32>
    %127 = arith.mulf %117, %126 : vector<4x16x128xf32>
    %128 = arith.mulf %127, %7 : vector<4x16x128xf32>
    %129 = arith.addf %128, %13 : vector<4x16x128xf32>
    %130 = vector.shape_cast %129 : vector<4x16x128xf32> to vector<64x128xf32>
    %131 = arith.truncf %130 : vector<64x128xf32> to vector<64x128xbf16>
    %c0_34 = arith.constant 0 : index
    %c0_35 = arith.constant 0 : index
    %132 = vector.load %arg6[%c0_34, %c0_35] : memref<128x512xbf16, #tpu.memory_space<vmem>>, vector<128x512xbf16>
    %cst_36 = arith.constant dense<0.000000e+00> : vector<64x512xf32>
    %133 = tpu.matmul %131, %132, %cst_36 {dimension_numbers = #tpu.dot_dimension_numbers<[1], [0], [0], [1], [0, 0, 1, 1], [], []>} : vector<64x128xbf16>, vector<128x512xbf16>, vector<64x512xf32> -> vector<64x512xf32>
    %c0_37 = arith.constant 0 : index
    %c0_38 = arith.constant 0 : index
    %134 = vector.load %arg7[%c0_37, %c0_38] : memref<1x512xf32, #tpu.memory_space<vmem>>, vector<1x512xf32>
    %135 = vector.broadcast %134 : vector<1x512xf32> to vector<64x512xf32>
    %136 = arith.addf %133, %135 : vector<64x512xf32>
    %cst_39 = arith.constant 5.000000e-01 : f32
    %137 = vector.broadcast %cst_39 : f32 to vector<64x512xf32>
    %138 = arith.mulf %137, %136 : vector<64x512xf32>
    %cst_40 = arith.constant 0.707106769 : f32
    %139 = vector.broadcast %cst_40 : f32 to vector<64x512xf32>
    %140 = arith.mulf %136, %139 : vector<64x512xf32>
    %141 = math.erf %140 : vector<64x512xf32>
    %cst_41 = arith.constant 1.000000e+00 : f32
    %142 = vector.broadcast %cst_41 : f32 to vector<64x512xf32>
    %143 = arith.addf %142, %141 : vector<64x512xf32>
    %144 = arith.mulf %138, %143 : vector<64x512xf32>
    %145 = arith.truncf %144 : vector<64x512xf32> to vector<64x512xbf16>
    %c0_42 = arith.constant 0 : index
    %c0_43 = arith.constant 0 : index
    %146 = vector.load %arg8[%c0_42, %c0_43] : memref<512x128xbf16, #tpu.memory_space<vmem>>, vector<512x128xbf16>
    %cst_44 = arith.constant dense<0.000000e+00> : vector<64x128xf32>
    %147 = tpu.matmul %145, %146, %cst_44 {dimension_numbers = #tpu.dot_dimension_numbers<[1], [0], [0], [1], [0, 0, 1, 1], [], []>} : vector<64x512xbf16>, vector<512x128xbf16>, vector<64x128xf32> -> vector<64x128xf32>
    %c0_45 = arith.constant 0 : index
    %c0_46 = arith.constant 0 : index
    %148 = vector.load %arg9[%c0_45, %c0_46] : memref<1x128xf32, #tpu.memory_space<vmem>>, vector<1x128xf32>
    %149 = vector.broadcast %148 : vector<1x128xf32> to vector<64x128xf32>
    %150 = arith.addf %147, %149 : vector<64x128xf32>
    %151 = vector.shape_cast %150 : vector<64x128xf32> to vector<4x16x128xf32>
    %152 = arith.mulf %151, %19 : vector<4x16x128xf32>
    %153 = arith.addf %152, %111 : vector<4x16x128xf32>
    %c0_47 = arith.constant 0 : index
    %c0_48 = arith.constant 0 : index
    %c0_49 = arith.constant 0 : index
    %154 = vector.load %arg10[%c0_47, %c0_48, %c0_49] : memref<4x16x128xf32, #tpu.memory_space<vmem>>, vector<4x16x128xf32>
    tpu.vector_store %arg10[%c0_47, %c0_48, %c0_49], %153 {strides = array<i32>} : memref<4x16x128xf32, #tpu.memory_space<vmem>>, vector<4x16x128xf32>,
    return
  }
  func.func @transform_0(%arg0: i32) -> (i32, i32, i32) {
    %c0_i32 = arith.constant 0 : i32
    %c0_i32_0 = arith.constant 0 : i32
    %c0_i32_1 = arith.constant 0 : i32
    return %arg0, %c0_i32, %c0_i32_0 : i32, i32, i32
  }
  func.func @transform_1(%arg0: i32) -> (i32, i32, i32) {
    %c0_i32 = arith.constant 0 : i32
    %c0_i32_0 = arith.constant 0 : i32
    %c0_i32_1 = arith.constant 0 : i32
    %c0_i32_2 = arith.constant 0 : i32
    return %c0_i32, %c0_i32_0, %c0_i32_1 : i32, i32, i32
  }
  func.func @transform_2(%arg0: i32) -> (i32, i32) {
    %c0_i32 = arith.constant 0 : i32
    %c0_i32_0 = arith.constant 0 : i32
    %c0_i32_1 = arith.constant 0 : i32
    return %c0_i32, %c0_i32_0 : i32, i32
  }
  func.func @transform_3(%arg0: i32) -> (i32, i32) {
    %c0_i32 = arith.constant 0 : i32
    %c0_i32_0 = arith.constant 0 : i32
    %c0_i32_1 = arith.constant 0 : i32
    return %c0_i32, %c0_i32_0 : i32, i32
  }
  func.func @transform_4(%arg0: i32) -> (i32, i32) {
    %c0_i32 = arith.constant 0 : i32
    %c0_i32_0 = arith.constant 0 : i32
    %c0_i32_1 = arith.constant 0 : i32
    return %c0_i32, %c0_i32_0 : i32, i32
  }
  func.func @transform_5(%arg0: i32) -> (i32, i32) {
    %c0_i32 = arith.constant 0 : i32
    %c0_i32_0 = arith.constant 0 : i32
    %c0_i32_1 = arith.constant 0 : i32
    return %c0_i32, %c0_i32_0 : i32, i32
  }
  func.func @transform_6(%arg0: i32) -> (i32, i32) {
    %c0_i32 = arith.constant 0 : i32
    %c0_i32_0 = arith.constant 0 : i32
    %c0_i32_1 = arith.constant 0 : i32
    return %c0_i32, %c0_i32_0 : i32, i32
  }
  func.func @transform_7(%arg0: i32) -> (i32, i32) {
    %c0_i32 = arith.constant 0 : i32
    %c0_i32_0 = arith.constant 0 : i32
    %c0_i32_1 = arith.constant 0 : i32
    return %c0_i32, %c0_i32_0 : i32, i32
  }
  func.func @transform_8(%arg0: i32) -> (i32, i32) {
    %c0_i32 = arith.constant 0 : i32
    %c0_i32_0 = arith.constant 0 : i32
    %c0_i32_1 = arith.constant 0 : i32
    return %c0_i32, %c0_i32_0 : i32, i32
  }
  func.func @transform_9(%arg0: i32) -> (i32, i32, i32) {
    %c0_i32 = arith.constant 0 : i32
    %c0_i32_0 = arith.constant 0 : i32
    %c0_i32_1 = arith.constant 0 : i32
    return %arg0, %c0_i32, %c0_i32_0 : i32, i32, i32
  }
}

</mosaic_0001>

<llo_original>
// kernel: transformer_pallas.1
$region0: #{transformer_pallas.1}
  #allocation0 [shape = 'u32[]', space=smem, size = 0x4, offset = 0x4, fixed_abs, tag = 'smem constant byte address 0x4 - core index']
  #allocation1 [shape = 'u32[144,128]{1,0:T(1,128)}', space=vmem, size = 0x12000, scoped, tag = 'internal scratch']
  #allocation2 [shape = 'f32[64,128]{1,0:T(8,128)}', space=vmem, size = 0x8000, scoped, tag = 'scratch operand']
  %s0 = inlined_call_operand.hbm [shape: f32[16,16,128], index: 0, kind: input, shape index: {}]
  %s1 = inlined_call_operand.vmem [shape: f32[2,3,128], index: 1, kind: input, shape index: {}]
  %s2 = inlined_call_operand.hbm [shape: bf16[128,384], index: 2, kind: input, shape index: {}]
  %s3 = inlined_call_operand.vmem [shape: bf16[128,128], index: 3, kind: input, shape index: {}]
  %s4 = inlined_call_operand.vmem [shape: f32[1,128], index: 4, kind: input, shape index: {}]
  %s5 = inlined_call_operand.hbm [shape: bf16[128,512], index: 5, kind: input, shape index: {}]
  %s6 = inlined_call_operand.vmem [shape: f32[1,512], index: 6, kind: input, shape index: {}]
  %s7 = inlined_call_operand.hbm [shape: bf16[512,128], index: 7, kind: input, shape index: {}]
  %s8 = inlined_call_operand.vmem [shape: f32[1,128], index: 8, kind: input, shape index: {}]
  %s9 = inlined_call_operand.hbm [shape: f32[16,16,128], index: 9, kind: output, shape index: {}]
  %s10 = sld [smem:[#allocation0]]
  $region85: #{transformer_pallas.1} parent=0
    _
  %s12 = ssub.s32 1, %s10
  %s13 = scalar_select 0, %s12, %s10
  $region1: #{transformer_pallas.1} parent=0
    #allocation3 [shape = 'u8[65536]{0}', space=vmem, size = 0x10000, scoped, tag = 'input window, operand 0']
    #allocation4 [shape = 's32[2]{0}', space=sflag, size = 0x8, scoped, tag = 'scoped memory for transformer_pallas.1']
    #allocation5 [shape = 's32[2]{0}', space=sflag, size = 0x8, scoped, tag = 'scoped memory for transformer_pallas.1']
    #allocation6 [shape = 'u8[98304]{0}', space=vmem, size = 0x18000, scoped, tag = 'input window, operand 2, single buffered']
    #allocation7 [shape = 's32[1]{0}', space=sflag, size = 0x4, scoped, tag = 'scoped memory for transformer_pallas.1']
    #allocation8 [shape = 'u8[131072]{0}', space=vmem, size = 0x20000, scoped, tag = 'input window, operand 5, single buffered']
    #allocation9 [shape = 'u8[131072]{0}', space=vmem, size = 0x20000, scoped, tag = 'input window, operand 7, single buffered']
    #allocation10 [shape = 's32[1]{0}', space=sflag, size = 0x4, scoped, tag = 'scoped memory for transformer_pallas.1']
    #allocation11 [shape = 'u8[65536]{0}', space=vmem, size = 0x10000, scoped, tag = 'output window, operand 0']
    %14 = vsyncpa [#allocation4], 0
    %s15 = scalar_lea.sflag [#allocation4], 1
    %16 = vsyncpa %s15, 0
    %17 = vsyncpa [#allocation7], 0
    %18 = vsyncpa [#allocation10], 0
    %19 = vsyncpa [#allocation5], 0
    %s20 = scalar_lea.sflag [#allocation5], 1
    %21 = vsyncpa %s20, 0
    loop: start=0, step=1, limit=6
    $region2: #{transformer_pallas.1} parent=1 // loop_pre_header
      _
    $region3: #{transformer_pallas.1} parent=1 // loop_header
      %s23 = sphi 0, %s27
      %p24 = scmp.ge.s32.totalorder %s23, 6
      %s33 = sphi 0, %s35
      %s36 = sphi 0, %s33
      %s37 = sphi 0, %s36
      %s53 = sphi 0, %s37
      %s57 = sphi 0, %s57
      %s59 = sphi 0, %s57
      %s60 = sphi 0, %s59
      %s74 = sphi 0, %s60
      %s78 = sphi 0, %s78
      %s80 = sphi 0, %s78
      %s81 = sphi 0, %s80
      %s95 = sphi 0, %s81
      %s99 = sphi 0, %s99
      %s101 = sphi 0, %s99
      %s102 = sphi 0, %s101
      %s116 = sphi 0, %s102
      %s120 = sphi 0, %s120
      %s122 = sphi 0, %s120
      %s123 = sphi 0, %s122
      %s137 = sphi 0, %s123
      %s141 = sphi 0, %s141
      %s143 = sphi 0, %s141
      %s144 = sphi 0, %s143
      %s158 = sphi 0, %s144
      %s162 = sphi 0, %s162
      %s164 = sphi 0, %s162
      %s165 = sphi 0, %s164
      %s179 = sphi 0, %s165
      %s183 = sphi 0, %s183
      %s185 = sphi 0, %s183
      %s186 = sphi 0, %s185
      %s200 = sphi 0, %s186
      %s204 = sphi 0, %s204
      %s206 = sphi 0, %s204
      %s207 = sphi 0, %s206
      %s221 = sphi 0, %s207
      %s227 = sphi 0, %s229
      %s230 = sphi 0, %s227
      %s231 = sphi 0, %s230
      %s247 = sphi 0, %s231
    $region4: #{transformer_pallas.1} parent=1 // loop_header_branch
      %26 = sbr.rel (%p24) target = $region8
    $region5: #{transformer_pallas.1} parent=1 // loop_body
      %s28 = ssub.s32 %s23, 1
      %s29 = ssub.s32 %s23, 2
      %s30 = sadd.s32 %s23, 1
      %s31 = ssub.s32 %s23, %s30
      %p32 = scmp.eq.s32.totalorder %s31, 0
      %s34 = sadd.s32 %s33, 1
      %s35 = scalar_select %p32, %s33, %s34
      %p38 = pneg %p32
      %p39 = scmp.eq.s32.totalorder %s23, 3
      %p40 = por %p38, %p39
      %p41 = scmp.ne.s32.totalorder %s33, %s36
      %p42 = scmp.eq.s32.totalorder %s23, 0
      %p43 = por %p41, %p42
      %p44 = scmp.ne.s32.totalorder %s33, %s36
      %p45 = scmp.eq.s32.totalorder %s28, 3
      %p46 = por %p44, %p45
      %p47 = scmp.ne.s32.totalorder %s36, %s37
      %p48 = scmp.eq.s32.totalorder %s28, 0
      %p49 = por %p47, %p48
      %p50 = scmp.ne.s32.totalorder %s36, %s37
      %p51 = scmp.eq.s32.totalorder %s29, 3
      %p52 = por %p50, %p51
      %p54 = scmp.ne.s32.totalorder %s37, %s53
      %p55 = scmp.eq.s32.totalorder %s29, 0
      %p56 = por %p54, %p55
      %s58 = sadd.s32 %s57, 1
      %p61 = scmp.eq.s32.totalorder %s23, 3
      %p62 = scmp.ne.s32.totalorder %s57, %s59
      %p63 = scmp.eq.s32.totalorder %s23, 0
      %p64 = por %p62, %p63
      %p65 = scmp.ne.s32.totalorder %s57, %s59
      %p66 = scmp.eq.s32.totalorder %s28, 3
      %p67 = por %p65, %p66
      %p68 = scmp.ne.s32.totalorder %s59, %s60
      %p69 = scmp.eq.s32.totalorder %s28, 0
      %p70 = por %p68, %p69
      %p71 = scmp.ne.s32.totalorder %s59, %s60
      %p72 = scmp.eq.s32.totalorder %s29, 3
      %p73 = por %p71, %p72
      %p75 = scmp.ne.s32.totalorder %s60, %s74
      %p76 = scmp.eq.s32.totalorder %s29, 0
      %p77 = por %p75, %p76
      %s79 = sadd.s32 %s78, 1
      %p82 = scmp.eq.s32.totalorder %s23, 3
      %p83 = scmp.ne.s32.totalorder %s78, %s80
      %p84 = scmp.eq.s32.totalorder %s23, 0
      %p85 = por %p83, %p84
      %p86 = scmp.ne.s32.totalorder %s78, %s80
      %p87 = scmp.eq.s32.totalorder %s28, 3
      %p88 = por %p86, %p87
      %p89 = scmp.ne.s32.totalorder %s80, %s81
      %p90 = scmp.eq.s32.totalorder %s28, 0
      %p91 = por %p89, %p90
      %p92 = scmp.ne.s32.totalorder %s80, %s81
      %p93 = scmp.eq.s32.totalorder %s29, 3
      %p94 = por %p92, %p93
      %p96 = scmp.ne.s32.totalorder %s81, %s95
      %p97 = scmp.eq.s32.totalorder %s29, 0
      %p98 = por %p96, %p97
      %s100 = sadd.s32 %s99, 1
      %p103 = scmp.eq.s32.totalorder %s23, 3
      %p104 = scmp.ne.s32.totalorder %s99, %s101
      %p105 = scmp.eq.s32.totalorder %s23, 0
      %p106 = por %p104, %p105
      %p107 = scmp.ne.s32.totalorder %s99, %s101
      %p108 = scmp.eq.s32.totalorder %s28, 3
      %p109 = por %p107, %p108
      %p110 = scmp.ne.s32.totalorder %s101, %s102
      %p111 = scmp.eq.s32.totalorder %s28, 0
      %p112 = por %p110, %p111
      %p113 = scmp.ne.s32.totalorder %s101, %s102
      %p114 = scmp.eq.s32.totalorder %s29, 3
      %p115 = por %p113, %p114
      %p117 = scmp.ne.s32.totalorder %s102, %s116
      %p118 = scmp.eq.s32.totalorder %s29, 0
      %p119 = por %p117, %p118
      %s121 = sadd.s32 %s120, 1
      %p124 = scmp.eq.s32.totalorder %s23, 3
      %p125 = scmp.ne.s32.totalorder %s120, %s122
      %p126 = scmp.eq.s32.totalorder %s23, 0
      %p127 = por %p125, %p126
      %p128 = scmp.ne.s32.totalorder %s120, %s122
      %p129 = scmp.eq.s32.totalorder %s28, 3
      %p130 = por %p128, %p129
      %p131 = scmp.ne.s32.totalorder %s122, %s123
      %p132 = scmp.eq.s32.totalorder %s28, 0
      %p133 = por %p131, %p132
      %p134 = scmp.ne.s32.totalorder %s122, %s123
      %p135 = scmp.eq.s32.totalorder %s29, 3
      %p136 = por %p134, %p135
      %p138 = scmp.ne.s32.totalorder %s123, %s137
      %p139 = scmp.eq.s32.totalorder %s29, 0
      %p140 = por %p138, %p139
      %s142 = sadd.s32 %s141, 1
      %p145 = scmp.eq.s32.totalorder %s23, 3
      %p146 = scmp.ne.s32.totalorder %s141, %s143
      %p147 = scmp.eq.s32.totalorder %s23, 0
      %p148 = por %p146, %p147
      %p149 = scmp.ne.s32.totalorder %s141, %s143
      %p150 = scmp.eq.s32.totalorder %s28, 3
      %p151 = por %p149, %p150
      %p152 = scmp.ne.s32.totalorder %s143, %s144
      %p153 = scmp.eq.s32.totalorder %s28, 0
      %p154 = por %p152, %p153
      %p155 = scmp.ne.s32.totalorder %s143, %s144
      %p156 = scmp.eq.s32.totalorder %s29, 3
      %p157 = por %p155, %p156
      %p159 = scmp.ne.s32.totalorder %s144, %s158
      %p160 = scmp.eq.s32.totalorder %s29, 0
      %p161 = por %p159, %p160
      %s163 = sadd.s32 %s162, 1
      %p166 = scmp.eq.s32.totalorder %s23, 3
      %p167 = scmp.ne.s32.totalorder %s162, %s164
      %p168 = scmp.eq.s32.totalorder %s23, 0
      %p169 = por %p167, %p168
      %p170 = scmp.ne.s32.totalorder %s162, %s164
      %p171 = scmp.eq.s32.totalorder %s28, 3
      %p172 = por %p170, %p171
      %p173 = scmp.ne.s32.totalorder %s164, %s165
      %p174 = scmp.eq.s32.totalorder %s28, 0
      %p175 = por %p173, %p174
      %p176 = scmp.ne.s32.totalorder %s164, %s165
      %p177 = scmp.eq.s32.totalorder %s29, 3
      %p178 = por %p176, %p177
      %p180 = scmp.ne.s32.totalorder %s165, %s179
      %p181 = scmp.eq.s32.totalorder %s29, 0
      %p182 = por %p180, %p181
      %s184 = sadd.s32 %s183, 1
      %p187 = scmp.eq.s32.totalorder %s23, 3
      %p188 = scmp.ne.s32.totalorder %s183, %s185
      %p189 = scmp.eq.s32.totalorder %s23, 0
      %p190 = por %p188, %p189
      %p191 = scmp.ne.s32.totalorder %s183, %s185
      %p192 = scmp.eq.s32.totalorder %s28, 3
      %p193 = por %p191, %p192
      %p194 = scmp.ne.s32.totalorder %s185, %s186
      %p195 = scmp.eq.s32.totalorder %s28, 0
      %p196 = por %p194, %p195
      %p197 = scmp.ne.s32.totalorder %s185, %s186
      %p198 = scmp.eq.s32.totalorder %s29, 3
      %p199 = por %p197, %p198
      %p201 = scmp.ne.s32.totalorder %s186, %s200
      %p202 = scmp.eq.s32.totalorder %s29, 0
      %p203 = por %p201, %p202
      %s205 = sadd.s32 %s204, 1
      %p208 = scmp.eq.s32.totalorder %s23, 3
      %p209 = scmp.ne.s32.totalorder %s204, %s206
      %p210 = scmp.eq.s32.totalorder %s23, 0
      %p211 = por %p209, %p210
      %p212 = scmp.ne.s32.totalorder %s204, %s206
      %p213 = scmp.eq.s32.totalorder %s28, 3
      %p214 = por %p212, %p213
      %p215 = scmp.ne.s32.totalorder %s206, %s207
      %p216 = scmp.eq.s32.totalorder %s28, 0
      %p217 = por %p215, %p216
      %p218 = scmp.ne.s32.totalorder %s206, %s207
      %p219 = scmp.eq.s32.totalorder %s29, 3
      %p220 = por %p218, %p219
      %p222 = scmp.ne.s32.totalorder %s207, %s221
      %p223 = scmp.eq.s32.totalorder %s29, 0
      %p224 = por %p222, %p223
      %s225 = ssub.s32 %s23, %s30
      %p226 = scmp.eq.s32.totalorder %s225, 0
      %s228 = sadd.s32 %s227, 1
      %s229 = scalar_select %p226, %s227, %s228
      %p232 = pneg %p226
      %p233 = scmp.eq.s32.totalorder %s23, 3
      %p234 = por %p232, %p233
      %p235 = scmp.ne.s32.totalorder %s227, %s230
      %p236 = scmp.eq.s32.totalorder %s23, 0
      %p237 = por %p235, %p236
      %p238 = scmp.ne.s32.totalorder %s227, %s230
      %p239 = scmp.eq.s32.totalorder %s28, 3
      %p240 = por %p238, %p239
      %p241 = scmp.ne.s32.totalorder %s230, %s231
      %p242 = scmp.eq.s32.totalorder %s28, 0
      %p243 = por %p241, %p242
      %p244 = scmp.ne.s32.totalorder %s230, %s231
      %p245 = scmp.eq.s32.totalorder %s29, 3
      %p246 = por %p244, %p245
      %p248 = scmp.ne.s32.totalorder %s231, %s247
      %p249 = scmp.eq.s32.totalorder %s29, 0
      %p250 = por %p248, %p249
      %p251 = scmp.le.s32.totalorder 1, %s23
      %p252 = scmp.lt.s32.totalorder %s23, 5
      %p253 = pnand %p251, %p252
      %p254 = pneg %p253
      // Predicated region
      $region9: #{transformer_pallas.1} parent=5 // pred_check
        _
      $region10: #{transformer_pallas.1} parent=5 // pred_check_branch
        %256 = sbr.rel (%p253) target = $region12
      $region11: #{transformer_pallas.1} parent=5 // pred_region
        %s257 = ssub.s32 %s23, 1
        // Predicated region
        $region13: #{transformer_pallas.1} parent=11 // pred_check
          %p258 = pneg %p70
        $region14: #{transformer_pallas.1} parent=11 // pred_check_branch
          %260 = sbr.rel (%p258) target = $region16
        $region15: #{transformer_pallas.1} parent=11 // pred_region
          _
        $region16: #{transformer_pallas.1} parent=11 // pred_fallthru
          _
        // Predicated region
        $region17: #{transformer_pallas.1} parent=11 // pred_check
          %p261 = pneg %p91
        $region18: #{transformer_pallas.1} parent=11 // pred_check_branch
          %263 = sbr.rel (%p261) target = $region20
        $region19: #{transformer_pallas.1} parent=11 // pred_region
          %s265 = ssub.s32 3072, 3072
          %266 = vsyncadd [#allocation7], %s265
          %s267 = sshll.u32 [#allocation6], 4
          %s268 = int_to_ptr.vmem [resolvable:$true] %s267
          %273 = dma.hbm_to_vmem [thread:$0]  %s2, 3072, %s268, [#allocation7], 192, 192, 12
        $region20: #{transformer_pallas.1} parent=11 // pred_fallthru
          _
        // Predicated region
        $region21: #{transformer_pallas.1} parent=11 // pred_check
          %p274 = pneg %p112
        $region22: #{transformer_pallas.1} parent=11 // pred_check_branch
          %276 = sbr.rel (%p274) target = $region24
        $region23: #{transformer_pallas.1} parent=11 // pred_region
          _
        $region24: #{transformer_pallas.1} parent=11 // pred_fallthru
          _
        // Predicated region
        $region25: #{transformer_pallas.1} parent=11 // pred_check
          %p277 = pneg %p133
        $region26: #{transformer_pallas.1} parent=11 // pred_check_branch
          %279 = sbr.rel (%p277) target = $region28
        $region27: #{transformer_pallas.1} parent=11 // pred_region
          _
        $region28: #{transformer_pallas.1} parent=11 // pred_fallthru
          _
        // Predicated region
        $region29: #{transformer_pallas.1} parent=11 // pred_check
          %p280 = pneg %p154
        $region30: #{transformer_pallas.1} parent=11 // pred_check_branch
          %282 = sbr.rel (%p280) target = $region32
        $region31: #{transformer_pallas.1} parent=11 // pred_region
          %s284 = ssub.s32 4096, 4096
          %285 = vsyncadd [#allocation7], %s284
          %s286 = sshll.u32 [#allocation8], 4
          %s287 = int_to_ptr.vmem [resolvable:$true] %s286
          %292 = dma.hbm_to_vmem [thread:$0]  %s5, 4096, %s287, [#allocation7], 256, 256, 16
        $region32: #{transformer_pallas.1} parent=11 // pred_fallthru
          _
        // Predicated region
        $region33: #{transformer_pallas.1} parent=11 // pred_check
          %p293 = pneg %p175
        $region34: #{transformer_pallas.1} parent=11 // pred_check_branch
          %295 = sbr.rel (%p293) target = $region36
        $region35: #{transformer_pallas.1} parent=11 // pred_region
          _
        $region36: #{transformer_pallas.1} parent=11 // pred_fallthru
          _
        // Predicated region
        $region37: #{transformer_pallas.1} parent=11 // pred_check
          %p296 = pneg %p196
        $region38: #{transformer_pallas.1} parent=11 // pred_check_branch
          %298 = sbr.rel (%p296) target = $region40
        $region39: #{transformer_pallas.1} parent=11 // pred_region
          %s300 = ssub.s32 4096, 4096
          %301 = vsyncadd [#allocation10], %s300
          %s302 = sshll.u32 [#allocation9], 4
          %s303 = int_to_ptr.vmem [resolvable:$true] %s302
          %308 = dma.hbm_to_vmem [thread:$0]  %s7, 4096, %s303, [#allocation10], 64, 64, 4
        $region40: #{transformer_pallas.1} parent=11 // pred_fallthru
          _
        // Predicated region
        $region41: #{transformer_pallas.1} parent=11 // pred_check
          %p309 = pneg %p217
        $region42: #{transformer_pallas.1} parent=11 // pred_check_branch
          %311 = sbr.rel (%p309) target = $region44
        $region43: #{transformer_pallas.1} parent=11 // pred_region
          _
        $region44: #{transformer_pallas.1} parent=11 // pred_fallthru
          _
      $region12: #{transformer_pallas.1} parent=5 // pred_fallthru
        _
      %p312 = scmp.lt.s32.totalorder %s23, 4
      // Predicated region
      $region45: #{transformer_pallas.1} parent=5 // pred_check
        %p313 = pneg %p312
      $region46: #{transformer_pallas.1} parent=5 // pred_check_branch
        %315 = sbr.rel (%p313) target = $region48
      $region47: #{transformer_pallas.1} parent=5 // pred_region
        // Predicated region
        $region49: #{transformer_pallas.1} parent=47 // pred_check
          %p316 = pneg %p43
        $region50: #{transformer_pallas.1} parent=47 // pred_check_branch
          %318 = sbr.rel (%p316) target = $region52
        $region51: #{transformer_pallas.1} parent=47 // pred_region
          %s319 = sand.u32 %s33, 1
          %s320 = scalar_lea.sflag [#allocation4], %s319
          %s321 = sand.u32 %s33, 1
          %s322 = smul.addr %s321, 64
          %s323 = scalar_lea.vmem [#allocation3], %s322
          %s324 = smul.u32 4, %s23
          %s326 = ssub.s32 1024, 1024
          %327 = vsyncadd %s320, %s326
          %s328 = smul.addr %s324, 2
          %s329 = smul.addr %s328, 128
          %s330 = scalar_lea.hbm %s0, %s329
          %s331 = sshll.u32 %s323, 4
          %s332 = int_to_ptr.vmem [resolvable:$true] %s331
          %337 = dma.hbm_to_vmem [thread:$0]  %s330, 1024, %s332, %s320, 128, 128, 8
        $region52: #{transformer_pallas.1} parent=47 // pred_fallthru
          _
      $region48: #{transformer_pallas.1} parent=5 // pred_fallthru
        _
      %p338 = scmp.le.s32.totalorder 1, %s23
      %p339 = scmp.lt.s32.totalorder %s23, 5
      %p340 = pnand %p338, %p339
      %p341 = pneg %p340
      // Predicated region
      $region53: #{transformer_pallas.1} parent=5 // pred_check
        _
      $region54: #{transformer_pallas.1} parent=5 // pred_check_branch
        %343 = sbr.rel (%p340) target = $region56
      $region55: #{transformer_pallas.1} parent=5 // pred_region
        %s344 = ssub.s32 %s23, 1
        %s345 = sand.u32 %s36, 1
        %s346 = scalar_lea.sflag [#allocation4], %s345
        %s347 = sand.u32 %s36, 1
        %s348 = smul.addr %s347, 64
        %s349 = scalar_lea.vmem [#allocation3], %s348
        // Predicated region
        $region57: #{transformer_pallas.1} parent=55 // pred_check
          %p350 = pneg %p49
        $region58: #{transformer_pallas.1} parent=55 // pred_check_branch
          %352 = sbr.rel (%p350) target = $region60
        $region59: #{transformer_pallas.1} parent=55 // pred_region
          %353 = dma.done %s346, 1024
        $region60: #{transformer_pallas.1} parent=55 // pred_fallthru
          _
        // Predicated region
        $region61: #{transformer_pallas.1} parent=55 // pred_check
          %p354 = pneg %p91
        $region62: #{transformer_pallas.1} parent=55 // pred_check_branch
          %356 = sbr.rel (%p354) target = $region64
        $region63: #{transformer_pallas.1} parent=55 // pred_region
          %357 = dma.done [#allocation7], 3072
        $region64: #{transformer_pallas.1} parent=55 // pred_fallthru
          _
        // Predicated region
        $region65: #{transformer_pallas.1} parent=55 // pred_check
          %p358 = pneg %p154
        $region66: #{transformer_pallas.1} parent=55 // pred_check_branch
          %360 = sbr.rel (%p358) target = $region68
        $region67: #{transformer_pallas.1} parent=55 // pred_region
          %361 = dma.done [#allocation7], 4096
        $region68: #{transformer_pallas.1} parent=55 // pred_fallthru
          _
        // Predicated region
        $region69: #{transformer_pallas.1} parent=55 // pred_check
          %p362 = pneg %p196
        $region70: #{transformer_pallas.1} parent=55 // pred_check_branch
          %364 = sbr.rel (%p362) target = $region72
        $region71: #{transformer_pallas.1} parent=55 // pred_region
          %365 = dma.done [#allocation10], 4096
        $region72: #{transformer_pallas.1} parent=55 // pred_fallthru
          _
        %s366 = sand.u32 %s36, 1
        %s367 = scalar_lea.sflag [#allocation4], %s366
        %s368 = sand.u32 %s36, 1
        %s369 = smul.addr %s368, 64
        %s370 = scalar_lea.vmem [#allocation3], %s369
        %p371 = pneg %p49
        %p372 = pneg %p46
        %p373 = pneg %p70
        %p374 = pneg %p67
        %p375 = pneg %p91
        %p376 = pneg %p88
        %p377 = pneg %p112
        %p378 = pneg %p109
        %p379 = pneg %p133
        %p380 = pneg %p130
        %p381 = pneg %p154
        %p382 = pneg %p151
        %p383 = pneg %p175
        %p384 = pneg %p172
        %p385 = pneg %p196
        %p386 = pneg %p193
        %p387 = pneg %p217
        %p388 = pneg %p214
        %p389 = pneg %p243
        %p390 = pneg %p240
        %s391 = sand.u32 %s230, 1
        %s392 = scalar_lea.sflag [#allocation5], %s391
        %s393 = sand.u32 %s230, 1
        %s394 = smul.addr %s393, 64
        %s395 = scalar_lea.vmem [#allocation11], %s394
        %s396 = smul.u32 4, %s28
        %s397 = smul.u32 4, %s28
        %v399 = vld [vmem:[%s349] sm:$0xff]
        %v400 = vld [vmem:[%s349 + $0x8] sm:$0xff]
        %v401 = vld [vmem:[%s349 + $0x10] sm:$0xff]
        %v402 = vld [vmem:[%s349 + $0x18] sm:$0xff]
        %v403 = vld [vmem:[%s349 + $0x20] sm:$0xff]
        %v404 = vld [vmem:[%s349 + $0x28] sm:$0xff]
        %v405 = vld [vmem:[%s349 + $0x30] sm:$0xff]
        %v406 = vld [vmem:[%s349 + $0x38] sm:$0xff]
        %v407 = vld [vmem:[%s1] sm:$0x7]
        %v408 = vld [vmem:[%s1 + $0x4] sm:$0x7]
        %v409 = vlaneseq
        %v410 = vshrl.u32 %v409, 7
        %v411 = vsub.s32 0, %v410
        %v412 = vrot.slane %v407, %v411
        %v413 = vlaneseq
        %v414 = vshrl.u32 %v413, 7
        %v415 = vsub.s32 0, %v414
        %v416 = vrot.slane %v408, %v415
        %v417 = vlaneseq
        %v418 = vshrl.u32 %v417, 7
        %v419 = vsub.s32 1, %v418
        %v420 = vrot.slane %v407, %v419
        %v421 = vlaneseq
        %v422 = vshrl.u32 %v421, 7
        %v423 = vsub.s32 1, %v422
        %v424 = vrot.slane %v408, %v423
        %v425 = vlaneseq
        %v426 = vshrl.u32 %v425, 7
        %v427 = vsub.s32 2, %v426
        %v428 = vrot.slane %v407, %v427
        %v429 = vlaneseq
        %v430 = vshrl.u32 %v429, 7
        %v431 = vsub.s32 2, %v430
        %v432 = vrot.slane %v408, %v431
        %433 = vadd.xlane.f32.xlu0 %v399
        %v434 = vpop.xlane.xlu0 %433
        %435 = vadd.xlane.f32.xlu0 %v400
        %v436 = vpop.xlane.xlu0 %435
        %437 = vadd.xlane.f32.xlu0 %v401
        %v438 = vpop.xlane.xlu0 %437
        %439 = vadd.xlane.f32.xlu0 %v402
        %v440 = vpop.xlane.xlu0 %439
        %441 = vadd.xlane.f32.xlu0 %v403
        %v442 = vpop.xlane.xlu0 %441
        %443 = vadd.xlane.f32.xlu0 %v404
        %v444 = vpop.xlane.xlu0 %443
        %445 = vadd.xlane.f32.xlu0 %v405
        %v446 = vpop.xlane.xlu0 %445
        %447 = vadd.xlane.f32.xlu0 %v406
        %v448 = vpop.xlane.xlu0 %447
        %v449 = vrcp.pop 128.0
        %v450 = vmul.f32 %v434, %v449
        %v451 = vmul.f32 %v436, %v449
        %v452 = vmul.f32 %v438, %v449
        %v453 = vmul.f32 %v440, %v449
        %v454 = vmul.f32 %v442, %v449
        %v455 = vmul.f32 %v444, %v449
        %v456 = vmul.f32 %v446, %v449
        %v457 = vmul.f32 %v448, %v449
        %v458 = vsub.f32 %v399, %v450
        %v459 = vsub.f32 %v400, %v451
        %v460 = vsub.f32 %v401, %v452
        %v461 = vsub.f32 %v402, %v453
        %v462 = vsub.f32 %v403, %v454
        %v463 = vsub.f32 %v404, %v455
        %v464 = vsub.f32 %v405, %v456
        %v465 = vsub.f32 %v406, %v457
        %v466 = vmul.f32 %v458, %v458
        %v467 = vmul.f32 %v459, %v459
        %v468 = vmul.f32 %v460, %v460
        %v469 = vmul.f32 %v461, %v461
        %v470 = vmul.f32 %v462, %v462
        %v471 = vmul.f32 %v463, %v463
        %v472 = vmul.f32 %v464, %v464
        %v473 = vmul.f32 %v465, %v465
        %474 = vadd.xlane.f32.xlu0 %v466
        %v475 = vpop.xlane.xlu0 %474
        %476 = vadd.xlane.f32.xlu0 %v467
        %v477 = vpop.xlane.xlu0 %476
        %478 = vadd.xlane.f32.xlu0 %v468
        %v479 = vpop.xlane.xlu0 %478
        %480 = vadd.xlane.f32.xlu0 %v469
        %v481 = vpop.xlane.xlu0 %480
        %482 = vadd.xlane.f32.xlu0 %v470
        %v483 = vpop.xlane.xlu0 %482
        %484 = vadd.xlane.f32.xlu0 %v471
        %v485 = vpop.xlane.xlu0 %484
        %486 = vadd.xlane.f32.xlu0 %v472
        %v487 = vpop.xlane.xlu0 %486
        %488 = vadd.xlane.f32.xlu0 %v473
        %v489 = vpop.xlane.xlu0 %488
        %v490 = vmul.f32 %v475, %v449
        %v491 = vmul.f32 %v477, %v449
        %v492 = vmul.f32 %v479, %v449
        %v493 = vmul.f32 %v481, %v449
        %v494 = vmul.f32 %v483, %v449
        %v495 = vmul.f32 %v485, %v449
        %v496 = vmul.f32 %v487, %v449
        %v497 = vmul.f32 %v489, %v449
        %v498 = vadd.f32 %v490, 1e-05
        %v499 = vadd.f32 %v491, 1e-05
        %v500 = vadd.f32 %v492, 1e-05
        %v501 = vadd.f32 %v493, 1e-05
        %v502 = vadd.f32 %v494, 1e-05
        %v503 = vadd.f32 %v495, 1e-05
        %v504 = vadd.f32 %v496, 1e-05
        %v505 = vadd.f32 %v497, 1e-05
        %v506 = vrsqrt.pop %v498
        %v507 = vrsqrt.pop %v499
        %v508 = vrsqrt.pop %v500
        %v509 = vrsqrt.pop %v501
        %v510 = vrsqrt.pop %v502
        %v511 = vrsqrt.pop %v503
        %v512 = vrsqrt.pop %v504
        %v513 = vrsqrt.pop %v505
        %v514 = vmul.f32 %v458, %v506
        %v515 = vmul.f32 %v459, %v507
        %v516 = vmul.f32 %v460, %v508
        %v517 = vmul.f32 %v461, %v509
        %v518 = vmul.f32 %v462, %v510
        %v519 = vmul.f32 %v463, %v511
        %v520 = vmul.f32 %v464, %v512
        %v521 = vmul.f32 %v465, %v513
        %v522 = vmul.f32 %v514, %v412
        %v523 = vmul.f32 %v515, %v412
        %v524 = vmul.f32 %v516, %v416
        %v525 = vmul.f32 %v517, %v416
        %v526 = vmul.f32 %v518, %v412
        %v527 = vmul.f32 %v519, %v412
        %v528 = vmul.f32 %v520, %v416
        %v529 = vmul.f32 %v521, %v416
        %v530 = vadd.f32 %v522, %v420
        %v531 = vadd.f32 %v523, %v420
        %v532 = vadd.f32 %v524, %v424
        %v533 = vadd.f32 %v525, %v424
        %v534 = vadd.f32 %v526, %v420
        %v535 = vadd.f32 %v527, %v420
        %v536 = vadd.f32 %v528, %v424
        %v537 = vadd.f32 %v529, %v424
        %v538 = vpack.c.bf16 %v531, %v530
        %v539 = vpack.c.bf16 %v533, %v532
        %v540 = vpack.c.bf16 %v535, %v534
        %v541 = vpack.c.bf16 %v537, %v536
        %v542 = vld [vmem:[#allocation6] sm:$0xff]
        %v543 = vld [vmem:[#allocation6 + $0x8] sm:$0xf]
        %v544 = vld [vmem:[#allocation6 + $0xc] sm:$0xff]
        %v545 = vld [vmem:[#allocation6 + $0x14] sm:$0xf]
        %v546 = vld [vmem:[#allocation6 + $0x18] sm:$0xff]
        %v547 = vld [vmem:[#allocation6 + $0x20] sm:$0xf]
        %v548 = vld [vmem:[#allocation6 + $0x24] sm:$0xff]
        %v549 = vld [vmem:[#allocation6 + $0x2c] sm:$0xf]
        %v550 = vld [vmem:[#allocation6 + $0x30] sm:$0xff]
        %v551 = vld [vmem:[#allocation6 + $0x38] sm:$0xf]
        %v552 = vld [vmem:[#allocation6 + $0x3c] sm:$0xff]
        %v553 = vld [vmem:[#allocation6 + $0x44] sm:$0xf]
        %v554 = vld [vmem:[#allocation6 + $0x48] sm:$0xff]
        %v555 = vld [vmem:[#allocation6 + $0x50] sm:$0xf]
        %v556 = vld [vmem:[#allocation6 + $0x54] sm:$0xff]
        %v557 = vld [vmem:[#allocation6 + $0x5c] sm:$0xf]
        %v558 = vld [vmem:[#allocation6 + $0x60] sm:$0xff]
        %v559 = vld [vmem:[#allocation6 + $0x68] sm:$0xf]
        %v560 = vld [vmem:[#allocation6 + $0x6c] sm:$0xff]
        %v561 = vld [vmem:[#allocation6 + $0x74] sm:$0xf]
        %v562 = vld [vmem:[#allocation6 + $0x78] sm:$0xff]
        %v563 = vld [vmem:[#allocation6 + $0x80] sm:$0xf]
        %v564 = vld [vmem:[#allocation6 + $0x84] sm:$0xff]
        %v565 = vld [vmem:[#allocation6 + $0x8c] sm:$0xf]
        %v566 = vld [vmem:[#allocation6 + $0x90] sm:$0xff]
        %v567 = vld [vmem:[#allocation6 + $0x98] sm:$0xf]
        %v568 = vld [vmem:[#allocation6 + $0x9c] sm:$0xff]
        %v569 = vld [vmem:[#allocation6 + $0xa4] sm:$0xf]
        %v570 = vld [vmem:[#allocation6 + $0xa8] sm:$0xff]
        %v571 = vld [vmem:[#allocation6 + $0xb0] sm:$0xf]
        %v572 = vld [vmem:[#allocation6 + $0xb4] sm:$0xff]
        %v573 = vld [vmem:[#allocation6 + $0xbc] sm:$0xf]
        %v606 = vunpack.c.l.b16 %v542
        %v607 = vunpack.c.h.b16 %v542
        %v608 = vunpack.c.l.b16 %v543
        %v609 = vunpack.c.l.b16 %v544
        %v610 = vunpack.c.h.b16 %v544
        %v611 = vunpack.c.l.b16 %v545
        %v612 = vunpack.c.l.b16 %v546
        %v613 = vunpack.c.h.b16 %v546
        %v614 = vunpack.c.l.b16 %v547
        %v615 = vunpack.c.l.b16 %v548
        %v616 = vunpack.c.h.b16 %v548
        %v617 = vunpack.c.l.b16 %v549
        %v618 = vunpack.c.l.b16 %v550
        %v619 = vunpack.c.h.b16 %v550
        %v620 = vunpack.c.l.b16 %v551
        %v621 = vunpack.c.l.b16 %v552
        %v622 = vunpack.c.h.b16 %v552
        %v623 = vunpack.c.l.b16 %v553
        %v624 = vunpack.c.l.b16 %v554
        %v625 = vunpack.c.h.b16 %v554
        %v626 = vunpack.c.l.b16 %v555
        %v627 = vunpack.c.l.b16 %v556
        %v628 = vunpack.c.h.b16 %v556
        %v629 = vunpack.c.l.b16 %v557
        %v630 = vunpack.c.l.b16 %v558
        %v631 = vunpack.c.h.b16 %v558
        %v632 = vunpack.c.l.b16 %v559
        %v633 = vunpack.c.l.b16 %v560
        %v634 = vunpack.c.h.b16 %v560
        %v635 = vunpack.c.l.b16 %v561
        %v636 = vunpack.c.l.b16 %v562
        %v637 = vunpack.c.h.b16 %v562
        %v638 = vunpack.c.l.b16 %v563
        %v639 = vunpack.c.l.b16 %v564
        %v640 = vunpack.c.h.b16 %v564
        %v641 = vunpack.c.l.b16 %v565
        %v642 = vunpack.c.l.b16 %v566
        %v643 = vunpack.c.h.b16 %v566
        %v644 = vunpack.c.l.b16 %v567
        %v645 = vunpack.c.l.b16 %v568
        %v646 = vunpack.c.h.b16 %v568
        %v647 = vunpack.c.l.b16 %v569
        %v648 = vunpack.c.l.b16 %v570
        %v649 = vunpack.c.h.b16 %v570
        %v650 = vunpack.c.l.b16 %v571
        %v651 = vunpack.c.l.b16 %v572
        %v652 = vunpack.c.h.b16 %v572
        %v653 = vunpack.c.l.b16 %v573
        %v654 = vpack.c.b16 %v609, %v606
        %v655 = vpack.c.b16 %v610, %v607
        %v656 = vpack.c.b16 %v611, %v608
        %v657 = vpack.c.b16 %v615, %v612
        %v658 = vpack.c.b16 %v616, %v613
        %v659 = vpack.c.b16 %v617, %v614
        %v660 = vpack.c.b16 %v621, %v618
        %v661 = vpack.c.b16 %v622, %v619
        %v662 = vpack.c.b16 %v623, %v620
        %v663 = vpack.c.b16 %v627, %v624
        %v664 = vpack.c.b16 %v628, %v625
        %v665 = vpack.c.b16 %v629, %v626
        %v666 = vpack.c.b16 %v633, %v630
        %v667 = vpack.c.b16 %v634, %v631
        %v668 = vpack.c.b16 %v635, %v632
        %v669 = vpack.c.b16 %v639, %v636
        %v670 = vpack.c.b16 %v640, %v637
        %v671 = vpack.c.b16 %v641, %v638
        %v672 = vpack.c.b16 %v645, %v642
        %v673 = vpack.c.b16 %v646, %v643
        %v674 = vpack.c.b16 %v647, %v644
        %v675 = vpack.c.b16 %v651, %v648
        %v676 = vpack.c.b16 %v652, %v649
        %v677 = vpack.c.b16 %v653, %v650
        %702 = vmatprep.subr.bf16.mxu0 %v655
        %703 = vmatpush1.bf16.msra.mxu0 %v654
        %704 = vmatprep.subr.bf16.mxu0 %v658
        %705 = vmatpush1.bf16.msra.mxu0 %v657
        %706 = vmatprep.subr.bf16.mxu0 %v661
        %707 = vmatpush1.bf16.msra.mxu0 %v660
        %708 = vmatprep.subr.bf16.mxu0 %v664
        %709 = vmatpush1.bf16.msra.mxu0 %v663
        %710 = vmatprep.subr.bf16.mxu0 %v667
        %711 = vmatpush1.bf16.msra.mxu0 %v666
        %712 = vmatprep.subr.bf16.mxu0 %v670
        %713 = vmatpush1.bf16.msra.mxu0 %v669
        %714 = vmatprep.subr.bf16.mxu0 %v673
        %715 = vmatpush1.bf16.msra.mxu0 %v672
        %716 = vmatprep.subr.bf16.mxu0 %v676
        %717 = vmatpush1.bf16.msra.mxu0 %v675
        %718 = vmatprep.subr.bf16.mxu0 0
        %719 = vmatpush1.bf16.msra.mxu0 0
        %720 = vmatprep.subr.bf16.mxu0 0
        %721 = vmatpush1.bf16.msra.mxu0 0
        %722 = vmatprep.subr.bf16.mxu0 0
        %723 = vmatpush1.bf16.msra.mxu0 0
        %724 = vmatprep.subr.bf16.mxu0 0
        %725 = vmatpush1.bf16.msra.mxu0 0
        %726 = vmatprep.subr.bf16.mxu0 0
        %727 = vmatpush1.bf16.msra.mxu0 0
        %728 = vmatprep.subr.bf16.mxu0 0
        %729 = vmatpush1.bf16.msra.mxu0 0
        %730 = vmatprep.subr.bf16.mxu0 0
        %731 = vmatpush1.bf16.msra.mxu0 0
        %732 = vmatprep.subr.bf16.mxu0 0
        %733 = vmatpush1.bf16.msra.mxu0 0
        %734 = vmatprep.mubr.bf16.mxu0 0
        %735 = vmatmul.mubr.bf16.gmra.mrb[0].mxu0 %v538
        %v736 = vpop.f32.mrb[0].mxu0
        %v737 = vadd.f32 0.0, %v736
        %v738 = vpop.f32.mrb[0].mxu0
        %v739 = vadd.f32 0.0, %v738
        %v740 = vpop.f32.mrb[0].mxu0
        %v741 = vadd.f32 0.0, %v740
        %v742 = vpop.f32.mrb[0].mxu0
        %v743 = vadd.f32 0.0, %v742
        %744 = vmatprep.mubr.bf16.mxu0 0
        %745 = vmatmul.mubr.bf16.gmra.mrb[0].mxu0 %v539
        %v746 = vpop.f32.mrb[0].mxu0
        %v747 = vadd.f32 0.0, %v746
        %v748 = vpop.f32.mrb[0].mxu0
        %v749 = vadd.f32 0.0, %v748
        %v750 = vpop.f32.mrb[0].mxu0
        %v751 = vadd.f32 0.0, %v750
        %v752 = vpop.f32.mrb[0].mxu0
        %v753 = vadd.f32 0.0, %v752
        %754 = vmatprep.mubr.bf16.mxu0 0
        %755 = vmatmul.mubr.bf16.gmra.mrb[0].mxu0 %v540
        %v756 = vpop.f32.mrb[0].mxu0
        %v757 = vadd.f32 0.0, %v756
        %v758 = vpop.f32.mrb[0].mxu0
        %v759 = vadd.f32 0.0, %v758
        %v760 = vpop.f32.mrb[0].mxu0
        %v761 = vadd.f32 0.0, %v760
        %v762 = vpop.f32.mrb[0].mxu0
        %v763 = vadd.f32 0.0, %v762
        %764 = vmatprep.mubr.bf16.mxu0 0
        %765 = vmatmul.mubr.bf16.gmra.mrb[0].mxu0 %v541
        %v766 = vpop.f32.mrb[0].mxu0
        %v767 = vadd.f32 0.0, %v766
        %v768 = vpop.f32.mrb[0].mxu0
        %v769 = vadd.f32 0.0, %v768
        %v770 = vpop.f32.mrb[0].mxu0
        %v771 = vadd.f32 0.0, %v770
        %v772 = vpop.f32.mrb[0].mxu0
        %v773 = vadd.f32 0.0, %v772
        %774 = vdwg.mxu0
        %775 = vmatprep.subr.bf16.mxu0 0
        %776 = vmatpush1.bf16.msra.mxu0 %v656
        %777 = vmatprep.subr.bf16.mxu0 0
        %778 = vmatpush1.bf16.msra.mxu0 %v659
        %779 = vmatprep.subr.bf16.mxu0 0
        %780 = vmatpush1.bf16.msra.mxu0 %v662
        %781 = vmatprep.subr.bf16.mxu0 0
        %782 = vmatpush1.bf16.msra.mxu0 %v665
        %783 = vmatprep.subr.bf16.mxu0 0
        %784 = vmatpush1.bf16.msra.mxu0 %v668
        %785 = vmatprep.subr.bf16.mxu0 0
        %786 = vmatpush1.bf16.msra.mxu0 %v671
        %787 = vmatprep.subr.bf16.mxu0 0
        %788 = vmatpush1.bf16.msra.mxu0 %v674
        %789 = vmatprep.subr.bf16.mxu0 0
        %790 = vmatpush1.bf16.msra.mxu0 %v677
        %791 = vmatprep.subr.bf16.mxu0 0
        %792 = vmatpush1.bf16.msra.mxu0 0
        %793 = vmatprep.subr.bf16.mxu0 0
        %794 = vmatpush1.bf16.msra.mxu0 0
        %795 = vmatprep.subr.bf16.mxu0 0
        %796 = vmatpush1.bf16.msra.mxu0 0
        %797 = vmatprep.subr.bf16.mxu0 0
        %798 = vmatpush1.bf16.msra.mxu0 0
        %799 = vmatprep.subr.bf16.mxu0 0
        %800 = vmatpush1.bf16.msra.mxu0 0
        %801 = vmatprep.subr.bf16.mxu0 0
        %802 = vmatpush1.bf16.msra.mxu0 0
        %803 = vmatprep.subr.bf16.mxu0 0
        %804 = vmatpush1.bf16.msra.mxu0 0
        %805 = vmatprep.subr.bf16.mxu0 0
        %806 = vmatpush1.bf16.msra.mxu0 0
        %807 = vmatprep.mubr.bf16.mxu0 0
        %808 = vmatmul.mubr.bf16.gmra.mrb[0].mxu0 %v538
        %v809 = vpop.f32.mrb[0].mxu0
        %v810 = vadd.f32 0.0, %v809
        %v811 = vpop.f32.mrb[0].mxu0
        %v812 = vpop.f32.mrb[0].mxu0
        %v813 = vadd.f32 0.0, %v812
        %v814 = vpop.f32.mrb[0].mxu0
        %815 = vmatprep.mubr.bf16.mxu0 0
        %816 = vmatmul.mubr.bf16.gmra.mrb[0].mxu0 %v539
        %v817 = vpop.f32.mrb[0].mxu0
        %v818 = vadd.f32 0.0, %v817
        %v819 = vpop.f32.mrb[0].mxu0
        %v820 = vpop.f32.mrb[0].mxu0
        %v821 = vadd.f32 0.0, %v820
        %v822 = vpop.f32.mrb[0].mxu0
        %823 = vmatprep.mubr.bf16.mxu0 0
        %824 = vmatmul.mubr.bf16.gmra.mrb[0].mxu0 %v540
        %v825 = vpop.f32.mrb[0].mxu0
        %v826 = vadd.f32 0.0, %v825
        %v827 = vpop.f32.mrb[0].mxu0
        %v828 = vpop.f32.mrb[0].mxu0
        %v829 = vadd.f32 0.0, %v828
        %v830 = vpop.f32.mrb[0].mxu0
        %831 = vmatprep.mubr.bf16.mxu0 0
        %832 = vmatmul.mubr.bf16.gmra.mrb[0].mxu0 %v541
        %v833 = vpop.f32.mrb[0].mxu0
        %v834 = vadd.f32 0.0, %v833
        %v835 = vpop.f32.mrb[0].mxu0
        %v836 = vpop.f32.mrb[0].mxu0
        %v837 = vadd.f32 0.0, %v836
        %v838 = vpop.f32.mrb[0].mxu0
        %839 = vdwg.mxu0
        %v840 = vmul.f32 %v737, 0.17677669
        %v841 = vmul.f32 %v741, 0.17677669
        %v842 = vmul.f32 %v747, 0.17677669
        %v843 = vmul.f32 %v751, 0.17677669
        %v844 = vmul.f32 %v757, 0.17677669
        %v845 = vmul.f32 %v761, 0.17677669
        %v846 = vmul.f32 %v767, 0.17677669
        %v847 = vmul.f32 %v771, 0.17677669
        %v848 = vpack.c.bf16 %v841, %v840
        %v849 = vpack.c.bf16 %v843, %v842
        %v850 = vpack.c.bf16 %v845, %v844
        %v851 = vpack.c.bf16 %v847, %v846
        %v852 = vpack.c.bf16 %v743, %v739
        %v853 = vpack.c.bf16 %v753, %v749
        %v854 = vpack.c.bf16 %v763, %v759
        %v855 = vpack.c.bf16 %v773, %v769
        %v856 = vpack.c.bf16 %v813, %v810
        %v857 = vpack.c.bf16 %v821, %v818
        %v858 = vpack.c.bf16 %v829, %v826
        %v859 = vpack.c.bf16 %v837, %v834
        %864 = vrot.lane.b32.xlu0 %v848, 96
        %v865 = vpop.permute.xlu0 %864
        %866 = vrot.lane.b32.xlu0 %v849, 96
        %v867 = vpop.permute.xlu0 %866
        %868 = vrot.lane.b32.xlu0 %v850, 96
        %v869 = vpop.permute.xlu0 %868
        %870 = vrot.lane.b32.xlu0 %v851, 96
        %v871 = vpop.permute.xlu0 %870
        %872 = vrot.lane.b32.xlu0 %v848, 64
        %v873 = vpop.permute.xlu0 %872
        %874 = vrot.lane.b32.xlu0 %v849, 64
        %v875 = vpop.permute.xlu0 %874
        %876 = vrot.lane.b32.xlu0 %v850, 64
        %v877 = vpop.permute.xlu0 %876
        %878 = vrot.lane.b32.xlu0 %v851, 64
        %v879 = vpop.permute.xlu0 %878
        %880 = vrot.lane.b32.xlu0 %v848, 32
        %v881 = vpop.permute.xlu0 %880
        %882 = vrot.lane.b32.xlu0 %v849, 32
        %v883 = vpop.permute.xlu0 %882
        %884 = vrot.lane.b32.xlu0 %v850, 32
        %v885 = vpop.permute.xlu0 %884
        %886 = vrot.lane.b32.xlu0 %v851, 32
        %v887 = vpop.permute.xlu0 %886
        %892 = vrot.lane.b32.xlu0 %v852, 96
        %v893 = vpop.permute.xlu0 %892
        %894 = vrot.lane.b32.xlu0 %v853, 96
        %v895 = vpop.permute.xlu0 %894
        %896 = vrot.lane.b32.xlu0 %v854, 96
        %v897 = vpop.permute.xlu0 %896
        %898 = vrot.lane.b32.xlu0 %v855, 96
        %v899 = vpop.permute.xlu0 %898
        %900 = vrot.lane.b32.xlu0 %v852, 64
        %v901 = vpop.permute.xlu0 %900
        %902 = vrot.lane.b32.xlu0 %v853, 64
        %v903 = vpop.permute.xlu0 %902
        %904 = vrot.lane.b32.xlu0 %v854, 64
        %v905 = vpop.permute.xlu0 %904
        %906 = vrot.lane.b32.xlu0 %v855, 64
        %v907 = vpop.permute.xlu0 %906
        %908 = vrot.lane.b32.xlu0 %v852, 32
        %v909 = vpop.permute.xlu0 %908
        %910 = vrot.lane.b32.xlu0 %v853, 32
        %v911 = vpop.permute.xlu0 %910
        %912 = vrot.lane.b32.xlu0 %v854, 32
        %v913 = vpop.permute.xlu0 %912
        %914 = vrot.lane.b32.xlu0 %v855, 32
        %v915 = vpop.permute.xlu0 %914
        %920 = vrot.lane.b32.xlu0 %v856, 96
        %v921 = vpop.permute.xlu0 %920
        %922 = vrot.lane.b32.xlu0 %v857, 96
        %v923 = vpop.permute.xlu0 %922
        %924 = vrot.lane.b32.xlu0 %v858, 96
        %v925 = vpop.permute.xlu0 %924
        %926 = vrot.lane.b32.xlu0 %v859, 96
        %v927 = vpop.permute.xlu0 %926
        %932 = vrot.lane.b32.xlu0 %v856, 64
        %v933 = vpop.permute.xlu0 %932
        %934 = vrot.lane.b32.xlu0 %v857, 64
        %v935 = vpop.permute.xlu0 %934
        %936 = vrot.lane.b32.xlu0 %v858, 64
        %v937 = vpop.permute.xlu0 %936
        %938 = vrot.lane.b32.xlu0 %v859, 64
        %v939 = vpop.permute.xlu0 %938
        %944 = vrot.lane.b32.xlu0 %v856, 32
        %v945 = vpop.permute.xlu0 %944
        %946 = vrot.lane.b32.xlu0 %v857, 32
        %v947 = vpop.permute.xlu0 %946
        %948 = vrot.lane.b32.xlu0 %v858, 32
        %v949 = vpop.permute.xlu0 %948
        %950 = vrot.lane.b32.xlu0 %v859, 32
        %v951 = vpop.permute.xlu0 %950
        %vm956 = vcmask 261120
        %v958 = vsel %vm956, %v848, 0
        %v961 = vsel %vm956, %v852, 0
        %963 = vmatprep.subr.bf16.mxu0 0
        %964 = vmatpush1.bf16.xpose.msra.mxu0 %v961
        %965 = vmatprep.subr.bf16.mxu0 0
        %966 = vmatpush1.bf16.xpose.msra.mxu0 0
        %967 = vmatprep.subr.bf16.mxu0 0
        %968 = vmatpush1.bf16.xpose.msra.mxu0 0
        %969 = vmatprep.subr.bf16.mxu0 0
        %970 = vmatpush1.bf16.xpose.msra.mxu0 0
        %971 = vmatprep.subr.bf16.mxu0 0
        %972 = vmatpush1.bf16.xpose.msra.mxu0 0
        %973 = vmatprep.subr.bf16.mxu0 0
        %974 = vmatpush1.bf16.xpose.msra.mxu0 0
        %975 = vmatprep.subr.bf16.mxu0 0
        %976 = vmatpush1.bf16.xpose.msra.mxu0 0
        %977 = vmatprep.subr.bf16.mxu0 0
        %978 = vmatpush1.bf16.xpose.msra.mxu0 0
        %979 = vmatprep.subr.bf16.mxu0 0
        %980 = vmatpush1.bf16.xpose.msra.mxu0 0
        %981 = vmatprep.subr.bf16.mxu0 0
        %982 = vmatpush1.bf16.xpose.msra.mxu0 0
        %983 = vmatprep.subr.bf16.mxu0 0
        %984 = vmatpush1.bf16.xpose.msra.mxu0 0
        %985 = vmatprep.subr.bf16.mxu0 0
        %986 = vmatpush1.bf16.xpose.msra.mxu0 0
        %987 = vmatprep.subr.bf16.mxu0 0
        %988 = vmatpush1.bf16.xpose.msra.mxu0 0
        %989 = vmatprep.subr.bf16.mxu0 0
        %990 = vmatpush1.bf16.xpose.msra.mxu0 0
        %991 = vmatprep.subr.bf16.mxu0 0
        %992 = vmatpush1.bf16.xpose.msra.mxu0 0
        %993 = vmatprep.subr.bf16.mxu0 0
        %994 = vmatpush1.bf16.xpose.msra.mxu0 0
        %995 = vmatprep.mubr.bf16.mxu0 0
        %996 = vmatmul.mubr.bf16.gmra.mrb[0].mxu0 %v958
        %v997 = vpop.f32.mrb[0].mxu0
        %v998 = vadd.f32 0.0, %v997
        %v999 = vpop.f32.mrb[0].mxu0
        %v1000 = vpop.f32.mrb[0].mxu0
        %v1001 = vadd.f32 0.0, %v1000
        %v1002 = vpop.f32.mrb[0].mxu0
        %1003 = vdwg.mxu0
        %v1005 = vsel %vm956, %v849, 0
        %v1008 = vsel %vm956, %v853, 0
        %1010 = vmatprep.subr.bf16.mxu0 0
        %1011 = vmatpush1.bf16.xpose.msra.mxu0 %v1008
        %1012 = vmatprep.subr.bf16.mxu0 0
        %1013 = vmatpush1.bf16.xpose.msra.mxu0 0
        %1014 = vmatprep.subr.bf16.mxu0 0
        %1015 = vmatpush1.bf16.xpose.msra.mxu0 0
        %1016 = vmatprep.subr.bf16.mxu0 0
        %1017 = vmatpush1.bf16.xpose.msra.mxu0 0
        %1018 = vmatprep.subr.bf16.mxu0 0
        %1019 = vmatpush1.bf16.xpose.msra.mxu0 0
        %1020 = vmatprep.subr.bf16.mxu0 0
        %1021 = vmatpush1.bf16.xpose.msra.mxu0 0
        %1022 = vmatprep.subr.bf16.mxu0 0
        %1023 = vmatpush1.bf16.xpose.msra.mxu0 0
        %1024 = vmatprep.subr.bf16.mxu0 0
        %1025 = vmatpush1.bf16.xpose.msra.mxu0 0
        %1026 = vmatprep.subr.bf16.mxu0 0
        %1027 = vmatpush1.bf16.xpose.msra.mxu0 0
        %1028 = vmatprep.subr.bf16.mxu0 0
        %1029 = vmatpush1.bf16.xpose.msra.mxu0 0
        %1030 = vmatprep.subr.bf16.mxu0 0
        %1031 = vmatpush1.bf16.xpose.msra.mxu0 0
        %1032 = vmatprep.subr.bf16.mxu0 0
        %1033 = vmatpush1.bf16.xpose.msra.mxu0 0
        %1034 = vmatprep.subr.bf16.mxu0 0
        %1035 = vmatpush1.bf16.xpose.msra.mxu0 0
        %1036 = vmatprep.subr.bf16.mxu0 0
        %1037 = vmatpush1.bf16.xpose.msra.mxu0 0
        %1038 = vmatprep.subr.bf16.mxu0 0
        %1039 = vmatpush1.bf16.xpose.msra.mxu0 0
        %1040 = vmatprep.subr.bf16.mxu0 0
        %1041 = vmatpush1.bf16.xpose.msra.mxu0 0
        %1042 = vmatprep.mubr.bf16.mxu0 0
        %1043 = vmatmul.mubr.bf16.gmra.mrb[0].mxu0 %v1005
        %v1044 = vpop.f32.mrb[0].mxu0
        %v1045 = vadd.f32 0.0, %v1044
        %v1046 = vpop.f32.mrb[0].mxu0
        %v1047 = vpop.f32.mrb[0].mxu0
        %v1048 = vadd.f32 0.0, %v1047
        %v1049 = vpop.f32.mrb[0].mxu0
        %1050 = vdwg.mxu0
        %v1052 = vsel %vm956, %v850, 0
        %v1055 = vsel %vm956, %v854, 0
        %1057 = vmatprep.subr.bf16.mxu0 0
        %1058 = vmatpush1.bf16.xpose.msra.mxu0 %v1055
        %1059 = vmatprep.subr.bf16.mxu0 0
        %1060 = vmatpush1.bf16.xpose.msra.mxu0 0
        %1061 = vmatprep.subr.bf16.mxu0 0
        %1062 = vmatpush1.bf16.xpose.msra.mxu0 0
        %1063 = vmatprep.subr.bf16.mxu0 0
        %1064 = vmatpush1.bf16.xpose.msra.mxu0 0
        %1065 = vmatprep.subr.bf16.mxu0 0
        %1066 = vmatpush1.bf16.xpose.msra.mxu0 0
        %1067 = vmatprep.subr.bf16.mxu0 0
        %1068 = vmatpush1.bf16.xpose.msra.mxu0 0
        %1069 = vmatprep.subr.bf16.mxu0 0
        %1070 = vmatpush1.bf16.xpose.msra.mxu0 0
        %1071 = vmatprep.subr.bf16.mxu0 0
        %1072 = vmatpush1.bf16.xpose.msra.mxu0 0
        %1073 = vmatprep.subr.bf16.mxu0 0
        %1074 = vmatpush1.bf16.xpose.msra.mxu0 0
        %1075 = vmatprep.subr.bf16.mxu0 0
        %1076 = vmatpush1.bf16.xpose.msra.mxu0 0
        %1077 = vmatprep.subr.bf16.mxu0 0
        %1078 = vmatpush1.bf16.xpose.msra.mxu0 0
        %1079 = vmatprep.subr.bf16.mxu0 0
        %1080 = vmatpush1.bf16.xpose.msra.mxu0 0
        %1081 = vmatprep.subr.bf16.mxu0 0
        %1082 = vmatpush1.bf16.xpose.msra.mxu0 0
        %1083 = vmatprep.subr.bf16.mxu0 0
        %1084 = vmatpush1.bf16.xpose.msra.mxu0 0
        %1085 = vmatprep.subr.bf16.mxu0 0
        %1086 = vmatpush1.bf16.xpose.msra.mxu0 0
        %1087 = vmatprep.subr.bf16.mxu0 0
        %1088 = vmatpush1.bf16.xpose.msra.mxu0 0
        %1089 = vmatprep.mubr.bf16.mxu0 0
        %1090 = vmatmul.mubr.bf16.gmra.mrb[0].mxu0 %v1052
        %v1091 = vpop.f32.mrb[0].mxu0
        %v1092 = vadd.f32 0.0, %v1091
        %v1093 = vpop.f32.mrb[0].mxu0
        %v1094 = vpop.f32.mrb[0].mxu0
        %v1095 = vadd.f32 0.0, %v1094
        %v1096 = vpop.f32.mrb[0].mxu0
        %1097 = vdwg.mxu0
        %v1099 = vsel %vm956, %v851, 0
        %v1102 = vsel %vm956, %v855, 0
        %1104 = vmatprep.subr.bf16.mxu0 0
        %1105 = vmatpush1.bf16.xpose.msra.mxu0 %v1102
        %1106 = vmatprep.subr.bf16.mxu0 0
        %1107 = vmatpush1.bf16.xpose.msra.mxu0 0
        %1108 = vmatprep.subr.bf16.mxu0 0
        %1109 = vmatpush1.bf16.xpose.msra.mxu0 0
        %1110 = vmatprep.subr.bf16.mxu0 0
        %1111 = vmatpush1.bf16.xpose.msra.mxu0 0
        %1112 = vmatprep.subr.bf16.mxu0 0
        %1113 = vmatpush1.bf16.xpose.msra.mxu0 0
        %1114 = vmatprep.subr.bf16.mxu0 0
        %1115 = vmatpush1.bf16.xpose.msra.mxu0 0
        %1116 = vmatprep.subr.bf16.mxu0 0
        %1117 = vmatpush1.bf16.xpose.msra.mxu0 0
        %1118 = vmatprep.subr.bf16.mxu0 0
        %1119 = vmatpush1.bf16.xpose.msra.mxu0 0
        %1120 = vmatprep.subr.bf16.mxu0 0
        %1121 = vmatpush1.bf16.xpose.msra.mxu0 0
        %1122 = vmatprep.subr.bf16.mxu0 0
        %1123 = vmatpush1.bf16.xpose.msra.mxu0 0
        %1124 = vmatprep.subr.bf16.mxu0 0
        %1125 = vmatpush1.bf16.xpose.msra.mxu0 0
        %1126 = vmatprep.subr.bf16.mxu0 0
        %1127 = vmatpush1.bf16.xpose.msra.mxu0 0
        %1128 = vmatprep.subr.bf16.mxu0 0
        %1129 = vmatpush1.bf16.xpose.msra.mxu0 0
        %1130 = vmatprep.subr.bf16.mxu0 0
        %1131 = vmatpush1.bf16.xpose.msra.mxu0 0
        %1132 = vmatprep.subr.bf16.mxu0 0
        %1133 = vmatpush1.bf16.xpose.msra.mxu0 0
        %1134 = vmatprep.subr.bf16.mxu0 0
        %1135 = vmatpush1.bf16.xpose.msra.mxu0 0
        %1136 = vmatprep.mubr.bf16.mxu0 0
        %1137 = vmatmul.mubr.bf16.gmra.mrb[0].mxu0 %v1099
        %v1138 = vpop.f32.mrb[0].mxu0
        %v1139 = vadd.f32 0.0, %v1138
        %v1140 = vpop.f32.mrb[0].mxu0
        %v1141 = vpop.f32.mrb[0].mxu0
        %v1142 = vadd.f32 0.0, %v1141
        %v1143 = vpop.f32.mrb[0].mxu0
        %1144 = vdwg.mxu0
        %v1146 = vsel %vm956, %v865, 0
        %v1149 = vsel %vm956, %v893, 0
        %1151 = vmatprep.subr.bf16.mxu0 0
        %1152 = vmatpush1.bf16.xpose.msra.mxu0 %v1149
        %1153 = vmatprep.subr.bf16.mxu0 0
        %1154 = vmatpush1.bf16.xpose.msra.mxu0 0
        %1155 = vmatprep.subr.bf16.mxu0 0
        %1156 = vmatpush1.bf16.xpose.msra.mxu0 0
        %1157 = vmatprep.subr.bf16.mxu0 0
        %1158 = vmatpush1.bf16.xpose.msra.mxu0 0
        %1159 = vmatprep.subr.bf16.mxu0 0
        %1160 = vmatpush1.bf16.xpose.msra.mxu0 0
        %1161 = vmatprep.subr.bf16.mxu0 0
        %1162 = vmatpush1.bf16.xpose.msra.mxu0 0
        %1163 = vmatprep.subr.bf16.mxu0 0
        %1164 = vmatpush1.bf16.xpose.msra.mxu0 0
        %1165 = vmatprep.subr.bf16.mxu0 0
        %1166 = vmatpush1.bf16.xpose.msra.mxu0 0
        %1167 = vmatprep.subr.bf16.mxu0 0
        %1168 = vmatpush1.bf16.xpose.msra.mxu0 0
        %1169 = vmatprep.subr.bf16.mxu0 0
        %1170 = vmatpush1.bf16.xpose.msra.mxu0 0
        %1171 = vmatprep.subr.bf16.mxu0 0
        %1172 = vmatpush1.bf16.xpose.msra.mxu0 0
        %1173 = vmatprep.subr.bf16.mxu0 0
        %1174 = vmatpush1.bf16.xpose.msra.mxu0 0
        %1175 = vmatprep.subr.bf16.mxu0 0
        %1176 = vmatpush1.bf16.xpose.msra.mxu0 0
        %1177 = vmatprep.subr.bf16.mxu0 0
        %1178 = vmatpush1.bf16.xpose.msra.mxu0 0
        %1179 = vmatprep.subr.bf16.mxu0 0
        %1180 = vmatpush1.bf16.xpose.msra.mxu0 0
        %1181 = vmatprep.subr.bf16.mxu0 0
        %1182 = vmatpush1.bf16.xpose.msra.mxu0 0
        %1183 = vmatprep.mubr.bf16.mxu0 0
        %1184 = vmatmul.mubr.bf16.gmra.mrb[0].mxu0 %v1146
        %v1185 = vpop.f32.mrb[0].mxu0
        %v1186 = vadd.f32 0.0, %v1185
        %v1187 = vpop.f32.mrb[0].mxu0
        %v1188 = vpop.f32.mrb[0].mxu0
        %v1189 = vadd.f32 0.0, %v1188
        %v1190 = vpop.f32.mrb[0].mxu0
        %1191 = vdwg.mxu0
        %v1193 = vsel %vm956, %v867, 0
        %v1196 = vsel %vm956, %v895, 0
        %1198 = vmatprep.subr.bf16.mxu0 0
        %1199 = vmatpush1.bf16.xpose.msra.mxu0 %v1196
        %1200 = vmatprep.subr.bf16.mxu0 0
        %1201 = vmatpush1.bf16.xpose.msra.mxu0 0
        %1202 = vmatprep.subr.bf16.mxu0 0
        %1203 = vmatpush1.bf16.xpose.msra.mxu0 0
        %1204 = vmatprep.subr.bf16.mxu0 0
        %1205 = vmatpush1.bf16.xpose.msra.mxu0 0
        %1206 = vmatprep.subr.bf16.mxu0 0
        %1207 = vmatpush1.bf16.xpose.msra.mxu0 0
        %1208 = vmatprep.subr.bf16.mxu0 0
        %1209 = vmatpush1.bf16.xpose.msra.mxu0 0
        %1210 = vmatprep.subr.bf16.mxu0 0
        %1211 = vmatpush1.bf16.xpose.msra.mxu0 0
        %1212 = vmatprep.subr.bf16.mxu0 0
        %1213 = vmatpush1.bf16.xpose.msra.mxu0 0
        %1214 = vmatprep.subr.bf16.mxu0 0
        %1215 = vmatpush1.bf16.xpose.msra.mxu0 0
        %1216 = vmatprep.subr.bf16.mxu0 0
        %1217 = vmatpush1.bf16.xpose.msra.mxu0 0
        %1218 = vmatprep.subr.bf16.mxu0 0
        %1219 = vmatpush1.bf16.xpose.msra.mxu0 0
        %1220 = vmatprep.subr.bf16.mxu0 0
        %1221 = vmatpush1.bf16.xpose.msra.mxu0 0
        %1222 = vmatprep.subr.bf16.mxu0 0
        %1223 = vmatpush1.bf16.xpose.msra.mxu0 0
        %1224 = vmatprep.subr.bf16.mxu0 0
        %1225 = vmatpush1.bf16.xpose.msra.mxu0 0
        %1226 = vmatprep.subr.bf16.mxu0 0
        %1227 = vmatpush1.bf16.xpose.msra.mxu0 0
        %1228 = vmatprep.subr.bf16.mxu0 0
        %1229 = vmatpush1.bf16.xpose.msra.mxu0 0
        %1230 = vmatprep.mubr.bf16.mxu0 0
        %1231 = vmatmul.mubr.bf16.gmra.mrb[0].mxu0 %v1193
        %v1232 = vpop.f32.mrb[0].mxu0
        %v1233 = vadd.f32 0.0, %v1232
        %v1234 = vpop.f32.mrb[0].mxu0
        %v1235 = vpop.f32.mrb[0].mxu0
        %v1236 = vadd.f32 0.0, %v1235
        %v1237 = vpop.f32.mrb[0].mxu0
        %1238 = vdwg.mxu0
        %v1240 = vsel %vm956, %v869, 0
        %v1243 = vsel %vm956, %v897, 0
        %1245 = vmatprep.subr.bf16.mxu0 0
        %1246 = vmatpush1.bf16.xpose.msra.mxu0 %v1243
        %1247 = vmatprep.subr.bf16.mxu0 0
        %1248 = vmatpush1.bf16.xpose.msra.mxu0 0
        %1249 = vmatprep.subr.bf16.mxu0 0
        %1250 = vmatpush1.bf16.xpose.msra.mxu0 0
        %1251 = vmatprep.subr.bf16.mxu0 0
        %1252 = vmatpush1.bf16.xpose.msra.mxu0 0
        %1253 = vmatprep.subr.bf16.mxu0 0
        %1254 = vmatpush1.bf16.xpose.msra.mxu0 0
        %1255 = vmatprep.subr.bf16.mxu0 0
        %1256 = vmatpush1.bf16.xpose.msra.mxu0 0
        %1257 = vmatprep.subr.bf16.mxu0 0
        %1258 = vmatpush1.bf16.xpose.msra.mxu0 0
        %1259 = vmatprep.subr.bf16.mxu0 0
        %1260 = vmatpush1.bf16.xpose.msra.mxu0 0
        %1261 = vmatprep.subr.bf16.mxu0 0
        %1262 = vmatpush1.bf16.xpose.msra.mxu0 0
        %1263 = vmatprep.subr.bf16.mxu0 0
        %1264 = vmatpush1.bf16.xpose.msra.mxu0 0
        %1265 = vmatprep.subr.bf16.mxu0 0
        %1266 = vmatpush1.bf16.xpose.msra.mxu0 0
        %1267 = vmatprep.subr.bf16.mxu0 0
        %1268 = vmatpush1.bf16.xpose.msra.mxu0 0
        %1269 = vmatprep.subr.bf16.mxu0 0
        %1270 = vmatpush1.bf16.xpose.msra.mxu0 0
        %1271 = vmatprep.subr.bf16.mxu0 0
        %1272 = vmatpush1.bf16.xpose.msra.mxu0 0
        %1273 = vmatprep.subr.bf16.mxu0 0
        %1274 = vmatpush1.bf16.xpose.msra.mxu0 0
        %1275 = vmatprep.subr.bf16.mxu0 0
        %1276 = vmatpush1.bf16.xpose.msra.mxu0 0
        %1277 = vmatprep.mubr.bf16.mxu0 0
        %1278 = vmatmul.mubr.bf16.gmra.mrb[0].mxu0 %v1240
        %v1279 = vpop.f32.mrb[0].mxu0
        %v1280 = vadd.f32 0.0, %v1279
        %v1281 = vpop.f32.mrb[0].mxu0
        %v1282 = vpop.f32.mrb[0].mxu0
        %v1283 = vadd.f32 0.0, %v1282
        %v1284 = vpop.f32.mrb[0].mxu0
        %1285 = vdwg.mxu0
        %v1287 = vsel %vm956, %v871, 0
        %v1290 = vsel %vm956, %v899, 0
        %1292 = vmatprep.subr.bf16.mxu0 0
        %1293 = vmatpush1.bf16.xpose.msra.mxu0 %v1290
        %1294 = vmatprep.subr.bf16.mxu0 0
        %1295 = vmatpush1.bf16.xpose.msra.mxu0 0
        %1296 = vmatprep.subr.bf16.mxu0 0
        %1297 = vmatpush1.bf16.xpose.msra.mxu0 0
        %1298 = vmatprep.subr.bf16.mxu0 0
        %1299 = vmatpush1.bf16.xpose.msra.mxu0 0
        %1300 = vmatprep.subr.bf16.mxu0 0
        %1301 = vmatpush1.bf16.xpose.msra.mxu0 0
        %1302 = vmatprep.subr.bf16.mxu0 0
        %1303 = vmatpush1.bf16.xpose.msra.mxu0 0
        %1304 = vmatprep.subr.bf16.mxu0 0
        %1305 = vmatpush1.bf16.xpose.msra.mxu0 0
        %1306 = vmatprep.subr.bf16.mxu0 0
        %1307 = vmatpush1.bf16.xpose.msra.mxu0 0
        %1308 = vmatprep.subr.bf16.mxu0 0
        %1309 = vmatpush1.bf16.xpose.msra.mxu0 0
        %1310 = vmatprep.subr.bf16.mxu0 0
        %1311 = vmatpush1.bf16.xpose.msra.mxu0 0
        %1312 = vmatprep.subr.bf16.mxu0 0
        %1313 = vmatpush1.bf16.xpose.msra.mxu0 0
        %1314 = vmatprep.subr.bf16.mxu0 0
        %1315 = vmatpush1.bf16.xpose.msra.mxu0 0
        %1316 = vmatprep.subr.bf16.mxu0 0
        %1317 = vmatpush1.bf16.xpose.msra.mxu0 0
        %1318 = vmatprep.subr.bf16.mxu0 0
        %1319 = vmatpush1.bf16.xpose.msra.mxu0 0
        %1320 = vmatprep.subr.bf16.mxu0 0
        %1321 = vmatpush1.bf16.xpose.msra.mxu0 0
        %1322 = vmatprep.subr.bf16.mxu0 0
        %1323 = vmatpush1.bf16.xpose.msra.mxu0 0
        %1324 = vmatprep.mubr.bf16.mxu0 0
        %1325 = vmatmul.mubr.bf16.gmra.mrb[0].mxu0 %v1287
        %v1326 = vpop.f32.mrb[0].mxu0
        %v1327 = vadd.f32 0.0, %v1326
        %v1328 = vpop.f32.mrb[0].mxu0
        %v1329 = vpop.f32.mrb[0].mxu0
        %v1330 = vadd.f32 0.0, %v1329
        %v1331 = vpop.f32.mrb[0].mxu0
        %1332 = vdwg.mxu0
        %v1334 = vsel %vm956, %v873, 0
        %v1337 = vsel %vm956, %v901, 0
        %1339 = vmatprep.subr.bf16.mxu0 0
        %1340 = vmatpush1.bf16.xpose.msra.mxu0 %v1337
        %1341 = vmatprep.subr.bf16.mxu0 0
        %1342 = vmatpush1.bf16.xpose.msra.mxu0 0
        %1343 = vmatprep.subr.bf16.mxu0 0
        %1344 = vmatpush1.bf16.xpose.msra.mxu0 0
        %1345 = vmatprep.subr.bf16.mxu0 0
        %1346 = vmatpush1.bf16.xpose.msra.mxu0 0
        %1347 = vmatprep.subr.bf16.mxu0 0
        %1348 = vmatpush1.bf16.xpose.msra.mxu0 0
        %1349 = vmatprep.subr.bf16.mxu0 0
        %1350 = vmatpush1.bf16.xpose.msra.mxu0 0
        %1351 = vmatprep.subr.bf16.mxu0 0
        %1352 = vmatpush1.bf16.xpose.msra.mxu0 0
        %1353 = vmatprep.subr.bf16.mxu0 0
        %1354 = vmatpush1.bf16.xpose.msra.mxu0 0
        %1355 = vmatprep.subr.bf16.mxu0 0
        %1356 = vmatpush1.bf16.xpose.msra.mxu0 0
        %1357 = vmatprep.subr.bf16.mxu0 0
        %1358 = vmatpush1.bf16.xpose.msra.mxu0 0
        %1359 = vmatprep.subr.bf16.mxu0 0
        %1360 = vmatpush1.bf16.xpose.msra.mxu0 0
        %1361 = vmatprep.subr.bf16.mxu0 0
        %1362 = vmatpush1.bf16.xpose.msra.mxu0 0
        %1363 = vmatprep.subr.bf16.mxu0 0
        %1364 = vmatpush1.bf16.xpose.msra.mxu0 0
        %1365 = vmatprep.subr.bf16.mxu0 0
        %1366 = vmatpush1.bf16.xpose.msra.mxu0 0
        %1367 = vmatprep.subr.bf16.mxu0 0
        %1368 = vmatpush1.bf16.xpose.msra.mxu0 0
        %1369 = vmatprep.subr.bf16.mxu0 0
        %1370 = vmatpush1.bf16.xpose.msra.mxu0 0
        %1371 = vmatprep.mubr.bf16.mxu0 0
        %1372 = vmatmul.mubr.bf16.gmra.mrb[0].mxu0 %v1334
        %v1373 = vpop.f32.mrb[0].mxu0
        %v1374 = vadd.f32 0.0, %v1373
        %v1375 = vpop.f32.mrb[0].mxu0
        %v1376 = vpop.f32.mrb[0].mxu0
        %v1377 = vadd.f32 0.0, %v1376
        %v1378 = vpop.f32.mrb[0].mxu0
        %1379 = vdwg.mxu0
        %v1381 = vsel %vm956, %v875, 0
        %v1384 = vsel %vm956, %v903, 0
        %1386 = vmatprep.subr.bf16.mxu0 0
        %1387 = vmatpush1.bf16.xpose.msra.mxu0 %v1384
        %1388 = vmatprep.subr.bf16.mxu0 0
        %1389 = vmatpush1.bf16.xpose.msra.mxu0 0
        %1390 = vmatprep.subr.bf16.mxu0 0
        %1391 = vmatpush1.bf16.xpose.msra.mxu0 0
        %1392 = vmatprep.subr.bf16.mxu0 0
        %1393 = vmatpush1.bf16.xpose.msra.mxu0 0
        %1394 = vmatprep.subr.bf16.mxu0 0
        %1395 = vmatpush1.bf16.xpose.msra.mxu0 0
        %1396 = vmatprep.subr.bf16.mxu0 0
        %1397 = vmatpush1.bf16.xpose.msra.mxu0 0
        %1398 = vmatprep.subr.bf16.mxu0 0
        %1399 = vmatpush1.bf16.xpose.msra.mxu0 0
        %1400 = vmatprep.subr.bf16.mxu0 0
        %1401 = vmatpush1.bf16.xpose.msra.mxu0 0
        %1402 = vmatprep.subr.bf16.mxu0 0
        %1403 = vmatpush1.bf16.xpose.msra.mxu0 0
        %1404 = vmatprep.subr.bf16.mxu0 0
        %1405 = vmatpush1.bf16.xpose.msra.mxu0 0
        %1406 = vmatprep.subr.bf16.mxu0 0
        %1407 = vmatpush1.bf16.xpose.msra.mxu0 0
        %1408 = vmatprep.subr.bf16.mxu0 0
        %1409 = vmatpush1.bf16.xpose.msra.mxu0 0
        %1410 = vmatprep.subr.bf16.mxu0 0
        %1411 = vmatpush1.bf16.xpose.msra.mxu0 0
        %1412 = vmatprep.subr.bf16.mxu0 0
        %1413 = vmatpush1.bf16.xpose.msra.mxu0 0
        %1414 = vmatprep.subr.bf16.mxu0 0
        %1415 = vmatpush1.bf16.xpose.msra.mxu0 0
        %1416 = vmatprep.subr.bf16.mxu0 0
        %1417 = vmatpush1.bf16.xpose.msra.mxu0 0
        %1418 = vmatprep.mubr.bf16.mxu0 0
        %1419 = vmatmul.mubr.bf16.gmra.mrb[0].mxu0 %v1381
        %v1420 = vpop.f32.mrb[0].mxu0
        %v1421 = vadd.f32 0.0, %v1420
        %v1422 = vpop.f32.mrb[0].mxu0
        %v1423 = vpop.f32.mrb[0].mxu0
        %v1424 = vadd.f32 0.0, %v1423
        %v1425 = vpop.f32.mrb[0].mxu0
        %1426 = vdwg.mxu0
        %v1428 = vsel %vm956, %v877, 0
        %v1431 = vsel %vm956, %v905, 0
        %1433 = vmatprep.subr.bf16.mxu0 0
        %1434 = vmatpush1.bf16.xpose.msra.mxu0 %v1431
        %1435 = vmatprep.subr.bf16.mxu0 0
        %1436 = vmatpush1.bf16.xpose.msra.mxu0 0
        %1437 = vmatprep.subr.bf16.mxu0 0
        %1438 = vmatpush1.bf16.xpose.msra.mxu0 0
        %1439 = vmatprep.subr.bf16.mxu0 0
        %1440 = vmatpush1.bf16.xpose.msra.mxu0 0
        %1441 = vmatprep.subr.bf16.mxu0 0
        %1442 = vmatpush1.bf16.xpose.msra.mxu0 0
        %1443 = vmatprep.subr.bf16.mxu0 0
        %1444 = vmatpush1.bf16.xpose.msra.mxu0 0
        %1445 = vmatprep.subr.bf16.mxu0 0
        %1446 = vmatpush1.bf16.xpose.msra.mxu0 0
        %1447 = vmatprep.subr.bf16.mxu0 0
        %1448 = vmatpush1.bf16.xpose.msra.mxu0 0
        %1449 = vmatprep.subr.bf16.mxu0 0
        %1450 = vmatpush1.bf16.xpose.msra.mxu0 0
        %1451 = vmatprep.subr.bf16.mxu0 0
        %1452 = vmatpush1.bf16.xpose.msra.mxu0 0
        %1453 = vmatprep.subr.bf16.mxu0 0
        %1454 = vmatpush1.bf16.xpose.msra.mxu0 0
        %1455 = vmatprep.subr.bf16.mxu0 0
        %1456 = vmatpush1.bf16.xpose.msra.mxu0 0
        %1457 = vmatprep.subr.bf16.mxu0 0
        %1458 = vmatpush1.bf16.xpose.msra.mxu0 0
        %1459 = vmatprep.subr.bf16.mxu0 0
        %1460 = vmatpush1.bf16.xpose.msra.mxu0 0
        %1461 = vmatprep.subr.bf16.mxu0 0
        %1462 = vmatpush1.bf16.xpose.msra.mxu0 0
        %1463 = vmatprep.subr.bf16.mxu0 0
        %1464 = vmatpush1.bf16.xpose.msra.mxu0 0
        %1465 = vmatprep.mubr.bf16.mxu0 0
        %1466 = vmatmul.mubr.bf16.gmra.mrb[0].mxu0 %v1428
        %v1467 = vpop.f32.mrb[0].mxu0
        %v1468 = vadd.f32 0.0, %v1467
        %v1469 = vpop.f32.mrb[0].mxu0
        %v1470 = vpop.f32.mrb[0].mxu0
        %v1471 = vadd.f32 0.0, %v1470
        %v1472 = vpop.f32.mrb[0].mxu0
        %1473 = vdwg.mxu0
        %v1475 = vsel %vm956, %v879, 0
        %v1478 = vsel %vm956, %v907, 0
        %1480 = vmatprep.subr.bf16.mxu0 0
        %1481 = vmatpush1.bf16.xpose.msra.mxu0 %v1478
        %1482 = vmatprep.subr.bf16.mxu0 0
        %1483 = vmatpush1.bf16.xpose.msra.mxu0 0
        %1484 = vmatprep.subr.bf16.mxu0 0
        %1485 = vmatpush1.bf16.xpose.msra.mxu0 0
        %1486 = vmatprep.subr.bf16.mxu0 0
        %1487 = vmatpush1.bf16.xpose.msra.mxu0 0
        %1488 = vmatprep.subr.bf16.mxu0 0
        %1489 = vmatpush1.bf16.xpose.msra.mxu0 0
        %1490 = vmatprep.subr.bf16.mxu0 0
        %1491 = vmatpush1.bf16.xpose.msra.mxu0 0
        %1492 = vmatprep.subr.bf16.mxu0 0
        %1493 = vmatpush1.bf16.xpose.msra.mxu0 0
        %1494 = vmatprep.subr.bf16.mxu0 0
        %1495 = vmatpush1.bf16.xpose.msra.mxu0 0
        %1496 = vmatprep.subr.bf16.mxu0 0
        %1497 = vmatpush1.bf16.xpose.msra.mxu0 0
        %1498 = vmatprep.subr.bf16.mxu0 0
        %1499 = vmatpush1.bf16.xpose.msra.mxu0 0
        %1500 = vmatprep.subr.bf16.mxu0 0
        %1501 = vmatpush1.bf16.xpose.msra.mxu0 0
        %1502 = vmatprep.subr.bf16.mxu0 0
        %1503 = vmatpush1.bf16.xpose.msra.mxu0 0
        %1504 = vmatprep.subr.bf16.mxu0 0
        %1505 = vmatpush1.bf16.xpose.msra.mxu0 0
        %1506 = vmatprep.subr.bf16.mxu0 0
        %1507 = vmatpush1.bf16.xpose.msra.mxu0 0
        %1508 = vmatprep.subr.bf16.mxu0 0
        %1509 = vmatpush1.bf16.xpose.msra.mxu0 0
        %1510 = vmatprep.subr.bf16.mxu0 0
        %1511 = vmatpush1.bf16.xpose.msra.mxu0 0
        %1512 = vmatprep.mubr.bf16.mxu0 0
        %1513 = vmatmul.mubr.bf16.gmra.mrb[0].mxu0 %v1475
        %v1514 = vpop.f32.mrb[0].mxu0
        %v1515 = vadd.f32 0.0, %v1514
        %v1516 = vpop.f32.mrb[0].mxu0
        %v1517 = vpop.f32.mrb[0].mxu0
        %v1518 = vadd.f32 0.0, %v1517
        %v1519 = vpop.f32.mrb[0].mxu0
        %1520 = vdwg.mxu0
        %v1522 = vsel %vm956, %v881, 0
        %v1525 = vsel %vm956, %v909, 0
        %1527 = vmatprep.subr.bf16.mxu0 0
        %1528 = vmatpush1.bf16.xpose.msra.mxu0 %v1525
        %1529 = vmatprep.subr.bf16.mxu0 0
        %1530 = vmatpush1.bf16.xpose.msra.mxu0 0
        %1531 = vmatprep.subr.bf16.mxu0 0
        %1532 = vmatpush1.bf16.xpose.msra.mxu0 0
        %1533 = vmatprep.subr.bf16.mxu0 0
        %1534 = vmatpush1.bf16.xpose.msra.mxu0 0
        %1535 = vmatprep.subr.bf16.mxu0 0
        %1536 = vmatpush1.bf16.xpose.msra.mxu0 0
        %1537 = vmatprep.subr.bf16.mxu0 0
        %1538 = vmatpush1.bf16.xpose.msra.mxu0 0
        %1539 = vmatprep.subr.bf16.mxu0 0
        %1540 = vmatpush1.bf16.xpose.msra.mxu0 0
        %1541 = vmatprep.subr.bf16.mxu0 0
        %1542 = vmatpush1.bf16.xpose.msra.mxu0 0
        %1543 = vmatprep.subr.bf16.mxu0 0
        %1544 = vmatpush1.bf16.xpose.msra.mxu0 0
        %1545 = vmatprep.subr.bf16.mxu0 0
        %1546 = vmatpush1.bf16.xpose.msra.mxu0 0
        %1547 = vmatprep.subr.bf16.mxu0 0
        %1548 = vmatpush1.bf16.xpose.msra.mxu0 0
        %1549 = vmatprep.subr.bf16.mxu0 0
        %1550 = vmatpush1.bf16.xpose.msra.mxu0 0
        %1551 = vmatprep.subr.bf16.mxu0 0
        %1552 = vmatpush1.bf16.xpose.msra.mxu0 0
        %1553 = vmatprep.subr.bf16.mxu0 0
        %1554 = vmatpush1.bf16.xpose.msra.mxu0 0
        %1555 = vmatprep.subr.bf16.mxu0 0
        %1556 = vmatpush1.bf16.xpose.msra.mxu0 0
        %1557 = vmatprep.subr.bf16.mxu0 0
        %1558 = vmatpush1.bf16.xpose.msra.mxu0 0
        %1559 = vmatprep.mubr.bf16.mxu0 0
        %1560 = vmatmul.mubr.bf16.gmra.mrb[0].mxu0 %v1522
        %v1561 = vpop.f32.mrb[0].mxu0
        %v1562 = vadd.f32 0.0, %v1561
        %v1563 = vpop.f32.mrb[0].mxu0
        %v1564 = vpop.f32.mrb[0].mxu0
        %v1565 = vadd.f32 0.0, %v1564
        %v1566 = vpop.f32.mrb[0].mxu0
        %1567 = vdwg.mxu0
        %v1569 = vsel %vm956, %v883, 0
        %v1572 = vsel %vm956, %v911, 0
        %1574 = vmatprep.subr.bf16.mxu0 0
        %1575 = vmatpush1.bf16.xpose.msra.mxu0 %v1572
        %1576 = vmatprep.subr.bf16.mxu0 0
        %1577 = vmatpush1.bf16.xpose.msra.mxu0 0
        %1578 = vmatprep.subr.bf16.mxu0 0
        %1579 = vmatpush1.bf16.xpose.msra.mxu0 0
        %1580 = vmatprep.subr.bf16.mxu0 0
        %1581 = vmatpush1.bf16.xpose.msra.mxu0 0
        %1582 = vmatprep.subr.bf16.mxu0 0
        %1583 = vmatpush1.bf16.xpose.msra.mxu0 0
        %1584 = vmatprep.subr.bf16.mxu0 0
        %1585 = vmatpush1.bf16.xpose.msra.mxu0 0
        %1586 = vmatprep.subr.bf16.mxu0 0
        %1587 = vmatpush1.bf16.xpose.msra.mxu0 0
        %1588 = vmatprep.subr.bf16.mxu0 0
        %1589 = vmatpush1.bf16.xpose.msra.mxu0 0
        %1590 = vmatprep.subr.bf16.mxu0 0
        %1591 = vmatpush1.bf16.xpose.msra.mxu0 0
        %1592 = vmatprep.subr.bf16.mxu0 0
        %1593 = vmatpush1.bf16.xpose.msra.mxu0 0
        %1594 = vmatprep.subr.bf16.mxu0 0
        %1595 = vmatpush1.bf16.xpose.msra.mxu0 0
        %1596 = vmatprep.subr.bf16.mxu0 0
        %1597 = vmatpush1.bf16.xpose.msra.mxu0 0
        %1598 = vmatprep.subr.bf16.mxu0 0
        %1599 = vmatpush1.bf16.xpose.msra.mxu0 0
        %1600 = vmatprep.subr.bf16.mxu0 0
        %1601 = vmatpush1.bf16.xpose.msra.mxu0 0
        %1602 = vmatprep.subr.bf16.mxu0 0
        %1603 = vmatpush1.bf16.xpose.msra.mxu0 0
        %1604 = vmatprep.subr.bf16.mxu0 0
        %1605 = vmatpush1.bf16.xpose.msra.mxu0 0
        %1606 = vmatprep.mubr.bf16.mxu0 0
        %1607 = vmatmul.mubr.bf16.gmra.mrb[0].mxu0 %v1569
        %v1608 = vpop.f32.mrb[0].mxu0
        %v1609 = vadd.f32 0.0, %v1608
        %v1610 = vpop.f32.mrb[0].mxu0
        %v1611 = vpop.f32.mrb[0].mxu0
        %v1612 = vadd.f32 0.0, %v1611
        %v1613 = vpop.f32.mrb[0].mxu0
        %1614 = vdwg.mxu0
        %v1616 = vsel %vm956, %v885, 0
        %v1619 = vsel %vm956, %v913, 0
        %1621 = vmatprep.subr.bf16.mxu0 0
        %1622 = vmatpush1.bf16.xpose.msra.mxu0 %v1619
        %1623 = vmatprep.subr.bf16.mxu0 0
        %1624 = vmatpush1.bf16.xpose.msra.mxu0 0
        %1625 = vmatprep.subr.bf16.mxu0 0
        %1626 = vmatpush1.bf16.xpose.msra.mxu0 0
        %1627 = vmatprep.subr.bf16.mxu0 0
        %1628 = vmatpush1.bf16.xpose.msra.mxu0 0
        %1629 = vmatprep.subr.bf16.mxu0 0
        %1630 = vmatpush1.bf16.xpose.msra.mxu0 0
        %1631 = vmatprep.subr.bf16.mxu0 0
        %1632 = vmatpush1.bf16.xpose.msra.mxu0 0
        %1633 = vmatprep.subr.bf16.mxu0 0
        %1634 = vmatpush1.bf16.xpose.msra.mxu0 0
        %1635 = vmatprep.subr.bf16.mxu0 0
        %1636 = vmatpush1.bf16.xpose.msra.mxu0 0
        %1637 = vmatprep.subr.bf16.mxu0 0
        %1638 = vmatpush1.bf16.xpose.msra.mxu0 0
        %1639 = vmatprep.subr.bf16.mxu0 0
        %1640 = vmatpush1.bf16.xpose.msra.mxu0 0
        %1641 = vmatprep.subr.bf16.mxu0 0
        %1642 = vmatpush1.bf16.xpose.msra.mxu0 0
        %1643 = vmatprep.subr.bf16.mxu0 0
        %1644 = vmatpush1.bf16.xpose.msra.mxu0 0
        %1645 = vmatprep.subr.bf16.mxu0 0
        %1646 = vmatpush1.bf16.xpose.msra.mxu0 0
        %1647 = vmatprep.subr.bf16.mxu0 0
        %1648 = vmatpush1.bf16.xpose.msra.mxu0 0
        %1649 = vmatprep.subr.bf16.mxu0 0
        %1650 = vmatpush1.bf16.xpose.msra.mxu0 0
        %1651 = vmatprep.subr.bf16.mxu0 0
        %1652 = vmatpush1.bf16.xpose.msra.mxu0 0
        %1653 = vmatprep.mubr.bf16.mxu0 0
        %1654 = vmatmul.mubr.bf16.gmra.mrb[0].mxu0 %v1616
        %v1655 = vpop.f32.mrb[0].mxu0
        %v1656 = vadd.f32 0.0, %v1655
        %v1657 = vpop.f32.mrb[0].mxu0
        %v1658 = vpop.f32.mrb[0].mxu0
        %v1659 = vadd.f32 0.0, %v1658
        %v1660 = vpop.f32.mrb[0].mxu0
        %1661 = vdwg.mxu0
        %v1663 = vsel %vm956, %v887, 0
        %v1666 = vsel %vm956, %v915, 0
        %1668 = vmatprep.subr.bf16.mxu0 0
        %1669 = vmatpush1.bf16.xpose.msra.mxu0 %v1666
        %1670 = vmatprep.subr.bf16.mxu0 0
        %1671 = vmatpush1.bf16.xpose.msra.mxu0 0
        %1672 = vmatprep.subr.bf16.mxu0 0
        %1673 = vmatpush1.bf16.xpose.msra.mxu0 0
        %1674 = vmatprep.subr.bf16.mxu0 0
        %1675 = vmatpush1.bf16.xpose.msra.mxu0 0
        %1676 = vmatprep.subr.bf16.mxu0 0
        %1677 = vmatpush1.bf16.xpose.msra.mxu0 0
        %1678 = vmatprep.subr.bf16.mxu0 0
        %1679 = vmatpush1.bf16.xpose.msra.mxu0 0
        %1680 = vmatprep.subr.bf16.mxu0 0
        %1681 = vmatpush1.bf16.xpose.msra.mxu0 0
        %1682 = vmatprep.subr.bf16.mxu0 0
        %1683 = vmatpush1.bf16.xpose.msra.mxu0 0
        %1684 = vmatprep.subr.bf16.mxu0 0
        %1685 = vmatpush1.bf16.xpose.msra.mxu0 0
        %1686 = vmatprep.subr.bf16.mxu0 0
        %1687 = vmatpush1.bf16.xpose.msra.mxu0 0
        %1688 = vmatprep.subr.bf16.mxu0 0
        %1689 = vmatpush1.bf16.xpose.msra.mxu0 0
        %1690 = vmatprep.subr.bf16.mxu0 0
        %1691 = vmatpush1.bf16.xpose.msra.mxu0 0
        %1692 = vmatprep.subr.bf16.mxu0 0
        %1693 = vmatpush1.bf16.xpose.msra.mxu0 0
        %1694 = vmatprep.subr.bf16.mxu0 0
        %1695 = vmatpush1.bf16.xpose.msra.mxu0 0
        %1696 = vmatprep.subr.bf16.mxu0 0
        %1697 = vmatpush1.bf16.xpose.msra.mxu0 0
        %1698 = vmatprep.subr.bf16.mxu0 0
        %1699 = vmatpush1.bf16.xpose.msra.mxu0 0
        %1700 = vmatprep.mubr.bf16.mxu0 0
        %1701 = vmatmul.mubr.bf16.gmra.mrb[0].mxu0 %v1663
        %v1702 = vpop.f32.mrb[0].mxu0
        %v1703 = vadd.f32 0.0, %v1702
        %v1704 = vpop.f32.mrb[0].mxu0
        %v1705 = vpop.f32.mrb[0].mxu0
        %v1706 = vadd.f32 0.0, %v1705
        %v1707 = vpop.f32.mrb[0].mxu0
        %1708 = vdwg.mxu0
        %vm1709 = vcmask 130048
        %v1710 = vsel %vm1709, %v998, -inf
        %1711 = vmax.xlane.f32.xlu0 %v1710
        %v1712 = vpop.xlane.xlu0 %1711
        %v1713 = vsel %vm1709, %v1001, -inf
        %1714 = vmax.xlane.f32.xlu0 %v1713
        %v1715 = vpop.xlane.xlu0 %1714
        %v1716 = vsel %vm1709, %v1045, -inf
        %1717 = vmax.xlane.f32.xlu0 %v1716
        %v1718 = vpop.xlane.xlu0 %1717
        %v1719 = vsel %vm1709, %v1048, -inf
        %1720 = vmax.xlane.f32.xlu0 %v1719
        %v1721 = vpop.xlane.xlu0 %1720
        %v1722 = vsel %vm1709, %v1092, -inf
        %1723 = vmax.xlane.f32.xlu0 %v1722
        %v1724 = vpop.xlane.xlu0 %1723
        %v1725 = vsel %vm1709, %v1095, -inf
        %1726 = vmax.xlane.f32.xlu0 %v1725
        %v1727 = vpop.xlane.xlu0 %1726
        %v1728 = vsel %vm1709, %v1139, -inf
        %1729 = vmax.xlane.f32.xlu0 %v1728
        %v1730 = vpop.xlane.xlu0 %1729
        %v1731 = vsel %vm1709, %v1142, -inf
        %1732 = vmax.xlane.f32.xlu0 %v1731
        %v1733 = vpop.xlane.xlu0 %1732
        %v1734 = vsel %vm1709, %v1186, -inf
        %1735 = vmax.xlane.f32.xlu0 %v1734
        %v1736 = vpop.xlane.xlu0 %1735
        %v1737 = vsel %vm1709, %v1189, -inf
        %1738 = vmax.xlane.f32.xlu0 %v1737
        %v1739 = vpop.xlane.xlu0 %1738
        %v1740 = vsel %vm1709, %v1233, -inf
        %1741 = vmax.xlane.f32.xlu0 %v1740
        %v1742 = vpop.xlane.xlu0 %1741
        %v1743 = vsel %vm1709, %v1236, -inf
        %1744 = vmax.xlane.f32.xlu0 %v1743
        %v1745 = vpop.xlane.xlu0 %1744
        %v1746 = vsel %vm1709, %v1280, -inf
        %1747 = vmax.xlane.f32.xlu0 %v1746
        %v1748 = vpop.xlane.xlu0 %1747
        %v1749 = vsel %vm1709, %v1283, -inf
        %1750 = vmax.xlane.f32.xlu0 %v1749
        %v1751 = vpop.xlane.xlu0 %1750
        %v1752 = vsel %vm1709, %v1327, -inf
        %1753 = vmax.xlane.f32.xlu0 %v1752
        %v1754 = vpop.xlane.xlu0 %1753
        %v1755 = vsel %vm1709, %v1330, -inf
        %1756 = vmax.xlane.f32.xlu0 %v1755
        %v1757 = vpop.xlane.xlu0 %1756
        %v1758 = vsel %vm1709, %v1374, -inf
        %1759 = vmax.xlane.f32.xlu0 %v1758
        %v1760 = vpop.xlane.xlu0 %1759
        %v1761 = vsel %vm1709, %v1377, -inf
        %1762 = vmax.xlane.f32.xlu0 %v1761
        %v1763 = vpop.xlane.xlu0 %1762
        %v1764 = vsel %vm1709, %v1421, -inf
        %1765 = vmax.xlane.f32.xlu0 %v1764
        %v1766 = vpop.xlane.xlu0 %1765
        %v1767 = vsel %vm1709, %v1424, -inf
        %1768 = vmax.xlane.f32.xlu0 %v1767
        %v1769 = vpop.xlane.xlu0 %1768
        %v1770 = vsel %vm1709, %v1468, -inf
        %1771 = vmax.xlane.f32.xlu0 %v1770
        %v1772 = vpop.xlane.xlu0 %1771
        %v1773 = vsel %vm1709, %v1471, -inf
        %1774 = vmax.xlane.f32.xlu0 %v1773
        %v1775 = vpop.xlane.xlu0 %1774
        %v1776 = vsel %vm1709, %v1515, -inf
        %1777 = vmax.xlane.f32.xlu0 %v1776
        %v1778 = vpop.xlane.xlu0 %1777
        %v1779 = vsel %vm1709, %v1518, -inf
        %1780 = vmax.xlane.f32.xlu0 %v1779
        %v1781 = vpop.xlane.xlu0 %1780
        %v1782 = vsel %vm1709, %v1562, -inf
        %1783 = vmax.xlane.f32.xlu0 %v1782
        %v1784 = vpop.xlane.xlu0 %1783
        %v1785 = vsel %vm1709, %v1565, -inf
        %1786 = vmax.xlane.f32.xlu0 %v1785
        %v1787 = vpop.xlane.xlu0 %1786
        %v1788 = vsel %vm1709, %v1609, -inf
        %1789 = vmax.xlane.f32.xlu0 %v1788
        %v1790 = vpop.xlane.xlu0 %1789
        %v1791 = vsel %vm1709, %v1612, -inf
        %1792 = vmax.xlane.f32.xlu0 %v1791
        %v1793 = vpop.xlane.xlu0 %1792
        %v1794 = vsel %vm1709, %v1656, -inf
        %1795 = vmax.xlane.f32.xlu0 %v1794
        %v1796 = vpop.xlane.xlu0 %1795
        %v1797 = vsel %vm1709, %v1659, -inf
        %1798 = vmax.xlane.f32.xlu0 %v1797
        %v1799 = vpop.xlane.xlu0 %1798
        %v1800 = vsel %vm1709, %v1703, -inf
        %1801 = vmax.xlane.f32.xlu0 %v1800
        %v1802 = vpop.xlane.xlu0 %1801
        %v1803 = vsel %vm1709, %v1706, -inf
        %1804 = vmax.xlane.f32.xlu0 %v1803
        %v1805 = vpop.xlane.xlu0 %1804
        %v1806 = vsub.f32 %v998, %v1712
        %v1807 = vsub.f32 %v1001, %v1715
        %v1808 = vsub.f32 %v1045, %v1718
        %v1809 = vsub.f32 %v1048, %v1721
        %v1810 = vsub.f32 %v1092, %v1724
        %v1811 = vsub.f32 %v1095, %v1727
        %v1812 = vsub.f32 %v1139, %v1730
        %v1813 = vsub.f32 %v1142, %v1733
        %v1814 = vsub.f32 %v1186, %v1736
        %v1815 = vsub.f32 %v1189, %v1739
        %v1816 = vsub.f32 %v1233, %v1742
        %v1817 = vsub.f32 %v1236, %v1745
        %v1818 = vsub.f32 %v1280, %v1748
        %v1819 = vsub.f32 %v1283, %v1751
        %v1820 = vsub.f32 %v1327, %v1754
        %v1821 = vsub.f32 %v1330, %v1757
        %v1822 = vsub.f32 %v1374, %v1760
        %v1823 = vsub.f32 %v1377, %v1763
        %v1824 = vsub.f32 %v1421, %v1766
        %v1825 = vsub.f32 %v1424, %v1769
        %v1826 = vsub.f32 %v1468, %v1772
        %v1827 = vsub.f32 %v1471, %v1775
        %v1828 = vsub.f32 %v1515, %v1778
        %v1829 = vsub.f32 %v1518, %v1781
        %v1830 = vsub.f32 %v1562, %v1784
        %v1831 = vsub.f32 %v1565, %v1787
        %v1832 = vsub.f32 %v1609, %v1790
        %v1833 = vsub.f32 %v1612, %v1793
        %v1834 = vsub.f32 %v1656, %v1796
        %v1835 = vsub.f32 %v1659, %v1799
        %v1836 = vsub.f32 %v1703, %v1802
        %v1837 = vsub.f32 %v1706, %v1805
        %v1838 = vmul.f32 %v1806, 1.442695
        %v1839 = vpow.pop %v1838
        %v1840 = vmul.f32 %v1807, 1.442695
        %v1841 = vpow.pop %v1840
        %v1842 = vmul.f32 %v1808, 1.442695
        %v1843 = vpow.pop %v1842
        %v1844 = vmul.f32 %v1809, 1.442695
        %v1845 = vpow.pop %v1844
        %v1846 = vmul.f32 %v1810, 1.442695
        %v1847 = vpow.pop %v1846
        %v1848 = vmul.f32 %v1811, 1.442695
        %v1849 = vpow.pop %v1848
        %v1850 = vmul.f32 %v1812, 1.442695
        %v1851 = vpow.pop %v1850
        %v1852 = vmul.f32 %v1813, 1.442695
        %v1853 = vpow.pop %v1852
        %v1854 = vmul.f32 %v1814, 1.442695
        %v1855 = vpow.pop %v1854
        %v1856 = vmul.f32 %v1815, 1.442695
        %v1857 = vpow.pop %v1856
        %v1858 = vmul.f32 %v1816, 1.442695
        %v1859 = vpow.pop %v1858
        %v1860 = vmul.f32 %v1817, 1.442695
        %v1861 = vpow.pop %v1860
        %v1862 = vmul.f32 %v1818, 1.442695
        %v1863 = vpow.pop %v1862
        %v1864 = vmul.f32 %v1819, 1.442695
        %v1865 = vpow.pop %v1864
        %v1866 = vmul.f32 %v1820, 1.442695
        %v1867 = vpow.pop %v1866
        %v1868 = vmul.f32 %v1821, 1.442695
        %v1869 = vpow.pop %v1868
        %v1870 = vmul.f32 %v1822, 1.442695
        %v1871 = vpow.pop %v1870
        %v1872 = vmul.f32 %v1823, 1.442695
        %v1873 = vpow.pop %v1872
        %v1874 = vmul.f32 %v1824, 1.442695
        %v1875 = vpow.pop %v1874
        %v1876 = vmul.f32 %v1825, 1.442695
        %v1877 = vpow.pop %v1876
        %v1878 = vmul.f32 %v1826, 1.442695
        %v1879 = vpow.pop %v1878
        %v1880 = vmul.f32 %v1827, 1.442695
        %v1881 = vpow.pop %v1880
        %v1882 = vmul.f32 %v1828, 1.442695
        %v1883 = vpow.pop %v1882
        %v1884 = vmul.f32 %v1829, 1.442695
        %v1885 = vpow.pop %v1884
        %v1886 = vmul.f32 %v1830, 1.442695
        %v1887 = vpow.pop %v1886
        %v1888 = vmul.f32 %v1831, 1.442695
        %v1889 = vpow.pop %v1888
        %v1890 = vmul.f32 %v1832, 1.442695
        %v1891 = vpow.pop %v1890
        %v1892 = vmul.f32 %v1833, 1.442695
        %v1893 = vpow.pop %v1892
        %v1894 = vmul.f32 %v1834, 1.442695
        %v1895 = vpow.pop %v1894
        %v1896 = vmul.f32 %v1835, 1.442695
        %v1897 = vpow.pop %v1896
        %v1898 = vmul.f32 %v1836, 1.442695
        %v1899 = vpow.pop %v1898
        %v1900 = vmul.f32 %v1837, 1.442695
        %v1901 = vpow.pop %v1900
        %v1902 = vsel %vm1709, %v1839, 0.0
        %1903 = vadd.xlane.f32.xlu0 %v1902
        %v1904 = vpop.xlane.xlu0 %1903
        %v1905 = vsel %vm1709, %v1841, 0.0
        %1906 = vadd.xlane.f32.xlu0 %v1905
        %v1907 = vpop.xlane.xlu0 %1906
        %v1908 = vsel %vm1709, %v1843, 0.0
        %1909 = vadd.xlane.f32.xlu0 %v1908
        %v1910 = vpop.xlane.xlu0 %1909
        %v1911 = vsel %vm1709, %v1845, 0.0
        %1912 = vadd.xlane.f32.xlu0 %v1911
        %v1913 = vpop.xlane.xlu0 %1912
        %v1914 = vsel %vm1709, %v1847, 0.0
        %1915 = vadd.xlane.f32.xlu0 %v1914
        %v1916 = vpop.xlane.xlu0 %1915
        %v1917 = vsel %vm1709, %v1849, 0.0
        %1918 = vadd.xlane.f32.xlu0 %v1917
        %v1919 = vpop.xlane.xlu0 %1918
        %v1920 = vsel %vm1709, %v1851, 0.0
        %1921 = vadd.xlane.f32.xlu0 %v1920
        %v1922 = vpop.xlane.xlu0 %1921
        %v1923 = vsel %vm1709, %v1853, 0.0
        %1924 = vadd.xlane.f32.xlu0 %v1923
        %v1925 = vpop.xlane.xlu0 %1924
        %v1926 = vsel %vm1709, %v1855, 0.0
        %1927 = vadd.xlane.f32.xlu0 %v1926
        %v1928 = vpop.xlane.xlu0 %1927
        %v1929 = vsel %vm1709, %v1857, 0.0
        %1930 = vadd.xlane.f32.xlu0 %v1929
        %v1931 = vpop.xlane.xlu0 %1930
        %v1932 = vsel %vm1709, %v1859, 0.0
        %1933 = vadd.xlane.f32.xlu0 %v1932
        %v1934 = vpop.xlane.xlu0 %1933
        %v1935 = vsel %vm1709, %v1861, 0.0
        %1936 = vadd.xlane.f32.xlu0 %v1935
        %v1937 = vpop.xlane.xlu0 %1936
        %v1938 = vsel %vm1709, %v1863, 0.0
        %1939 = vadd.xlane.f32.xlu0 %v1938
        %v1940 = vpop.xlane.xlu0 %1939
        %v1941 = vsel %vm1709, %v1865, 0.0
        %1942 = vadd.xlane.f32.xlu0 %v1941
        %v1943 = vpop.xlane.xlu0 %1942
        %v1944 = vsel %vm1709, %v1867, 0.0
        %1945 = vadd.xlane.f32.xlu0 %v1944
        %v1946 = vpop.xlane.xlu0 %1945
        %v1947 = vsel %vm1709, %v1869, 0.0
        %1948 = vadd.xlane.f32.xlu0 %v1947
        %v1949 = vpop.xlane.xlu0 %1948
        %v1950 = vsel %vm1709, %v1871, 0.0
        %1951 = vadd.xlane.f32.xlu0 %v1950
        %v1952 = vpop.xlane.xlu0 %1951
        %v1953 = vsel %vm1709, %v1873, 0.0
        %1954 = vadd.xlane.f32.xlu0 %v1953
        %v1955 = vpop.xlane.xlu0 %1954
        %v1956 = vsel %vm1709, %v1875, 0.0
        %1957 = vadd.xlane.f32.xlu0 %v1956
        %v1958 = vpop.xlane.xlu0 %1957
        %v1959 = vsel %vm1709, %v1877, 0.0
        %1960 = vadd.xlane.f32.xlu0 %v1959
        %v1961 = vpop.xlane.xlu0 %1960
        %v1962 = vsel %vm1709, %v1879, 0.0
        %1963 = vadd.xlane.f32.xlu0 %v1962
        %v1964 = vpop.xlane.xlu0 %1963
        %v1965 = vsel %vm1709, %v1881, 0.0
        %1966 = vadd.xlane.f32.xlu0 %v1965
        %v1967 = vpop.xlane.xlu0 %1966
        %v1968 = vsel %vm1709, %v1883, 0.0
        %1969 = vadd.xlane.f32.xlu0 %v1968
        %v1970 = vpop.xlane.xlu0 %1969
        %v1971 = vsel %vm1709, %v1885, 0.0
        %1972 = vadd.xlane.f32.xlu0 %v1971
        %v1973 = vpop.xlane.xlu0 %1972
        %v1974 = vsel %vm1709, %v1887, 0.0
        %1975 = vadd.xlane.f32.xlu0 %v1974
        %v1976 = vpop.xlane.xlu0 %1975
        %v1977 = vsel %vm1709, %v1889, 0.0
        %1978 = vadd.xlane.f32.xlu0 %v1977
        %v1979 = vpop.xlane.xlu0 %1978
        %v1980 = vsel %vm1709, %v1891, 0.0
        %1981 = vadd.xlane.f32.xlu0 %v1980
        %v1982 = vpop.xlane.xlu0 %1981
        %v1983 = vsel %vm1709, %v1893, 0.0
        %1984 = vadd.xlane.f32.xlu0 %v1983
        %v1985 = vpop.xlane.xlu0 %1984
        %v1986 = vsel %vm1709, %v1895, 0.0
        %1987 = vadd.xlane.f32.xlu0 %v1986
        %v1988 = vpop.xlane.xlu0 %1987
        %v1989 = vsel %vm1709, %v1897, 0.0
        %1990 = vadd.xlane.f32.xlu0 %v1989
        %v1991 = vpop.xlane.xlu0 %1990
        %v1992 = vsel %vm1709, %v1899, 0.0
        %1993 = vadd.xlane.f32.xlu0 %v1992
        %v1994 = vpop.xlane.xlu0 %1993
        %v1995 = vsel %vm1709, %v1901, 0.0
        %1996 = vadd.xlane.f32.xlu0 %v1995
        %v1997 = vpop.xlane.xlu0 %1996
        %v1998 = vrcp.pop %v1904
        %v1999 = vrcp.pop %v1907
        %v2000 = vrcp.pop %v1910
        %v2001 = vrcp.pop %v1913
        %v2002 = vrcp.pop %v1916
        %v2003 = vrcp.pop %v1919
        %v2004 = vrcp.pop %v1922
        %v2005 = vrcp.pop %v1925
        %v2006 = vrcp.pop %v1928
        %v2007 = vrcp.pop %v1931
        %v2008 = vrcp.pop %v1934
        %v2009 = vrcp.pop %v1937
        %v2010 = vrcp.pop %v1940
        %v2011 = vrcp.pop %v1943
        %v2012 = vrcp.pop %v1946
        %v2013 = vrcp.pop %v1949
        %v2014 = vrcp.pop %v1952
        %v2015 = vrcp.pop %v1955
        %v2016 = vrcp.pop %v1958
        %v2017 = vrcp.pop %v1961
        %v2018 = vrcp.pop %v1964
        %v2019 = vrcp.pop %v1967
        %v2020 = vrcp.pop %v1970
        %v2021 = vrcp.pop %v1973
        %v2022 = vrcp.pop %v1976
        %v2023 = vrcp.pop %v1979
        %v2024 = vrcp.pop %v1982
        %v2025 = vrcp.pop %v1985
        %v2026 = vrcp.pop %v1988
        %v2027 = vrcp.pop %v1991
        %v2028 = vrcp.pop %v1994
        %v2029 = vrcp.pop %v1997
        %v2030 = vmul.f32 %v1839, %v1998
        %v2031 = vmul.f32 %v1841, %v1999
        %v2032 = vmul.f32 %v1843, %v2000
        %v2033 = vmul.f32 %v1845, %v2001
        %v2034 = vmul.f32 %v1847, %v2002
        %v2035 = vmul.f32 %v1849, %v2003
        %v2036 = vmul.f32 %v1851, %v2004
        %v2037 = vmul.f32 %v1853, %v2005
        %v2038 = vmul.f32 %v1855, %v2006
        %v2039 = vmul.f32 %v1857, %v2007
        %v2040 = vmul.f32 %v1859, %v2008
        %v2041 = vmul.f32 %v1861, %v2009
        %v2042 = vmul.f32 %v1863, %v2010
        %v2043 = vmul.f32 %v1865, %v2011
        %v2044 = vmul.f32 %v1867, %v2012
        %v2045 = vmul.f32 %v1869, %v2013
        %v2046 = vmul.f32 %v1871, %v2014
        %v2047 = vmul.f32 %v1873, %v2015
        %v2048 = vmul.f32 %v1875, %v2016
        %v2049 = vmul.f32 %v1877, %v2017
        %v2050 = vmul.f32 %v1879, %v2018
        %v2051 = vmul.f32 %v1881, %v2019
        %v2052 = vmul.f32 %v1883, %v2020
        %v2053 = vmul.f32 %v1885, %v2021
        %v2054 = vmul.f32 %v1887, %v2022
        %v2055 = vmul.f32 %v1889, %v2023
        %v2056 = vmul.f32 %v1891, %v2024
        %v2057 = vmul.f32 %v1893, %v2025
        %v2058 = vmul.f32 %v1895, %v2026
        %v2059 = vmul.f32 %v1897, %v2027
        %v2060 = vmul.f32 %v1899, %v2028
        %v2061 = vmul.f32 %v1901, %v2029
        %v2062 = vpack.c.bf16 %v2031, %v2030
        %v2063 = vpack.c.bf16 %v2033, %v2032
        %v2064 = vpack.c.bf16 %v2035, %v2034
        %v2065 = vpack.c.bf16 %v2037, %v2036
        %v2066 = vpack.c.bf16 %v2039, %v2038
        %v2067 = vpack.c.bf16 %v2041, %v2040
        %v2068 = vpack.c.bf16 %v2043, %v2042
        %v2069 = vpack.c.bf16 %v2045, %v2044
        %v2070 = vpack.c.bf16 %v2047, %v2046
        %v2071 = vpack.c.bf16 %v2049, %v2048
        %v2072 = vpack.c.bf16 %v2051, %v2050
        %v2073 = vpack.c.bf16 %v2053, %v2052
        %v2074 = vpack.c.bf16 %v2055, %v2054
        %v2075 = vpack.c.bf16 %v2057, %v2056
        %v2076 = vpack.c.bf16 %v2059, %v2058
        %v2077 = vpack.c.bf16 %v2061, %v2060
        %v2079 = vsel %vm1709, %v2062, 0
        %2081 = vmatprep.subr.bf16.mxu0 0
        %2082 = vmatpush1.bf16.msra.mxu0 %v856
        %2083 = vmatprep.subr.bf16.mxu0 0
        %2084 = vmatpush1.bf16.msra.mxu0 0
        %2085 = vmatprep.subr.bf16.mxu0 0
        %2086 = vmatpush1.bf16.msra.mxu0 0
        %2087 = vmatprep.subr.bf16.mxu0 0
        %2088 = vmatpush1.bf16.msra.mxu0 0
        %2089 = vmatprep.subr.bf16.mxu0 0
        %2090 = vmatpush1.bf16.msra.mxu0 0
        %2091 = vmatprep.subr.bf16.mxu0 0
        %2092 = vmatpush1.bf16.msra.mxu0 0
        %2093 = vmatprep.subr.bf16.mxu0 0
        %2094 = vmatpush1.bf16.msra.mxu0 0
        %2095 = vmatprep.subr.bf16.mxu0 0
        %2096 = vmatpush1.bf16.msra.mxu0 0
        %2097 = vmatprep.subr.bf16.mxu0 0
        %2098 = vmatpush1.bf16.msra.mxu0 0
        %2099 = vmatprep.subr.bf16.mxu0 0
        %2100 = vmatpush1.bf16.msra.mxu0 0
        %2101 = vmatprep.subr.bf16.mxu0 0
        %2102 = vmatpush1.bf16.msra.mxu0 0
        %2103 = vmatprep.subr.bf16.mxu0 0
        %2104 = vmatpush1.bf16.msra.mxu0 0
        %2105 = vmatprep.subr.bf16.mxu0 0
        %2106 = vmatpush1.bf16.msra.mxu0 0
        %2107 = vmatprep.subr.bf16.mxu0 0
        %2108 = vmatpush1.bf16.msra.mxu0 0
        %2109 = vmatprep.subr.bf16.mxu0 0
        %2110 = vmatpush1.bf16.msra.mxu0 0
        %2111 = vmatprep.subr.bf16.mxu0 0
        %2112 = vmatpush1.bf16.msra.mxu0 0
        %2113 = vmatprep.mubr.bf16.mxu0 0
        %2114 = vmatmul.mubr.bf16.gmra.mrb[0].mxu0 %v2079
        %v2115 = vpop.f32.mrb[0].mxu0
        %v2116 = vadd.f32 0.0, %v2115
        %v2117 = vpop.f32.mrb[0].mxu0
        %v2118 = vpop.f32.mrb[0].mxu0
        %v2119 = vadd.f32 0.0, %v2118
        %v2120 = vpop.f32.mrb[0].mxu0
        %2121 = vdwg.mxu0
        %v2123 = vsel %vm1709, %v2063, 0
        %2125 = vmatprep.subr.bf16.mxu0 0
        %2126 = vmatpush1.bf16.msra.mxu0 %v857
        %2127 = vmatprep.subr.bf16.mxu0 0
        %2128 = vmatpush1.bf16.msra.mxu0 0
        %2129 = vmatprep.subr.bf16.mxu0 0
        %2130 = vmatpush1.bf16.msra.mxu0 0
        %2131 = vmatprep.subr.bf16.mxu0 0
        %2132 = vmatpush1.bf16.msra.mxu0 0
        %2133 = vmatprep.subr.bf16.mxu0 0
        %2134 = vmatpush1.bf16.msra.mxu0 0
        %2135 = vmatprep.subr.bf16.mxu0 0
        %2136 = vmatpush1.bf16.msra.mxu0 0
        %2137 = vmatprep.subr.bf16.mxu0 0
        %2138 = vmatpush1.bf16.msra.mxu0 0
        %2139 = vmatprep.subr.bf16.mxu0 0
        %2140 = vmatpush1.bf16.msra.mxu0 0
        %2141 = vmatprep.subr.bf16.mxu0 0
        %2142 = vmatpush1.bf16.msra.mxu0 0
        %2143 = vmatprep.subr.bf16.mxu0 0
        %2144 = vmatpush1.bf16.msra.mxu0 0
        %2145 = vmatprep.subr.bf16.mxu0 0
        %2146 = vmatpush1.bf16.msra.mxu0 0
        %2147 = vmatprep.subr.bf16.mxu0 0
        %2148 = vmatpush1.bf16.msra.mxu0 0
        %2149 = vmatprep.subr.bf16.mxu0 0
        %2150 = vmatpush1.bf16.msra.mxu0 0
        %2151 = vmatprep.subr.bf16.mxu0 0
        %2152 = vmatpush1.bf16.msra.mxu0 0
        %2153 = vmatprep.subr.bf16.mxu0 0
        %2154 = vmatpush1.bf16.msra.mxu0 0
        %2155 = vmatprep.subr.bf16.mxu0 0
        %2156 = vmatpush1.bf16.msra.mxu0 0
        %2157 = vmatprep.mubr.bf16.mxu0 0
        %2158 = vmatmul.mubr.bf16.gmra.mrb[0].mxu0 %v2123
        %v2159 = vpop.f32.mrb[0].mxu0
        %v2160 = vadd.f32 0.0, %v2159
        %v2161 = vpop.f32.mrb[0].mxu0
        %v2162 = vpop.f32.mrb[0].mxu0
        %v2163 = vadd.f32 0.0, %v2162
        %v2164 = vpop.f32.mrb[0].mxu0
        %2165 = vdwg.mxu0
        %v2167 = vsel %vm1709, %v2064, 0
        %2169 = vmatprep.subr.bf16.mxu0 0
        %2170 = vmatpush1.bf16.msra.mxu0 %v858
        %2171 = vmatprep.subr.bf16.mxu0 0
        %2172 = vmatpush1.bf16.msra.mxu0 0
        %2173 = vmatprep.subr.bf16.mxu0 0
        %2174 = vmatpush1.bf16.msra.mxu0 0
        %2175 = vmatprep.subr.bf16.mxu0 0
        %2176 = vmatpush1.bf16.msra.mxu0 0
        %2177 = vmatprep.subr.bf16.mxu0 0
        %2178 = vmatpush1.bf16.msra.mxu0 0
        %2179 = vmatprep.subr.bf16.mxu0 0
        %2180 = vmatpush1.bf16.msra.mxu0 0
        %2181 = vmatprep.subr.bf16.mxu0 0
        %2182 = vmatpush1.bf16.msra.mxu0 0
        %2183 = vmatprep.subr.bf16.mxu0 0
        %2184 = vmatpush1.bf16.msra.mxu0 0
        %2185 = vmatprep.subr.bf16.mxu0 0
        %2186 = vmatpush1.bf16.msra.mxu0 0
        %2187 = vmatprep.subr.bf16.mxu0 0
        %2188 = vmatpush1.bf16.msra.mxu0 0
        %2189 = vmatprep.subr.bf16.mxu0 0
        %2190 = vmatpush1.bf16.msra.mxu0 0
        %2191 = vmatprep.subr.bf16.mxu0 0
        %2192 = vmatpush1.bf16.msra.mxu0 0
        %2193 = vmatprep.subr.bf16.mxu0 0
        %2194 = vmatpush1.bf16.msra.mxu0 0
        %2195 = vmatprep.subr.bf16.mxu0 0
        %2196 = vmatpush1.bf16.msra.mxu0 0
        %2197 = vmatprep.subr.bf16.mxu0 0
        %2198 = vmatpush1.bf16.msra.mxu0 0
        %2199 = vmatprep.subr.bf16.mxu0 0
        %2200 = vmatpush1.bf16.msra.mxu0 0
        %2201 = vmatprep.mubr.bf16.mxu0 0
        %2202 = vmatmul.mubr.bf16.gmra.mrb[0].mxu0 %v2167
        %v2203 = vpop.f32.mrb[0].mxu0
        %v2204 = vadd.f32 0.0, %v2203
        %v2205 = vpop.f32.mrb[0].mxu0
        %v2206 = vpop.f32.mrb[0].mxu0
        %v2207 = vadd.f32 0.0, %v2206
        %v2208 = vpop.f32.mrb[0].mxu0
        %2209 = vdwg.mxu0
        %v2211 = vsel %vm1709, %v2065, 0
        %2213 = vmatprep.subr.bf16.mxu0 0
        %2214 = vmatpush1.bf16.msra.mxu0 %v859
        %2215 = vmatprep.subr.bf16.mxu0 0
        %2216 = vmatpush1.bf16.msra.mxu0 0
        %2217 = vmatprep.subr.bf16.mxu0 0
        %2218 = vmatpush1.bf16.msra.mxu0 0
        %2219 = vmatprep.subr.bf16.mxu0 0
        %2220 = vmatpush1.bf16.msra.mxu0 0
        %2221 = vmatprep.subr.bf16.mxu0 0
        %2222 = vmatpush1.bf16.msra.mxu0 0
        %2223 = vmatprep.subr.bf16.mxu0 0
        %2224 = vmatpush1.bf16.msra.mxu0 0
        %2225 = vmatprep.subr.bf16.mxu0 0
        %2226 = vmatpush1.bf16.msra.mxu0 0
        %2227 = vmatprep.subr.bf16.mxu0 0
        %2228 = vmatpush1.bf16.msra.mxu0 0
        %2229 = vmatprep.subr.bf16.mxu0 0
        %2230 = vmatpush1.bf16.msra.mxu0 0
        %2231 = vmatprep.subr.bf16.mxu0 0
        %2232 = vmatpush1.bf16.msra.mxu0 0
        %2233 = vmatprep.subr.bf16.mxu0 0
        %2234 = vmatpush1.bf16.msra.mxu0 0
        %2235 = vmatprep.subr.bf16.mxu0 0
        %2236 = vmatpush1.bf16.msra.mxu0 0
        %2237 = vmatprep.subr.bf16.mxu0 0
        %2238 = vmatpush1.bf16.msra.mxu0 0
        %2239 = vmatprep.subr.bf16.mxu0 0
        %2240 = vmatpush1.bf16.msra.mxu0 0
        %2241 = vmatprep.subr.bf16.mxu0 0
        %2242 = vmatpush1.bf16.msra.mxu0 0
        %2243 = vmatprep.subr.bf16.mxu0 0
        %2244 = vmatpush1.bf16.msra.mxu0 0
        %2245 = vmatprep.mubr.bf16.mxu0 0
        %2246 = vmatmul.mubr.bf16.gmra.mrb[0].mxu0 %v2211
        %v2247 = vpop.f32.mrb[0].mxu0
        %v2248 = vadd.f32 0.0, %v2247
        %v2249 = vpop.f32.mrb[0].mxu0
        %v2250 = vpop.f32.mrb[0].mxu0
        %v2251 = vadd.f32 0.0, %v2250
        %v2252 = vpop.f32.mrb[0].mxu0
        %2253 = vdwg.mxu0
        %v2255 = vsel %vm1709, %v2066, 0
        %2257 = vmatprep.subr.bf16.mxu0 0
        %2258 = vmatpush1.bf16.msra.mxu0 %v921
        %2259 = vmatprep.subr.bf16.mxu0 0
        %2260 = vmatpush1.bf16.msra.mxu0 0
        %2261 = vmatprep.subr.bf16.mxu0 0
        %2262 = vmatpush1.bf16.msra.mxu0 0
        %2263 = vmatprep.subr.bf16.mxu0 0
        %2264 = vmatpush1.bf16.msra.mxu0 0
        %2265 = vmatprep.subr.bf16.mxu0 0
        %2266 = vmatpush1.bf16.msra.mxu0 0
        %2267 = vmatprep.subr.bf16.mxu0 0
        %2268 = vmatpush1.bf16.msra.mxu0 0
        %2269 = vmatprep.subr.bf16.mxu0 0
        %2270 = vmatpush1.bf16.msra.mxu0 0
        %2271 = vmatprep.subr.bf16.mxu0 0
        %2272 = vmatpush1.bf16.msra.mxu0 0
        %2273 = vmatprep.subr.bf16.mxu0 0
        %2274 = vmatpush1.bf16.msra.mxu0 0
        %2275 = vmatprep.subr.bf16.mxu0 0
        %2276 = vmatpush1.bf16.msra.mxu0 0
        %2277 = vmatprep.subr.bf16.mxu0 0
        %2278 = vmatpush1.bf16.msra.mxu0 0
        %2279 = vmatprep.subr.bf16.mxu0 0
        %2280 = vmatpush1.bf16.msra.mxu0 0
        %2281 = vmatprep.subr.bf16.mxu0 0
        %2282 = vmatpush1.bf16.msra.mxu0 0
        %2283 = vmatprep.subr.bf16.mxu0 0
        %2284 = vmatpush1.bf16.msra.mxu0 0
        %2285 = vmatprep.subr.bf16.mxu0 0
        %2286 = vmatpush1.bf16.msra.mxu0 0
        %2287 = vmatprep.subr.bf16.mxu0 0
        %2288 = vmatpush1.bf16.msra.mxu0 0
        %2289 = vmatprep.mubr.bf16.mxu0 0
        %2290 = vmatmul.mubr.bf16.gmra.mrb[0].mxu0 %v2255
        %v2291 = vpop.f32.mrb[0].mxu0
        %v2292 = vadd.f32 0.0, %v2291
        %v2293 = vpop.f32.mrb[0].mxu0
        %v2294 = vpop.f32.mrb[0].mxu0
        %v2295 = vadd.f32 0.0, %v2294
        %v2296 = vpop.f32.mrb[0].mxu0
        %2297 = vdwg.mxu0
        %v2299 = vsel %vm1709, %v2067, 0
        %2301 = vmatprep.subr.bf16.mxu0 0
        %2302 = vmatpush1.bf16.msra.mxu0 %v923
        %2303 = vmatprep.subr.bf16.mxu0 0
        %2304 = vmatpush1.bf16.msra.mxu0 0
        %2305 = vmatprep.subr.bf16.mxu0 0
        %2306 = vmatpush1.bf16.msra.mxu0 0
        %2307 = vmatprep.subr.bf16.mxu0 0
        %2308 = vmatpush1.bf16.msra.mxu0 0
        %2309 = vmatprep.subr.bf16.mxu0 0
        %2310 = vmatpush1.bf16.msra.mxu0 0
        %2311 = vmatprep.subr.bf16.mxu0 0
        %2312 = vmatpush1.bf16.msra.mxu0 0
        %2313 = vmatprep.subr.bf16.mxu0 0
        %2314 = vmatpush1.bf16.msra.mxu0 0
        %2315 = vmatprep.subr.bf16.mxu0 0
        %2316 = vmatpush1.bf16.msra.mxu0 0
        %2317 = vmatprep.subr.bf16.mxu0 0
        %2318 = vmatpush1.bf16.msra.mxu0 0
        %2319 = vmatprep.subr.bf16.mxu0 0
        %2320 = vmatpush1.bf16.msra.mxu0 0
        %2321 = vmatprep.subr.bf16.mxu0 0
        %2322 = vmatpush1.bf16.msra.mxu0 0
        %2323 = vmatprep.subr.bf16.mxu0 0
        %2324 = vmatpush1.bf16.msra.mxu0 0
        %2325 = vmatprep.subr.bf16.mxu0 0
        %2326 = vmatpush1.bf16.msra.mxu0 0
        %2327 = vmatprep.subr.bf16.mxu0 0
        %2328 = vmatpush1.bf16.msra.mxu0 0
        %2329 = vmatprep.subr.bf16.mxu0 0
        %2330 = vmatpush1.bf16.msra.mxu0 0
        %2331 = vmatprep.subr.bf16.mxu0 0
        %2332 = vmatpush1.bf16.msra.mxu0 0
        %2333 = vmatprep.mubr.bf16.mxu0 0
        %2334 = vmatmul.mubr.bf16.gmra.mrb[0].mxu0 %v2299
        %v2335 = vpop.f32.mrb[0].mxu0
        %v2336 = vadd.f32 0.0, %v2335
        %v2337 = vpop.f32.mrb[0].mxu0
        %v2338 = vpop.f32.mrb[0].mxu0
        %v2339 = vadd.f32 0.0, %v2338
        %v2340 = vpop.f32.mrb[0].mxu0
        %2341 = vdwg.mxu0
        %v2343 = vsel %vm1709, %v2068, 0
        %2345 = vmatprep.subr.bf16.mxu0 0
        %2346 = vmatpush1.bf16.msra.mxu0 %v925
        %2347 = vmatprep.subr.bf16.mxu0 0
        %2348 = vmatpush1.bf16.msra.mxu0 0
        %2349 = vmatprep.subr.bf16.mxu0 0
        %2350 = vmatpush1.bf16.msra.mxu0 0
        %2351 = vmatprep.subr.bf16.mxu0 0
        %2352 = vmatpush1.bf16.msra.mxu0 0
        %2353 = vmatprep.subr.bf16.mxu0 0
        %2354 = vmatpush1.bf16.msra.mxu0 0
        %2355 = vmatprep.subr.bf16.mxu0 0
        %2356 = vmatpush1.bf16.msra.mxu0 0
        %2357 = vmatprep.subr.bf16.mxu0 0
        %2358 = vmatpush1.bf16.msra.mxu0 0
        %2359 = vmatprep.subr.bf16.mxu0 0
        %2360 = vmatpush1.bf16.msra.mxu0 0
        %2361 = vmatprep.subr.bf16.mxu0 0
        %2362 = vmatpush1.bf16.msra.mxu0 0
        %2363 = vmatprep.subr.bf16.mxu0 0
        %2364 = vmatpush1.bf16.msra.mxu0 0
        %2365 = vmatprep.subr.bf16.mxu0 0
        %2366 = vmatpush1.bf16.msra.mxu0 0
        %2367 = vmatprep.subr.bf16.mxu0 0
        %2368 = vmatpush1.bf16.msra.mxu0 0
        %2369 = vmatprep.subr.bf16.mxu0 0
        %2370 = vmatpush1.bf16.msra.mxu0 0
        %2371 = vmatprep.subr.bf16.mxu0 0
        %2372 = vmatpush1.bf16.msra.mxu0 0
        %2373 = vmatprep.subr.bf16.mxu0 0
        %2374 = vmatpush1.bf16.msra.mxu0 0
        %2375 = vmatprep.subr.bf16.mxu0 0
        %2376 = vmatpush1.bf16.msra.mxu0 0
        %2377 = vmatprep.mubr.bf16.mxu0 0
        %2378 = vmatmul.mubr.bf16.gmra.mrb[0].mxu0 %v2343
        %v2379 = vpop.f32.mrb[0].mxu0
        %v2380 = vadd.f32 0.0, %v2379
        %v2381 = vpop.f32.mrb[0].mxu0
        %v2382 = vpop.f32.mrb[0].mxu0
        %v2383 = vadd.f32 0.0, %v2382
        %v2384 = vpop.f32.mrb[0].mxu0
        %2385 = vdwg.mxu0
        %v2387 = vsel %vm1709, %v2069, 0
        %2389 = vmatprep.subr.bf16.mxu0 0
        %2390 = vmatpush1.bf16.msra.mxu0 %v927
        %2391 = vmatprep.subr.bf16.mxu0 0
        %2392 = vmatpush1.bf16.msra.mxu0 0
        %2393 = vmatprep.subr.bf16.mxu0 0
        %2394 = vmatpush1.bf16.msra.mxu0 0
        %2395 = vmatprep.subr.bf16.mxu0 0
        %2396 = vmatpush1.bf16.msra.mxu0 0
        %2397 = vmatprep.subr.bf16.mxu0 0
        %2398 = vmatpush1.bf16.msra.mxu0 0
        %2399 = vmatprep.subr.bf16.mxu0 0
        %2400 = vmatpush1.bf16.msra.mxu0 0
        %2401 = vmatprep.subr.bf16.mxu0 0
        %2402 = vmatpush1.bf16.msra.mxu0 0
        %2403 = vmatprep.subr.bf16.mxu0 0
        %2404 = vmatpush1.bf16.msra.mxu0 0
        %2405 = vmatprep.subr.bf16.mxu0 0
        %2406 = vmatpush1.bf16.msra.mxu0 0
        %2407 = vmatprep.subr.bf16.mxu0 0
        %2408 = vmatpush1.bf16.msra.mxu0 0
        %2409 = vmatprep.subr.bf16.mxu0 0
        %2410 = vmatpush1.bf16.msra.mxu0 0
        %2411 = vmatprep.subr.bf16.mxu0 0
        %2412 = vmatpush1.bf16.msra.mxu0 0
        %2413 = vmatprep.subr.bf16.mxu0 0
        %2414 = vmatpush1.bf16.msra.mxu0 0
        %2415 = vmatprep.subr.bf16.mxu0 0
        %2416 = vmatpush1.bf16.msra.mxu0 0
        %2417 = vmatprep.subr.bf16.mxu0 0
        %2418 = vmatpush1.bf16.msra.mxu0 0
        %2419 = vmatprep.subr.bf16.mxu0 0
        %2420 = vmatpush1.bf16.msra.mxu0 0
        %2421 = vmatprep.mubr.bf16.mxu0 0
        %2422 = vmatmul.mubr.bf16.gmra.mrb[0].mxu0 %v2387
        %v2423 = vpop.f32.mrb[0].mxu0
        %v2424 = vadd.f32 0.0, %v2423
        %v2425 = vpop.f32.mrb[0].mxu0
        %v2426 = vpop.f32.mrb[0].mxu0
        %v2427 = vadd.f32 0.0, %v2426
        %v2428 = vpop.f32.mrb[0].mxu0
        %2429 = vdwg.mxu0
        %v2431 = vsel %vm1709, %v2070, 0
        %2433 = vmatprep.subr.bf16.mxu0 0
        %2434 = vmatpush1.bf16.msra.mxu0 %v933
        %2435 = vmatprep.subr.bf16.mxu0 0
        %2436 = vmatpush1.bf16.msra.mxu0 0
        %2437 = vmatprep.subr.bf16.mxu0 0
        %2438 = vmatpush1.bf16.msra.mxu0 0
        %2439 = vmatprep.subr.bf16.mxu0 0
        %2440 = vmatpush1.bf16.msra.mxu0 0
        %2441 = vmatprep.subr.bf16.mxu0 0
        %2442 = vmatpush1.bf16.msra.mxu0 0
        %2443 = vmatprep.subr.bf16.mxu0 0
        %2444 = vmatpush1.bf16.msra.mxu0 0
        %2445 = vmatprep.subr.bf16.mxu0 0
        %2446 = vmatpush1.bf16.msra.mxu0 0
        %2447 = vmatprep.subr.bf16.mxu0 0
        %2448 = vmatpush1.bf16.msra.mxu0 0
        %2449 = vmatprep.subr.bf16.mxu0 0
        %2450 = vmatpush1.bf16.msra.mxu0 0
        %2451 = vmatprep.subr.bf16.mxu0 0
        %2452 = vmatpush1.bf16.msra.mxu0 0
        %2453 = vmatprep.subr.bf16.mxu0 0
        %2454 = vmatpush1.bf16.msra.mxu0 0
        %2455 = vmatprep.subr.bf16.mxu0 0
        %2456 = vmatpush1.bf16.msra.mxu0 0
        %2457 = vmatprep.subr.bf16.mxu0 0
        %2458 = vmatpush1.bf16.msra.mxu0 0
        %2459 = vmatprep.subr.bf16.mxu0 0
        %2460 = vmatpush1.bf16.msra.mxu0 0
        %2461 = vmatprep.subr.bf16.mxu0 0
        %2462 = vmatpush1.bf16.msra.mxu0 0
        %2463 = vmatprep.subr.bf16.mxu0 0
        %2464 = vmatpush1.bf16.msra.mxu0 0
        %2465 = vmatprep.mubr.bf16.mxu0 0
        %2466 = vmatmul.mubr.bf16.gmra.mrb[0].mxu0 %v2431
        %v2467 = vpop.f32.mrb[0].mxu0
        %v2468 = vadd.f32 0.0, %v2467
        %v2469 = vpop.f32.mrb[0].mxu0
        %v2470 = vpop.f32.mrb[0].mxu0
        %v2471 = vadd.f32 0.0, %v2470
        %v2472 = vpop.f32.mrb[0].mxu0
        %2473 = vdwg.mxu0
        %v2475 = vsel %vm1709, %v2071, 0
        %2477 = vmatprep.subr.bf16.mxu0 0
        %2478 = vmatpush1.bf16.msra.mxu0 %v935
        %2479 = vmatprep.subr.bf16.mxu0 0
        %2480 = vmatpush1.bf16.msra.mxu0 0
        %2481 = vmatprep.subr.bf16.mxu0 0
        %2482 = vmatpush1.bf16.msra.mxu0 0
        %2483 = vmatprep.subr.bf16.mxu0 0
        %2484 = vmatpush1.bf16.msra.mxu0 0
        %2485 = vmatprep.subr.bf16.mxu0 0
        %2486 = vmatpush1.bf16.msra.mxu0 0
        %2487 = vmatprep.subr.bf16.mxu0 0
        %2488 = vmatpush1.bf16.msra.mxu0 0
        %2489 = vmatprep.subr.bf16.mxu0 0
        %2490 = vmatpush1.bf16.msra.mxu0 0
        %2491 = vmatprep.subr.bf16.mxu0 0
        %2492 = vmatpush1.bf16.msra.mxu0 0
        %2493 = vmatprep.subr.bf16.mxu0 0
        %2494 = vmatpush1.bf16.msra.mxu0 0
        %2495 = vmatprep.subr.bf16.mxu0 0
        %2496 = vmatpush1.bf16.msra.mxu0 0
        %2497 = vmatprep.subr.bf16.mxu0 0
        %2498 = vmatpush1.bf16.msra.mxu0 0
        %2499 = vmatprep.subr.bf16.mxu0 0
        %2500 = vmatpush1.bf16.msra.mxu0 0
        %2501 = vmatprep.subr.bf16.mxu0 0
        %2502 = vmatpush1.bf16.msra.mxu0 0
        %2503 = vmatprep.subr.bf16.mxu0 0
        %2504 = vmatpush1.bf16.msra.mxu0 0
        %2505 = vmatprep.subr.bf16.mxu0 0
        %2506 = vmatpush1.bf16.msra.mxu0 0
        %2507 = vmatprep.subr.bf16.mxu0 0
        %2508 = vmatpush1.bf16.msra.mxu0 0
        %2509 = vmatprep.mubr.bf16.mxu0 0
        %2510 = vmatmul.mubr.bf16.gmra.mrb[0].mxu0 %v2475
        %v2511 = vpop.f32.mrb[0].mxu0
        %v2512 = vadd.f32 0.0, %v2511
        %v2513 = vpop.f32.mrb[0].mxu0
        %v2514 = vpop.f32.mrb[0].mxu0
        %v2515 = vadd.f32 0.0, %v2514
        %v2516 = vpop.f32.mrb[0].mxu0
        %2517 = vdwg.mxu0
        %v2519 = vsel %vm1709, %v2072, 0
        %2521 = vmatprep.subr.bf16.mxu0 0
        %2522 = vmatpush1.bf16.msra.mxu0 %v937
        %2523 = vmatprep.subr.bf16.mxu0 0
        %2524 = vmatpush1.bf16.msra.mxu0 0
        %2525 = vmatprep.subr.bf16.mxu0 0
        %2526 = vmatpush1.bf16.msra.mxu0 0
        %2527 = vmatprep.subr.bf16.mxu0 0
        %2528 = vmatpush1.bf16.msra.mxu0 0
        %2529 = vmatprep.subr.bf16.mxu0 0
        %2530 = vmatpush1.bf16.msra.mxu0 0
        %2531 = vmatprep.subr.bf16.mxu0 0
        %2532 = vmatpush1.bf16.msra.mxu0 0
        %2533 = vmatprep.subr.bf16.mxu0 0
        %2534 = vmatpush1.bf16.msra.mxu0 0
        %2535 = vmatprep.subr.bf16.mxu0 0
        %2536 = vmatpush1.bf16.msra.mxu0 0
        %2537 = vmatprep.subr.bf16.mxu0 0
        %2538 = vmatpush1.bf16.msra.mxu0 0
        %2539 = vmatprep.subr.bf16.mxu0 0
        %2540 = vmatpush1.bf16.msra.mxu0 0
        %2541 = vmatprep.subr.bf16.mxu0 0
        %2542 = vmatpush1.bf16.msra.mxu0 0
        %2543 = vmatprep.subr.bf16.mxu0 0
        %2544 = vmatpush1.bf16.msra.mxu0 0
        %2545 = vmatprep.subr.bf16.mxu0 0
        %2546 = vmatpush1.bf16.msra.mxu0 0
        %2547 = vmatprep.subr.bf16.mxu0 0
        %2548 = vmatpush1.bf16.msra.mxu0 0
        %2549 = vmatprep.subr.bf16.mxu0 0
        %2550 = vmatpush1.bf16.msra.mxu0 0
        %2551 = vmatprep.subr.bf16.mxu0 0
        %2552 = vmatpush1.bf16.msra.mxu0 0
        %2553 = vmatprep.mubr.bf16.mxu0 0
        %2554 = vmatmul.mubr.bf16.gmra.mrb[0].mxu0 %v2519
        %v2555 = vpop.f32.mrb[0].mxu0
        %v2556 = vadd.f32 0.0, %v2555
        %v2557 = vpop.f32.mrb[0].mxu0
        %v2558 = vpop.f32.mrb[0].mxu0
        %v2559 = vadd.f32 0.0, %v2558
        %v2560 = vpop.f32.mrb[0].mxu0
        %2561 = vdwg.mxu0
        %v2563 = vsel %vm1709, %v2073, 0
        %2565 = vmatprep.subr.bf16.mxu0 0
        %2566 = vmatpush1.bf16.msra.mxu0 %v939
        %2567 = vmatprep.subr.bf16.mxu0 0
        %2568 = vmatpush1.bf16.msra.mxu0 0
        %2569 = vmatprep.subr.bf16.mxu0 0
        %2570 = vmatpush1.bf16.msra.mxu0 0
        %2571 = vmatprep.subr.bf16.mxu0 0
        %2572 = vmatpush1.bf16.msra.mxu0 0
        %2573 = vmatprep.subr.bf16.mxu0 0
        %2574 = vmatpush1.bf16.msra.mxu0 0
        %2575 = vmatprep.subr.bf16.mxu0 0
        %2576 = vmatpush1.bf16.msra.mxu0 0
        %2577 = vmatprep.subr.bf16.mxu0 0
        %2578 = vmatpush1.bf16.msra.mxu0 0
        %2579 = vmatprep.subr.bf16.mxu0 0
        %2580 = vmatpush1.bf16.msra.mxu0 0
        %2581 = vmatprep.subr.bf16.mxu0 0
        %2582 = vmatpush1.bf16.msra.mxu0 0
        %2583 = vmatprep.subr.bf16.mxu0 0
        %2584 = vmatpush1.bf16.msra.mxu0 0
        %2585 = vmatprep.subr.bf16.mxu0 0
        %2586 = vmatpush1.bf16.msra.mxu0 0
        %2587 = vmatprep.subr.bf16.mxu0 0
        %2588 = vmatpush1.bf16.msra.mxu0 0
        %2589 = vmatprep.subr.bf16.mxu0 0
        %2590 = vmatpush1.bf16.msra.mxu0 0
        %2591 = vmatprep.subr.bf16.mxu0 0
        %2592 = vmatpush1.bf16.msra.mxu0 0
        %2593 = vmatprep.subr.bf16.mxu0 0
        %2594 = vmatpush1.bf16.msra.mxu0 0
        %2595 = vmatprep.subr.bf16.mxu0 0
        %2596 = vmatpush1.bf16.msra.mxu0 0
        %2597 = vmatprep.mubr.bf16.mxu0 0
        %2598 = vmatmul.mubr.bf16.gmra.mrb[0].mxu0 %v2563
        %v2599 = vpop.f32.mrb[0].mxu0
        %v2600 = vadd.f32 0.0, %v2599
        %v2601 = vpop.f32.mrb[0].mxu0
        %v2602 = vpop.f32.mrb[0].mxu0
        %v2603 = vadd.f32 0.0, %v2602
        %v2604 = vpop.f32.mrb[0].mxu0
        %2605 = vdwg.mxu0
        %v2607 = vsel %vm1709, %v2074, 0
        %2609 = vmatprep.subr.bf16.mxu0 0
        %2610 = vmatpush1.bf16.msra.mxu0 %v945
        %2611 = vmatprep.subr.bf16.mxu0 0
        %2612 = vmatpush1.bf16.msra.mxu0 0
        %2613 = vmatprep.subr.bf16.mxu0 0
        %2614 = vmatpush1.bf16.msra.mxu0 0
        %2615 = vmatprep.subr.bf16.mxu0 0
        %2616 = vmatpush1.bf16.msra.mxu0 0
        %2617 = vmatprep.subr.bf16.mxu0 0
        %2618 = vmatpush1.bf16.msra.mxu0 0
        %2619 = vmatprep.subr.bf16.mxu0 0
        %2620 = vmatpush1.bf16.msra.mxu0 0
        %2621 = vmatprep.subr.bf16.mxu0 0
        %2622 = vmatpush1.bf16.msra.mxu0 0
        %2623 = vmatprep.subr.bf16.mxu0 0
        %2624 = vmatpush1.bf16.msra.mxu0 0
        %2625 = vmatprep.subr.bf16.mxu0 0
        %2626 = vmatpush1.bf16.msra.mxu0 0
        %2627 = vmatprep.subr.bf16.mxu0 0
        %2628 = vmatpush1.bf16.msra.mxu0 0
        %2629 = vmatprep.subr.bf16.mxu0 0
        %2630 = vmatpush1.bf16.msra.mxu0 0
        %2631 = vmatprep.subr.bf16.mxu0 0
        %2632 = vmatpush1.bf16.msra.mxu0 0
        %2633 = vmatprep.subr.bf16.mxu0 0
        %2634 = vmatpush1.bf16.msra.mxu0 0
        %2635 = vmatprep.subr.bf16.mxu0 0
        %2636 = vmatpush1.bf16.msra.mxu0 0
        %2637 = vmatprep.subr.bf16.mxu0 0
        %2638 = vmatpush1.bf16.msra.mxu0 0
        %2639 = vmatprep.subr.bf16.mxu0 0
        %2640 = vmatpush1.bf16.msra.mxu0 0
        %2641 = vmatprep.mubr.bf16.mxu0 0
        %2642 = vmatmul.mubr.bf16.gmra.mrb[0].mxu0 %v2607
        %v2643 = vpop.f32.mrb[0].mxu0
        %v2644 = vadd.f32 0.0, %v2643
        %v2645 = vpop.f32.mrb[0].mxu0
        %v2646 = vpop.f32.mrb[0].mxu0
        %v2647 = vadd.f32 0.0, %v2646
        %v2648 = vpop.f32.mrb[0].mxu0
        %2649 = vdwg.mxu0
        %v2651 = vsel %vm1709, %v2075, 0
        %2653 = vmatprep.subr.bf16.mxu0 0
        %2654 = vmatpush1.bf16.msra.mxu0 %v947
        %2655 = vmatprep.subr.bf16.mxu0 0
        %2656 = vmatpush1.bf16.msra.mxu0 0
        %2657 = vmatprep.subr.bf16.mxu0 0
        %2658 = vmatpush1.bf16.msra.mxu0 0
        %2659 = vmatprep.subr.bf16.mxu0 0
        %2660 = vmatpush1.bf16.msra.mxu0 0
        %2661 = vmatprep.subr.bf16.mxu0 0
        %2662 = vmatpush1.bf16.msra.mxu0 0
        %2663 = vmatprep.subr.bf16.mxu0 0
        %2664 = vmatpush1.bf16.msra.mxu0 0
        %2665 = vmatprep.subr.bf16.mxu0 0
        %2666 = vmatpush1.bf16.msra.mxu0 0
        %2667 = vmatprep.subr.bf16.mxu0 0
        %2668 = vmatpush1.bf16.msra.mxu0 0
        %2669 = vmatprep.subr.bf16.mxu0 0
        %2670 = vmatpush1.bf16.msra.mxu0 0
        %2671 = vmatprep.subr.bf16.mxu0 0
        %2672 = vmatpush1.bf16.msra.mxu0 0
        %2673 = vmatprep.subr.bf16.mxu0 0
        %2674 = vmatpush1.bf16.msra.mxu0 0
        %2675 = vmatprep.subr.bf16.mxu0 0
        %2676 = vmatpush1.bf16.msra.mxu0 0
        %2677 = vmatprep.subr.bf16.mxu0 0
        %2678 = vmatpush1.bf16.msra.mxu0 0
        %2679 = vmatprep.subr.bf16.mxu0 0
        %2680 = vmatpush1.bf16.msra.mxu0 0
        %2681 = vmatprep.subr.bf16.mxu0 0
        %2682 = vmatpush1.bf16.msra.mxu0 0
        %2683 = vmatprep.subr.bf16.mxu0 0
        %2684 = vmatpush1.bf16.msra.mxu0 0
        %2685 = vmatprep.mubr.bf16.mxu0 0
        %2686 = vmatmul.mubr.bf16.gmra.mrb[0].mxu0 %v2651
        %v2687 = vpop.f32.mrb[0].mxu0
        %v2688 = vadd.f32 0.0, %v2687
        %v2689 = vpop.f32.mrb[0].mxu0
        %v2690 = vpop.f32.mrb[0].mxu0
        %v2691 = vadd.f32 0.0, %v2690
        %v2692 = vpop.f32.mrb[0].mxu0
        %2693 = vdwg.mxu0
        %v2695 = vsel %vm1709, %v2076, 0
        %2697 = vmatprep.subr.bf16.mxu0 0
        %2698 = vmatpush1.bf16.msra.mxu0 %v949
        %2699 = vmatprep.subr.bf16.mxu0 0
        %2700 = vmatpush1.bf16.msra.mxu0 0
        %2701 = vmatprep.subr.bf16.mxu0 0
        %2702 = vmatpush1.bf16.msra.mxu0 0
        %2703 = vmatprep.subr.bf16.mxu0 0
        %2704 = vmatpush1.bf16.msra.mxu0 0
        %2705 = vmatprep.subr.bf16.mxu0 0
        %2706 = vmatpush1.bf16.msra.mxu0 0
        %2707 = vmatprep.subr.bf16.mxu0 0
        %2708 = vmatpush1.bf16.msra.mxu0 0
        %2709 = vmatprep.subr.bf16.mxu0 0
        %2710 = vmatpush1.bf16.msra.mxu0 0
        %2711 = vmatprep.subr.bf16.mxu0 0
        %2712 = vmatpush1.bf16.msra.mxu0 0
        %2713 = vmatprep.subr.bf16.mxu0 0
        %2714 = vmatpush1.bf16.msra.mxu0 0
        %2715 = vmatprep.subr.bf16.mxu0 0
        %2716 = vmatpush1.bf16.msra.mxu0 0
        %2717 = vmatprep.subr.bf16.mxu0 0
        %2718 = vmatpush1.bf16.msra.mxu0 0
        %2719 = vmatprep.subr.bf16.mxu0 0
        %2720 = vmatpush1.bf16.msra.mxu0 0
        %2721 = vmatprep.subr.bf16.mxu0 0
        %2722 = vmatpush1.bf16.msra.mxu0 0
        %2723 = vmatprep.subr.bf16.mxu0 0
        %2724 = vmatpush1.bf16.msra.mxu0 0
        %2725 = vmatprep.subr.bf16.mxu0 0
        %2726 = vmatpush1.bf16.msra.mxu0 0
        %2727 = vmatprep.subr.bf16.mxu0 0
        %2728 = vmatpush1.bf16.msra.mxu0 0
        %2729 = vmatprep.mubr.bf16.mxu0 0
        %2730 = vmatmul.mubr.bf16.gmra.mrb[0].mxu0 %v2695
        %v2731 = vpop.f32.mrb[0].mxu0
        %v2732 = vadd.f32 0.0, %v2731
        %v2733 = vpop.f32.mrb[0].mxu0
        %v2734 = vpop.f32.mrb[0].mxu0
        %v2735 = vadd.f32 0.0, %v2734
        %v2736 = vpop.f32.mrb[0].mxu0
        %2737 = vdwg.mxu0
        %v2739 = vsel %vm1709, %v2077, 0
        %2741 = vmatprep.subr.bf16.mxu0 0
        %2742 = vmatpush1.bf16.msra.mxu0 %v951
        %2743 = vmatprep.subr.bf16.mxu0 0
        %2744 = vmatpush1.bf16.msra.mxu0 0
        %2745 = vmatprep.subr.bf16.mxu0 0
        %2746 = vmatpush1.bf16.msra.mxu0 0
        %2747 = vmatprep.subr.bf16.mxu0 0
        %2748 = vmatpush1.bf16.msra.mxu0 0
        %2749 = vmatprep.subr.bf16.mxu0 0
        %2750 = vmatpush1.bf16.msra.mxu0 0
        %2751 = vmatprep.subr.bf16.mxu0 0
        %2752 = vmatpush1.bf16.msra.mxu0 0
        %2753 = vmatprep.subr.bf16.mxu0 0
        %2754 = vmatpush1.bf16.msra.mxu0 0
        %2755 = vmatprep.subr.bf16.mxu0 0
        %2756 = vmatpush1.bf16.msra.mxu0 0
        %2757 = vmatprep.subr.bf16.mxu0 0
        %2758 = vmatpush1.bf16.msra.mxu0 0
        %2759 = vmatprep.subr.bf16.mxu0 0
        %2760 = vmatpush1.bf16.msra.mxu0 0
        %2761 = vmatprep.subr.bf16.mxu0 0
        %2762 = vmatpush1.bf16.msra.mxu0 0
        %2763 = vmatprep.subr.bf16.mxu0 0
        %2764 = vmatpush1.bf16.msra.mxu0 0
        %2765 = vmatprep.subr.bf16.mxu0 0
        %2766 = vmatpush1.bf16.msra.mxu0 0
        %2767 = vmatprep.subr.bf16.mxu0 0
        %2768 = vmatpush1.bf16.msra.mxu0 0
        %2769 = vmatprep.subr.bf16.mxu0 0
        %2770 = vmatpush1.bf16.msra.mxu0 0
        %2771 = vmatprep.subr.bf16.mxu0 0
        %2772 = vmatpush1.bf16.msra.mxu0 0
        %2773 = vmatprep.mubr.bf16.mxu0 0
        %2774 = vmatmul.mubr.bf16.gmra.mrb[0].mxu0 %v2739
        %v2775 = vpop.f32.mrb[0].mxu0
        %v2776 = vadd.f32 0.0, %v2775
        %v2777 = vpop.f32.mrb[0].mxu0
        %v2778 = vpop.f32.mrb[0].mxu0
        %v2779 = vadd.f32 0.0, %v2778
        %v2780 = vpop.f32.mrb[0].mxu0
        %2781 = vdwg.mxu0
        %2782 = vst.msk [vmem:[#allocation2] sm:$0xff] %vm956, %v2116
        %2783 = vst.msk [vmem:[#allocation2 + $0x8] sm:$0xff] %vm956, %v2119
        %2784 = vst.msk [vmem:[#allocation2 + $0x10] sm:$0xff] %vm956, %v2160
        %2785 = vst.msk [vmem:[#allocation2 + $0x18] sm:$0xff] %vm956, %v2163
        %2786 = vst.msk [vmem:[#allocation2 + $0x20] sm:$0xff] %vm956, %v2204
        %2787 = vst.msk [vmem:[#allocation2 + $0x28] sm:$0xff] %vm956, %v2207
        %2788 = vst.msk [vmem:[#allocation2 + $0x30] sm:$0xff] %vm956, %v2248
        %2789 = vst.msk [vmem:[#allocation2 + $0x38] sm:$0xff] %vm956, %v2251
        %2798 = vrot.lane.b32.xlu0 %v2292, 32
        %v2799 = vpop.permute.xlu0 %2798
        %2800 = vrot.lane.b32.xlu0 %v2295, 32
        %v2801 = vpop.permute.xlu0 %2800
        %2802 = vrot.lane.b32.xlu0 %v2336, 32
        %v2803 = vpop.permute.xlu0 %2802
        %2804 = vrot.lane.b32.xlu0 %v2339, 32
        %v2805 = vpop.permute.xlu0 %2804
        %2806 = vrot.lane.b32.xlu0 %v2380, 32
        %v2807 = vpop.permute.xlu0 %2806
        %2808 = vrot.lane.b32.xlu0 %v2383, 32
        %v2809 = vpop.permute.xlu0 %2808
        %2810 = vrot.lane.b32.xlu0 %v2424, 32
        %v2811 = vpop.permute.xlu0 %2810
        %2812 = vrot.lane.b32.xlu0 %v2427, 32
        %v2813 = vpop.permute.xlu0 %2812
        %vm2822 = vcmask 523520
        %2823 = vst.msk [vmem:[#allocation2] sm:$0xff] %vm2822, %v2799
        %2824 = vst.msk [vmem:[#allocation2 + $0x8] sm:$0xff] %vm2822, %v2801
        %2825 = vst.msk [vmem:[#allocation2 + $0x10] sm:$0xff] %vm2822, %v2803
        %2826 = vst.msk [vmem:[#allocation2 + $0x18] sm:$0xff] %vm2822, %v2805
        %2827 = vst.msk [vmem:[#allocation2 + $0x20] sm:$0xff] %vm2822, %v2807
        %2828 = vst.msk [vmem:[#allocation2 + $0x28] sm:$0xff] %vm2822, %v2809
        %2829 = vst.msk [vmem:[#allocation2 + $0x30] sm:$0xff] %vm2822, %v2811
        %2830 = vst.msk [vmem:[#allocation2 + $0x38] sm:$0xff] %vm2822, %v2813
        %2839 = vrot.lane.b32.xlu0 %v2468, 64
        %v2840 = vpop.permute.xlu0 %2839
        %2841 = vrot.lane.b32.xlu0 %v2471, 64
        %v2842 = vpop.permute.xlu0 %2841
        %2843 = vrot.lane.b32.xlu0 %v2512, 64
        %v2844 = vpop.permute.xlu0 %2843
        %2845 = vrot.lane.b32.xlu0 %v2515, 64
        %v2846 = vpop.permute.xlu0 %2845
        %2847 = vrot.lane.b32.xlu0 %v2556, 64
        %v2848 = vpop.permute.xlu0 %2847
        %2849 = vrot.lane.b32.xlu0 %v2559, 64
        %v2850 = vpop.permute.xlu0 %2849
        %2851 = vrot.lane.b32.xlu0 %v2600, 64
        %v2852 = vpop.permute.xlu0 %2851
        %2853 = vrot.lane.b32.xlu0 %v2603, 64
        %v2854 = vpop.permute.xlu0 %2853
        %vm2863 = vcmask 785920
        %2864 = vst.msk [vmem:[#allocation2] sm:$0xff] %vm2863, %v2840
        %2865 = vst.msk [vmem:[#allocation2 + $0x8] sm:$0xff] %vm2863, %v2842
        %2866 = vst.msk [vmem:[#allocation2 + $0x10] sm:$0xff] %vm2863, %v2844
        %2867 = vst.msk [vmem:[#allocation2 + $0x18] sm:$0xff] %vm2863, %v2846
        %2868 = vst.msk [vmem:[#allocation2 + $0x20] sm:$0xff] %vm2863, %v2848
        %2869 = vst.msk [vmem:[#allocation2 + $0x28] sm:$0xff] %vm2863, %v2850
        %2870 = vst.msk [vmem:[#allocation2 + $0x30] sm:$0xff] %vm2863, %v2852
        %2871 = vst.msk [vmem:[#allocation2 + $0x38] sm:$0xff] %vm2863, %v2854
        %2880 = vrot.lane.b32.xlu0 %v2644, 96
        %v2881 = vpop.permute.xlu0 %2880
        %2882 = vrot.lane.b32.xlu0 %v2647, 96
        %v2883 = vpop.permute.xlu0 %2882
        %2884 = vrot.lane.b32.xlu0 %v2688, 96
        %v2885 = vpop.permute.xlu0 %2884
        %2886 = vrot.lane.b32.xlu0 %v2691, 96
        %v2887 = vpop.permute.xlu0 %2886
        %2888 = vrot.lane.b32.xlu0 %v2732, 96
        %v2889 = vpop.permute.xlu0 %2888
        %2890 = vrot.lane.b32.xlu0 %v2735, 96
        %v2891 = vpop.permute.xlu0 %2890
        %2892 = vrot.lane.b32.xlu0 %v2776, 96
        %v2893 = vpop.permute.xlu0 %2892
        %2894 = vrot.lane.b32.xlu0 %v2779, 96
        %v2895 = vpop.permute.xlu0 %2894
        %vm2904 = vcmask 1048320
        %2905 = vst.msk [vmem:[#allocation2] sm:$0xff] %vm2904, %v2881
        %2906 = vst.msk [vmem:[#allocation2 + $0x8] sm:$0xff] %vm2904, %v2883
        %2907 = vst.msk [vmem:[#allocation2 + $0x10] sm:$0xff] %vm2904, %v2885
        %2908 = vst.msk [vmem:[#allocation2 + $0x18] sm:$0xff] %vm2904, %v2887
        %2909 = vst.msk [vmem:[#allocation2 + $0x20] sm:$0xff] %vm2904, %v2889
        %2910 = vst.msk [vmem:[#allocation2 + $0x28] sm:$0xff] %vm2904, %v2891
        %2911 = vst.msk [vmem:[#allocation2 + $0x30] sm:$0xff] %vm2904, %v2893
        %2912 = vst.msk [vmem:[#allocation2 + $0x38] sm:$0xff] %vm2904, %v2895
        %v2913 = vld [vmem:[#allocation2] sm:$0xff]
        %v2914 = vld [vmem:[#allocation2 + $0x8] sm:$0xff]
        %v2915 = vld [vmem:[#allocation2 + $0x10] sm:$0xff]
        %v2916 = vld [vmem:[#allocation2 + $0x18] sm:$0xff]
        %v2917 = vld [vmem:[#allocation2 + $0x20] sm:$0xff]
        %v2918 = vld [vmem:[#allocation2 + $0x28] sm:$0xff]
        %v2919 = vld [vmem:[#allocation2 + $0x30] sm:$0xff]
        %v2920 = vld [vmem:[#allocation2 + $0x38] sm:$0xff]
        %v2921 = vpack.c.bf16 %v2914, %v2913
        %v2922 = vpack.c.bf16 %v2916, %v2915
        %v2923 = vpack.c.bf16 %v2918, %v2917
        %v2924 = vpack.c.bf16 %v2920, %v2919
        %v2925 = vld [vmem:[%s3] sm:$0xf]
        %v2926 = vld [vmem:[%s3 + $0x4] sm:$0xf]
        %v2927 = vld [vmem:[%s3 + $0x8] sm:$0xf]
        %v2928 = vld [vmem:[%s3 + $0xc] sm:$0xf]
        %v2929 = vld [vmem:[%s3 + $0x10] sm:$0xf]
        %v2930 = vld [vmem:[%s3 + $0x14] sm:$0xf]
        %v2931 = vld [vmem:[%s3 + $0x18] sm:$0xf]
        %v2932 = vld [vmem:[%s3 + $0x1c] sm:$0xf]
        %v2933 = vld [vmem:[%s3 + $0x20] sm:$0xf]
        %v2934 = vld [vmem:[%s3 + $0x24] sm:$0xf]
        %v2935 = vld [vmem:[%s3 + $0x28] sm:$0xf]
        %v2936 = vld [vmem:[%s3 + $0x2c] sm:$0xf]
        %v2937 = vld [vmem:[%s3 + $0x30] sm:$0xf]
        %v2938 = vld [vmem:[%s3 + $0x34] sm:$0xf]
        %v2939 = vld [vmem:[%s3 + $0x38] sm:$0xf]
        %v2940 = vld [vmem:[%s3 + $0x3c] sm:$0xf]
        %v2941 = vld [vmem:[%s4] sm:$0x1]
        %v2943 = vlaneseq
        %v2944 = vshrl.u32 %v2943, 7
        %v2945 = vsub.s32 0, %v2944
        %v2946 = vrot.slane %v2941, %v2945
        %v2964 = vunpack.c.l.b16 %v2925
        %v2965 = vunpack.c.l.b16 %v2926
        %v2966 = vunpack.c.l.b16 %v2927
        %v2967 = vunpack.c.l.b16 %v2928
        %v2968 = vunpack.c.l.b16 %v2929
        %v2969 = vunpack.c.l.b16 %v2930
        %v2970 = vunpack.c.l.b16 %v2931
        %v2971 = vunpack.c.l.b16 %v2932
        %v2972 = vunpack.c.l.b16 %v2933
        %v2973 = vunpack.c.l.b16 %v2934
        %v2974 = vunpack.c.l.b16 %v2935
        %v2975 = vunpack.c.l.b16 %v2936
        %v2976 = vunpack.c.l.b16 %v2937
        %v2977 = vunpack.c.l.b16 %v2938
        %v2978 = vunpack.c.l.b16 %v2939
        %v2979 = vunpack.c.l.b16 %v2940
        %v2980 = vpack.c.b16 %v2965, %v2964
        %v2981 = vpack.c.b16 %v2967, %v2966
        %v2982 = vpack.c.b16 %v2969, %v2968
        %v2983 = vpack.c.b16 %v2971, %v2970
        %v2984 = vpack.c.b16 %v2973, %v2972
        %v2985 = vpack.c.b16 %v2975, %v2974
        %v2986 = vpack.c.b16 %v2977, %v2976
        %v2987 = vpack.c.b16 %v2979, %v2978
        %2996 = vmatprep.subr.bf16.mxu0 0
        %2997 = vmatpush1.bf16.msra.mxu0 %v2980
        %2998 = vmatprep.subr.bf16.mxu0 0
        %2999 = vmatpush1.bf16.msra.mxu0 %v2981
        %3000 = vmatprep.subr.bf16.mxu0 0
        %3001 = vmatpush1.bf16.msra.mxu0 %v2982
        %3002 = vmatprep.subr.bf16.mxu0 0
        %3003 = vmatpush1.bf16.msra.mxu0 %v2983
        %3004 = vmatprep.subr.bf16.mxu0 0
        %3005 = vmatpush1.bf16.msra.mxu0 %v2984
        %3006 = vmatprep.subr.bf16.mxu0 0
        %3007 = vmatpush1.bf16.msra.mxu0 %v2985
        %3008 = vmatprep.subr.bf16.mxu0 0
        %3009 = vmatpush1.bf16.msra.mxu0 %v2986
        %3010 = vmatprep.subr.bf16.mxu0 0
        %3011 = vmatpush1.bf16.msra.mxu0 %v2987
        %3012 = vmatprep.subr.bf16.mxu0 0
        %3013 = vmatpush1.bf16.msra.mxu0 0
        %3014 = vmatprep.subr.bf16.mxu0 0
        %3015 = vmatpush1.bf16.msra.mxu0 0
        %3016 = vmatprep.subr.bf16.mxu0 0
        %3017 = vmatpush1.bf16.msra.mxu0 0
        %3018 = vmatprep.subr.bf16.mxu0 0
        %3019 = vmatpush1.bf16.msra.mxu0 0
        %3020 = vmatprep.subr.bf16.mxu0 0
        %3021 = vmatpush1.bf16.msra.mxu0 0
        %3022 = vmatprep.subr.bf16.mxu0 0
        %3023 = vmatpush1.bf16.msra.mxu0 0
        %3024 = vmatprep.subr.bf16.mxu0 0
        %3025 = vmatpush1.bf16.msra.mxu0 0
        %3026 = vmatprep.subr.bf16.mxu0 0
        %3027 = vmatpush1.bf16.msra.mxu0 0
        %3028 = vmatprep.mubr.bf16.mxu0 0
        %3029 = vmatmul.mubr.bf16.gmra.mrb[0].mxu0 %v2921
        %v3030 = vpop.f32.mrb[0].mxu0
        %v3031 = vadd.f32 %v2946, %v3030
        %v3032 = vpop.f32.mrb[0].mxu0
        %v3033 = vpop.f32.mrb[0].mxu0
        %v3034 = vadd.f32 %v2946, %v3033
        %v3035 = vpop.f32.mrb[0].mxu0
        %3036 = vmatprep.mubr.bf16.mxu0 0
        %3037 = vmatmul.mubr.bf16.gmra.mrb[0].mxu0 %v2922
        %v3038 = vpop.f32.mrb[0].mxu0
        %v3039 = vadd.f32 %v2946, %v3038
        %v3040 = vpop.f32.mrb[0].mxu0
        %v3041 = vpop.f32.mrb[0].mxu0
        %v3042 = vadd.f32 %v2946, %v3041
        %v3043 = vpop.f32.mrb[0].mxu0
        %3044 = vmatprep.mubr.bf16.mxu0 0
        %3045 = vmatmul.mubr.bf16.gmra.mrb[0].mxu0 %v2923
        %v3046 = vpop.f32.mrb[0].mxu0
        %v3047 = vadd.f32 %v2946, %v3046
        %v3048 = vpop.f32.mrb[0].mxu0
        %v3049 = vpop.f32.mrb[0].mxu0
        %v3050 = vadd.f32 %v2946, %v3049
        %v3051 = vpop.f32.mrb[0].mxu0
        %3052 = vmatprep.mubr.bf16.mxu0 0
        %3053 = vmatmul.mubr.bf16.gmra.mrb[0].mxu0 %v2924
        %v3054 = vpop.f32.mrb[0].mxu0
        %v3055 = vadd.f32 %v2946, %v3054
        %v3056 = vpop.f32.mrb[0].mxu0
        %v3057 = vpop.f32.mrb[0].mxu0
        %v3058 = vadd.f32 %v2946, %v3057
        %v3059 = vpop.f32.mrb[0].mxu0
        %3060 = vdwg.mxu0
        %v3061 = vmul.f32 %v3031, %v428
        %v3062 = vmul.f32 %v3034, %v428
        %v3063 = vmul.f32 %v3039, %v432
        %v3064 = vmul.f32 %v3042, %v432
        %v3065 = vmul.f32 %v3047, %v428
        %v3066 = vmul.f32 %v3050, %v428
        %v3067 = vmul.f32 %v3055, %v432
        %v3068 = vmul.f32 %v3058, %v432
        %v3069 = vadd.f32 %v3061, %v399
        %v3070 = vadd.f32 %v3062, %v400
        %v3071 = vadd.f32 %v3063, %v401
        %v3072 = vadd.f32 %v3064, %v402
        %v3073 = vadd.f32 %v3065, %v403
        %v3074 = vadd.f32 %v3066, %v404
        %v3075 = vadd.f32 %v3067, %v405
        %v3076 = vadd.f32 %v3068, %v406
        %3077 = vadd.xlane.f32.xlu0 %v3069
        %v3078 = vpop.xlane.xlu0 %3077
        %3079 = vadd.xlane.f32.xlu0 %v3070
        %v3080 = vpop.xlane.xlu0 %3079
        %3081 = vadd.xlane.f32.xlu0 %v3071
        %v3082 = vpop.xlane.xlu0 %3081
        %3083 = vadd.xlane.f32.xlu0 %v3072
        %v3084 = vpop.xlane.xlu0 %3083
        %3085 = vadd.xlane.f32.xlu0 %v3073
        %v3086 = vpop.xlane.xlu0 %3085
        %3087 = vadd.xlane.f32.xlu0 %v3074
        %v3088 = vpop.xlane.xlu0 %3087
        %3089 = vadd.xlane.f32.xlu0 %v3075
        %v3090 = vpop.xlane.xlu0 %3089
        %3091 = vadd.xlane.f32.xlu0 %v3076
        %v3092 = vpop.xlane.xlu0 %3091
        %v3093 = vmul.f32 %v3078, %v449
        %v3094 = vmul.f32 %v3080, %v449
        %v3095 = vmul.f32 %v3082, %v449
        %v3096 = vmul.f32 %v3084, %v449
        %v3097 = vmul.f32 %v3086, %v449
        %v3098 = vmul.f32 %v3088, %v449
        %v3099 = vmul.f32 %v3090, %v449
        %v3100 = vmul.f32 %v3092, %v449
        %v3101 = vsub.f32 %v3069, %v3093
        %v3102 = vsub.f32 %v3070, %v3094
        %v3103 = vsub.f32 %v3071, %v3095
        %v3104 = vsub.f32 %v3072, %v3096
        %v3105 = vsub.f32 %v3073, %v3097
        %v3106 = vsub.f32 %v3074, %v3098
        %v3107 = vsub.f32 %v3075, %v3099
        %v3108 = vsub.f32 %v3076, %v3100
        %v3109 = vmul.f32 %v3101, %v3101
        %v3110 = vmul.f32 %v3102, %v3102
        %v3111 = vmul.f32 %v3103, %v3103
        %v3112 = vmul.f32 %v3104, %v3104
        %v3113 = vmul.f32 %v3105, %v3105
        %v3114 = vmul.f32 %v3106, %v3106
        %v3115 = vmul.f32 %v3107, %v3107
        %v3116 = vmul.f32 %v3108, %v3108
        %3117 = vadd.xlane.f32.xlu0 %v3109
        %v3118 = vpop.xlane.xlu0 %3117
        %3119 = vadd.xlane.f32.xlu0 %v3110
        %v3120 = vpop.xlane.xlu0 %3119
        %3121 = vadd.xlane.f32.xlu0 %v3111
        %v3122 = vpop.xlane.xlu0 %3121
        %3123 = vadd.xlane.f32.xlu0 %v3112
        %v3124 = vpop.xlane.xlu0 %3123
        %3125 = vadd.xlane.f32.xlu0 %v3113
        %v3126 = vpop.xlane.xlu0 %3125
        %3127 = vadd.xlane.f32.xlu0 %v3114
        %v3128 = vpop.xlane.xlu0 %3127
        %3129 = vadd.xlane.f32.xlu0 %v3115
        %v3130 = vpop.xlane.xlu0 %3129
        %3131 = vadd.xlane.f32.xlu0 %v3116
        %v3132 = vpop.xlane.xlu0 %3131
        %v3133 = vmul.f32 %v3118, %v449
        %v3134 = vmul.f32 %v3120, %v449
        %v3135 = vmul.f32 %v3122, %v449
        %v3136 = vmul.f32 %v3124, %v449
        %v3137 = vmul.f32 %v3126, %v449
        %v3138 = vmul.f32 %v3128, %v449
        %v3139 = vmul.f32 %v3130, %v449
        %v3140 = vmul.f32 %v3132, %v449
        %v3141 = vadd.f32 %v3133, 1e-05
        %v3142 = vadd.f32 %v3134, 1e-05
        %v3143 = vadd.f32 %v3135, 1e-05
        %v3144 = vadd.f32 %v3136, 1e-05
        %v3145 = vadd.f32 %v3137, 1e-05
        %v3146 = vadd.f32 %v3138, 1e-05
        %v3147 = vadd.f32 %v3139, 1e-05
        %v3148 = vadd.f32 %v3140, 1e-05
        %v3149 = vrsqrt.pop %v3141
        %v3150 = vrsqrt.pop %v3142
        %v3151 = vrsqrt.pop %v3143
        %v3152 = vrsqrt.pop %v3144
        %v3153 = vrsqrt.pop %v3145
        %v3154 = vrsqrt.pop %v3146
        %v3155 = vrsqrt.pop %v3147
        %v3156 = vrsqrt.pop %v3148
        %v3157 = vmul.f32 %v3101, %v3149
        %v3158 = vmul.f32 %v3102, %v3150
        %v3159 = vmul.f32 %v3103, %v3151
        %v3160 = vmul.f32 %v3104, %v3152
        %v3161 = vmul.f32 %v3105, %v3153
        %v3162 = vmul.f32 %v3106, %v3154
        %v3163 = vmul.f32 %v3107, %v3155
        %v3164 = vmul.f32 %v3108, %v3156
        %v3165 = vmul.f32 %v3157, %v412
        %v3166 = vmul.f32 %v3158, %v412
        %v3167 = vmul.f32 %v3159, %v416
        %v3168 = vmul.f32 %v3160, %v416
        %v3169 = vmul.f32 %v3161, %v412
        %v3170 = vmul.f32 %v3162, %v412
        %v3171 = vmul.f32 %v3163, %v416
        %v3172 = vmul.f32 %v3164, %v416
        %v3173 = vadd.f32 %v3165, %v420
        %v3174 = vadd.f32 %v3166, %v420
        %v3175 = vadd.f32 %v3167, %v424
        %v3176 = vadd.f32 %v3168, %v424
        %v3177 = vadd.f32 %v3169, %v420
        %v3178 = vadd.f32 %v3170, %v420
        %v3179 = vadd.f32 %v3171, %v424
        %v3180 = vadd.f32 %v3172, %v424
        %v3181 = vpack.c.bf16 %v3174, %v3173
        %v3182 = vpack.c.bf16 %v3176, %v3175
        %v3183 = vpack.c.bf16 %v3178, %v3177
        %v3184 = vpack.c.bf16 %v3180, %v3179
        %v3185 = vld [vmem:[#allocation8] sm:$0xff]
        %v3186 = vld [vmem:[#allocation8 + $0x8] sm:$0xff]
        %v3187 = vld [vmem:[#allocation8 + $0x10] sm:$0xff]
        %v3188 = vld [vmem:[#allocation8 + $0x18] sm:$0xff]
        %v3189 = vld [vmem:[#allocation8 + $0x20] sm:$0xff]
        %v3190 = vld [vmem:[#allocation8 + $0x28] sm:$0xff]
        %v3191 = vld [vmem:[#allocation8 + $0x30] sm:$0xff]
        %v3192 = vld [vmem:[#allocation8 + $0x38] sm:$0xff]
        %v3193 = vld [vmem:[#allocation8 + $0x40] sm:$0xff]
        %v3194 = vld [vmem:[#allocation8 + $0x48] sm:$0xff]
        %v3195 = vld [vmem:[#allocation8 + $0x50] sm:$0xff]
        %v3196 = vld [vmem:[#allocation8 + $0x58] sm:$0xff]
        %v3197 = vld [vmem:[#allocation8 + $0x60] sm:$0xff]
        %v3198 = vld [vmem:[#allocation8 + $0x68] sm:$0xff]
        %v3199 = vld [vmem:[#allocation8 + $0x70] sm:$0xff]
        %v3200 = vld [vmem:[#allocation8 + $0x78] sm:$0xff]
        %v3201 = vld [vmem:[#allocation8 + $0x80] sm:$0xff]
        %v3202 = vld [vmem:[#allocation8 + $0x88] sm:$0xff]
        %v3203 = vld [vmem:[#allocation8 + $0x90] sm:$0xff]
        %v3204 = vld [vmem:[#allocation8 + $0x98] sm:$0xff]
        %v3205 = vld [vmem:[#allocation8 + $0xa0] sm:$0xff]
        %v3206 = vld [vmem:[#allocation8 + $0xa8] sm:$0xff]
        %v3207 = vld [vmem:[#allocation8 + $0xb0] sm:$0xff]
        %v3208 = vld [vmem:[#allocation8 + $0xb8] sm:$0xff]
        %v3209 = vld [vmem:[#allocation8 + $0xc0] sm:$0xff]
        %v3210 = vld [vmem:[#allocation8 + $0xc8] sm:$0xff]
        %v3211 = vld [vmem:[#allocation8 + $0xd0] sm:$0xff]
        %v3212 = vld [vmem:[#allocation8 + $0xd8] sm:$0xff]
        %v3213 = vld [vmem:[#allocation8 + $0xe0] sm:$0xff]
        %v3214 = vld [vmem:[#allocation8 + $0xe8] sm:$0xff]
        %v3215 = vld [vmem:[#allocation8 + $0xf0] sm:$0xff]
        %v3216 = vld [vmem:[#allocation8 + $0xf8] sm:$0xff]
        %v3217 = vld [vmem:[%s6] sm:$0xf]
        %v3219 = vlaneseq
        %v3220 = vshrl.u32 %v3219, 7
        %v3221 = vsub.s32 0, %v3220
        %v3222 = vrot.slane %v3217, %v3221
        %v3223 = vlaneseq
        %v3224 = vshrl.u32 %v3223, 7
        %v3225 = vsub.s32 1, %v3224
        %v3226 = vrot.slane %v3217, %v3225
        %v3227 = vlaneseq
        %v3228 = vshrl.u32 %v3227, 7
        %v3229 = vsub.s32 2, %v3228
        %v3230 = vrot.slane %v3217, %v3229
        %v3231 = vlaneseq
        %v3232 = vshrl.u32 %v3231, 7
        %v3233 = vsub.s32 3, %v3232
        %v3234 = vrot.slane %v3217, %v3233
        %v3271 = vunpack.c.l.b16 %v3185
        %v3272 = vunpack.c.h.b16 %v3185
        %v3273 = vunpack.c.l.b16 %v3186
        %v3274 = vunpack.c.h.b16 %v3186
        %v3275 = vunpack.c.l.b16 %v3187
        %v3276 = vunpack.c.h.b16 %v3187
        %v3277 = vunpack.c.l.b16 %v3188
        %v3278 = vunpack.c.h.b16 %v3188
        %v3279 = vunpack.c.l.b16 %v3189
        %v3280 = vunpack.c.h.b16 %v3189
        %v3281 = vunpack.c.l.b16 %v3190
        %v3282 = vunpack.c.h.b16 %v3190
        %v3283 = vunpack.c.l.b16 %v3191
        %v3284 = vunpack.c.h.b16 %v3191
        %v3285 = vunpack.c.l.b16 %v3192
        %v3286 = vunpack.c.h.b16 %v3192
        %v3287 = vunpack.c.l.b16 %v3193
        %v3288 = vunpack.c.h.b16 %v3193
        %v3289 = vunpack.c.l.b16 %v3194
        %v3290 = vunpack.c.h.b16 %v3194
        %v3291 = vunpack.c.l.b16 %v3195
        %v3292 = vunpack.c.h.b16 %v3195
        %v3293 = vunpack.c.l.b16 %v3196
        %v3294 = vunpack.c.h.b16 %v3196
        %v3295 = vunpack.c.l.b16 %v3197
        %v3296 = vunpack.c.h.b16 %v3197
        %v3297 = vunpack.c.l.b16 %v3198
        %v3298 = vunpack.c.h.b16 %v3198
        %v3299 = vunpack.c.l.b16 %v3199
        %v3300 = vunpack.c.h.b16 %v3199
        %v3301 = vunpack.c.l.b16 %v3200
        %v3302 = vunpack.c.h.b16 %v3200
        %v3303 = vunpack.c.l.b16 %v3201
        %v3304 = vunpack.c.h.b16 %v3201
        %v3305 = vunpack.c.l.b16 %v3202
        %v3306 = vunpack.c.h.b16 %v3202
        %v3307 = vunpack.c.l.b16 %v3203
        %v3308 = vunpack.c.h.b16 %v3203
        %v3309 = vunpack.c.l.b16 %v3204
        %v3310 = vunpack.c.h.b16 %v3204
        %v3311 = vunpack.c.l.b16 %v3205
        %v3312 = vunpack.c.h.b16 %v3205
        %v3313 = vunpack.c.l.b16 %v3206
        %v3314 = vunpack.c.h.b16 %v3206
        %v3315 = vunpack.c.l.b16 %v3207
        %v3316 = vunpack.c.h.b16 %v3207
        %v3317 = vunpack.c.l.b16 %v3208
        %v3318 = vunpack.c.h.b16 %v3208
        %v3319 = vunpack.c.l.b16 %v3209
        %v3320 = vunpack.c.h.b16 %v3209
        %v3321 = vunpack.c.l.b16 %v3210
        %v3322 = vunpack.c.h.b16 %v3210
        %v3323 = vunpack.c.l.b16 %v3211
        %v3324 = vunpack.c.h.b16 %v3211
        %v3325 = vunpack.c.l.b16 %v3212
        %v3326 = vunpack.c.h.b16 %v3212
        %v3327 = vunpack.c.l.b16 %v3213
        %v3328 = vunpack.c.h.b16 %v3213
        %v3329 = vunpack.c.l.b16 %v3214
        %v3330 = vunpack.c.h.b16 %v3214
        %v3331 = vunpack.c.l.b16 %v3215
        %v3332 = vunpack.c.h.b16 %v3215
        %v3333 = vunpack.c.l.b16 %v3216
        %v3334 = vunpack.c.h.b16 %v3216
        %v3335 = vpack.c.b16 %v3275, %v3271
        %v3336 = vpack.c.b16 %v3276, %v3272
        %v3337 = vpack.c.b16 %v3277, %v3273
        %v3338 = vpack.c.b16 %v3278, %v3274
        %v3339 = vpack.c.b16 %v3283, %v3279
        %v3340 = vpack.c.b16 %v3284, %v3280
        %v3341 = vpack.c.b16 %v3285, %v3281
        %v3342 = vpack.c.b16 %v3286, %v3282
        %v3343 = vpack.c.b16 %v3291, %v3287
        %v3344 = vpack.c.b16 %v3292, %v3288
        %v3345 = vpack.c.b16 %v3293, %v3289
        %v3346 = vpack.c.b16 %v3294, %v3290
        %v3347 = vpack.c.b16 %v3299, %v3295
        %v3348 = vpack.c.b16 %v3300, %v3296
        %v3349 = vpack.c.b16 %v3301, %v3297
        %v3350 = vpack.c.b16 %v3302, %v3298
        %v3351 = vpack.c.b16 %v3307, %v3303
        %v3352 = vpack.c.b16 %v3308, %v3304
        %v3353 = vpack.c.b16 %v3309, %v3305
        %v3354 = vpack.c.b16 %v3310, %v3306
        %v3355 = vpack.c.b16 %v3315, %v3311
        %v3356 = vpack.c.b16 %v3316, %v3312
        %v3357 = vpack.c.b16 %v3317, %v3313
        %v3358 = vpack.c.b16 %v3318, %v3314
        %v3359 = vpack.c.b16 %v3323, %v3319
        %v3360 = vpack.c.b16 %v3324, %v3320
        %v3361 = vpack.c.b16 %v3325, %v3321
        %v3362 = vpack.c.b16 %v3326, %v3322
        %v3363 = vpack.c.b16 %v3331, %v3327
        %v3364 = vpack.c.b16 %v3332, %v3328
        %v3365 = vpack.c.b16 %v3333, %v3329
        %v3366 = vpack.c.b16 %v3334, %v3330
        %3399 = vmatprep.subr.bf16.mxu0 %v3336
        %3400 = vmatpush1.bf16.msra.mxu0 %v3335
        %3401 = vmatprep.subr.bf16.mxu0 %v3340
        %3402 = vmatpush1.bf16.msra.mxu0 %v3339
        %3403 = vmatprep.subr.bf16.mxu0 %v3344
        %3404 = vmatpush1.bf16.msra.mxu0 %v3343
        %3405 = vmatprep.subr.bf16.mxu0 %v3348
        %3406 = vmatpush1.bf16.msra.mxu0 %v3347
        %3407 = vmatprep.subr.bf16.mxu0 %v3352
        %3408 = vmatpush1.bf16.msra.mxu0 %v3351
        %3409 = vmatprep.subr.bf16.mxu0 %v3356
        %3410 = vmatpush1.bf16.msra.mxu0 %v3355
        %3411 = vmatprep.subr.bf16.mxu0 %v3360
        %3412 = vmatpush1.bf16.msra.mxu0 %v3359
        %3413 = vmatprep.subr.bf16.mxu0 %v3364
        %3414 = vmatpush1.bf16.msra.mxu0 %v3363
        %3415 = vmatprep.subr.bf16.mxu0 0
        %3416 = vmatpush1.bf16.msra.mxu0 0
        %3417 = vmatprep.subr.bf16.mxu0 0
        %3418 = vmatpush1.bf16.msra.mxu0 0
        %3419 = vmatprep.subr.bf16.mxu0 0
        %3420 = vmatpush1.bf16.msra.mxu0 0
        %3421 = vmatprep.subr.bf16.mxu0 0
        %3422 = vmatpush1.bf16.msra.mxu0 0
        %3423 = vmatprep.subr.bf16.mxu0 0
        %3424 = vmatpush1.bf16.msra.mxu0 0
        %3425 = vmatprep.subr.bf16.mxu0 0
        %3426 = vmatpush1.bf16.msra.mxu0 0
        %3427 = vmatprep.subr.bf16.mxu0 0
        %3428 = vmatpush1.bf16.msra.mxu0 0
        %3429 = vmatprep.subr.bf16.mxu0 0
        %3430 = vmatpush1.bf16.msra.mxu0 0
        %3431 = vmatprep.mubr.bf16.mxu0 0
        %3432 = vmatmul.mubr.bf16.gmra.mrb[0].mxu0 %v3181
        %v3433 = vpop.f32.mrb[0].mxu0
        %v3434 = vadd.f32 %v3222, %v3433
        %v3435 = vpop.f32.mrb[0].mxu0
        %v3436 = vadd.f32 %v3226, %v3435
        %v3437 = vpop.f32.mrb[0].mxu0
        %v3438 = vadd.f32 %v3222, %v3437
        %v3439 = vpop.f32.mrb[0].mxu0
        %v3440 = vadd.f32 %v3226, %v3439
        %3441 = vmatprep.mubr.bf16.mxu0 0
        %3442 = vmatmul.mubr.bf16.gmra.mrb[0].mxu0 %v3182
        %v3443 = vpop.f32.mrb[0].mxu0
        %v3444 = vadd.f32 %v3222, %v3443
        %v3445 = vpop.f32.mrb[0].mxu0
        %v3446 = vadd.f32 %v3226, %v3445
        %v3447 = vpop.f32.mrb[0].mxu0
        %v3448 = vadd.f32 %v3222, %v3447
        %v3449 = vpop.f32.mrb[0].mxu0
        %v3450 = vadd.f32 %v3226, %v3449
        %3451 = vmatprep.mubr.bf16.mxu0 0
        %3452 = vmatmul.mubr.bf16.gmra.mrb[0].mxu0 %v3183
        %v3453 = vpop.f32.mrb[0].mxu0
        %v3454 = vadd.f32 %v3222, %v3453
        %v3455 = vpop.f32.mrb[0].mxu0
        %v3456 = vadd.f32 %v3226, %v3455
        %v3457 = vpop.f32.mrb[0].mxu0
        %v3458 = vadd.f32 %v3222, %v3457
        %v3459 = vpop.f32.mrb[0].mxu0
        %v3460 = vadd.f32 %v3226, %v3459
        %3461 = vmatprep.mubr.bf16.mxu0 0
        %3462 = vmatmul.mubr.bf16.gmra.mrb[0].mxu0 %v3184
        %v3463 = vpop.f32.mrb[0].mxu0
        %v3464 = vadd.f32 %v3222, %v3463
        %v3465 = vpop.f32.mrb[0].mxu0
        %v3466 = vadd.f32 %v3226, %v3465
        %v3467 = vpop.f32.mrb[0].mxu0
        %v3468 = vadd.f32 %v3222, %v3467
        %v3469 = vpop.f32.mrb[0].mxu0
        %v3470 = vadd.f32 %v3226, %v3469
        %3471 = vdwg.mxu0
        %3472 = vmatprep.subr.bf16.mxu0 %v3338
        %3473 = vmatpush1.bf16.msra.mxu0 %v3337
        %3474 = vmatprep.subr.bf16.mxu0 %v3342
        %3475 = vmatpush1.bf16.msra.mxu0 %v3341
        %3476 = vmatprep.subr.bf16.mxu0 %v3346
        %3477 = vmatpush1.bf16.msra.mxu0 %v3345
        %3478 = vmatprep.subr.bf16.mxu0 %v3350
        %3479 = vmatpush1.bf16.msra.mxu0 %v3349
        %3480 = vmatprep.subr.bf16.mxu0 %v3354
        %3481 = vmatpush1.bf16.msra.mxu0 %v3353
        %3482 = vmatprep.subr.bf16.mxu0 %v3358
        %3483 = vmatpush1.bf16.msra.mxu0 %v3357
        %3484 = vmatprep.subr.bf16.mxu0 %v3362
        %3485 = vmatpush1.bf16.msra.mxu0 %v3361
        %3486 = vmatprep.subr.bf16.mxu0 %v3366
        %3487 = vmatpush1.bf16.msra.mxu0 %v3365
        %3488 = vmatprep.subr.bf16.mxu0 0
        %3489 = vmatpush1.bf16.msra.mxu0 0
        %3490 = vmatprep.subr.bf16.mxu0 0
        %3491 = vmatpush1.bf16.msra.mxu0 0
        %3492 = vmatprep.subr.bf16.mxu0 0
        %3493 = vmatpush1.bf16.msra.mxu0 0
        %3494 = vmatprep.subr.bf16.mxu0 0
        %3495 = vmatpush1.bf16.msra.mxu0 0
        %3496 = vmatprep.subr.bf16.mxu0 0
        %3497 = vmatpush1.bf16.msra.mxu0 0
        %3498 = vmatprep.subr.bf16.mxu0 0
        %3499 = vmatpush1.bf16.msra.mxu0 0
        %3500 = vmatprep.subr.bf16.mxu0 0
        %3501 = vmatpush1.bf16.msra.mxu0 0
        %3502 = vmatprep.subr.bf16.mxu0 0
        %3503 = vmatpush1.bf16.msra.mxu0 0
        %3504 = vmatprep.mubr.bf16.mxu0 0
        %3505 = vmatmul.mubr.bf16.gmra.mrb[0].mxu0 %v3181
        %v3506 = vpop.f32.mrb[0].mxu0
        %v3507 = vadd.f32 %v3230, %v3506
        %v3508 = vpop.f32.mrb[0].mxu0
        %v3509 = vadd.f32 %v3234, %v3508
        %v3510 = vpop.f32.mrb[0].mxu0
        %v3511 = vadd.f32 %v3230, %v3510
        %v3512 = vpop.f32.mrb[0].mxu0
        %v3513 = vadd.f32 %v3234, %v3512
        %3514 = vmatprep.mubr.bf16.mxu0 0
        %3515 = vmatmul.mubr.bf16.gmra.mrb[0].mxu0 %v3182
        %v3516 = vpop.f32.mrb[0].mxu0
        %v3517 = vadd.f32 %v3230, %v3516
        %v3518 = vpop.f32.mrb[0].mxu0
        %v3519 = vadd.f32 %v3234, %v3518
        %v3520 = vpop.f32.mrb[0].mxu0
        %v3521 = vadd.f32 %v3230, %v3520
        %v3522 = vpop.f32.mrb[0].mxu0
        %v3523 = vadd.f32 %v3234, %v3522
        %3524 = vmatprep.mubr.bf16.mxu0 0
        %3525 = vmatmul.mubr.bf16.gmra.mrb[0].mxu0 %v3183
        %v3526 = vpop.f32.mrb[0].mxu0
        %v3527 = vadd.f32 %v3230, %v3526
        %v3528 = vpop.f32.mrb[0].mxu0
        %v3529 = vadd.f32 %v3234, %v3528
        %v3530 = vpop.f32.mrb[0].mxu0
        %v3531 = vadd.f32 %v3230, %v3530
        %v3532 = vpop.f32.mrb[0].mxu0
        %v3533 = vadd.f32 %v3234, %v3532
        %3534 = vmatprep.mubr.bf16.mxu0 0
        %3535 = vmatmul.mubr.bf16.gmra.mrb[0].mxu0 %v3184
        %v3536 = vpop.f32.mrb[0].mxu0
        %v3537 = vadd.f32 %v3230, %v3536
        %v3538 = vpop.f32.mrb[0].mxu0
        %v3539 = vadd.f32 %v3234, %v3538
        %v3540 = vpop.f32.mrb[0].mxu0
        %v3541 = vadd.f32 %v3230, %v3540
        %v3542 = vpop.f32.mrb[0].mxu0
        %v3543 = vadd.f32 %v3234, %v3542
        %3544 = vdwg.mxu0
        %v3545 = vmul.f32 %v3434, 0.5
        %v3546 = vmul.f32 %v3436, 0.5
        %v3547 = vmul.f32 %v3507, 0.5
        %v3548 = vmul.f32 %v3509, 0.5
        %v3549 = vmul.f32 %v3438, 0.5
        %v3550 = vmul.f32 %v3440, 0.5
        %v3551 = vmul.f32 %v3511, 0.5
        %v3552 = vmul.f32 %v3513, 0.5
        %v3553 = vmul.f32 %v3444, 0.5
        %v3554 = vmul.f32 %v3446, 0.5
        %v3555 = vmul.f32 %v3517, 0.5
        %v3556 = vmul.f32 %v3519, 0.5
        %v3557 = vmul.f32 %v3448, 0.5
        %v3558 = vmul.f32 %v3450, 0.5
        %v3559 = vmul.f32 %v3521, 0.5
        %v3560 = vmul.f32 %v3523, 0.5
        %v3561 = vmul.f32 %v3454, 0.5
        %v3562 = vmul.f32 %v3456, 0.5
        %v3563 = vmul.f32 %v3527, 0.5
        %v3564 = vmul.f32 %v3529, 0.5
        %v3565 = vmul.f32 %v3458, 0.5
        %v3566 = vmul.f32 %v3460, 0.5
        %v3567 = vmul.f32 %v3531, 0.5
        %v3568 = vmul.f32 %v3533, 0.5
        %v3569 = vmul.f32 %v3464, 0.5
        %v3570 = vmul.f32 %v3466, 0.5
        %v3571 = vmul.f32 %v3537, 0.5
        %v3572 = vmul.f32 %v3539, 0.5
        %v3573 = vmul.f32 %v3468, 0.5
        %v3574 = vmul.f32 %v3470, 0.5
        %v3575 = vmul.f32 %v3541, 0.5
        %v3576 = vmul.f32 %v3543, 0.5
        %v3577 = vmul.f32 %v3434, 0.70710677
        %v3578 = vmul.f32 %v3436, 0.70710677
        %v3579 = vmul.f32 %v3507, 0.70710677
        %v3580 = vmul.f32 %v3509, 0.70710677
        %v3581 = vmul.f32 %v3438, 0.70710677
        %v3582 = vmul.f32 %v3440, 0.70710677
        %v3583 = vmul.f32 %v3511, 0.70710677
        %v3584 = vmul.f32 %v3513, 0.70710677
        %v3585 = vmul.f32 %v3444, 0.70710677
        %v3586 = vmul.f32 %v3446, 0.70710677
        %v3587 = vmul.f32 %v3517, 0.70710677
        %v3588 = vmul.f32 %v3519, 0.70710677
        %v3589 = vmul.f32 %v3448, 0.70710677
        %v3590 = vmul.f32 %v3450, 0.70710677
        %v3591 = vmul.f32 %v3521, 0.70710677
        %v3592 = vmul.f32 %v3523, 0.70710677
        %v3593 = vmul.f32 %v3454, 0.70710677
        %v3594 = vmul.f32 %v3456, 0.70710677
        %v3595 = vmul.f32 %v3527, 0.70710677
        %v3596 = vmul.f32 %v3529, 0.70710677
        %v3597 = vmul.f32 %v3458, 0.70710677
        %v3598 = vmul.f32 %v3460, 0.70710677
        %v3599 = vmul.f32 %v3531, 0.70710677
        %v3600 = vmul.f32 %v3533, 0.70710677
        %v3601 = vmul.f32 %v3464, 0.70710677
        %v3602 = vmul.f32 %v3466, 0.70710677
        %v3603 = vmul.f32 %v3537, 0.70710677
        %v3604 = vmul.f32 %v3539, 0.70710677
        %v3605 = vmul.f32 %v3468, 0.70710677
        %v3606 = vmul.f32 %v3470, 0.70710677
        %v3607 = vmul.f32 %v3541, 0.70710677
        %v3608 = vmul.f32 %v3543, 0.70710677
        %v3609 = verf.f32.pop %v3577
        %v3610 = verf.f32.pop %v3578
        %v3611 = verf.f32.pop %v3579
        %v3612 = verf.f32.pop %v3580
        %v3613 = verf.f32.pop %v3581
        %v3614 = verf.f32.pop %v3582
        %v3615 = verf.f32.pop %v3583
        %v3616 = verf.f32.pop %v3584
        %v3617 = verf.f32.pop %v3585
        %v3618 = verf.f32.pop %v3586
        %v3619 = verf.f32.pop %v3587
        %v3620 = verf.f32.pop %v3588
        %v3621 = verf.f32.pop %v3589
        %v3622 = verf.f32.pop %v3590
        %v3623 = verf.f32.pop %v3591
        %v3624 = verf.f32.pop %v3592
        %v3625 = verf.f32.pop %v3593
        %v3626 = verf.f32.pop %v3594
        %v3627 = verf.f32.pop %v3595
        %v3628 = verf.f32.pop %v3596
        %v3629 = verf.f32.pop %v3597
        %v3630 = verf.f32.pop %v3598
        %v3631 = verf.f32.pop %v3599
        %v3632 = verf.f32.pop %v3600
        %v3633 = verf.f32.pop %v3601
        %v3634 = verf.f32.pop %v3602
        %v3635 = verf.f32.pop %v3603
        %v3636 = verf.f32.pop %v3604
        %v3637 = verf.f32.pop %v3605
        %v3638 = verf.f32.pop %v3606
        %v3639 = verf.f32.pop %v3607
        %v3640 = verf.f32.pop %v3608
        %v3641 = vadd.f32 %v3609, 1.0
        %v3642 = vadd.f32 %v3610, 1.0
        %v3643 = vadd.f32 %v3611, 1.0
        %v3644 = vadd.f32 %v3612, 1.0
        %v3645 = vadd.f32 %v3613, 1.0
        %v3646 = vadd.f32 %v3614, 1.0
        %v3647 = vadd.f32 %v3615, 1.0
        %v3648 = vadd.f32 %v3616, 1.0
        %v3649 = vadd.f32 %v3617, 1.0
        %v3650 = vadd.f32 %v3618, 1.0
        %v3651 = vadd.f32 %v3619, 1.0
        %v3652 = vadd.f32 %v3620, 1.0
        %v3653 = vadd.f32 %v3621, 1.0
        %v3654 = vadd.f32 %v3622, 1.0
        %v3655 = vadd.f32 %v3623, 1.0
        %v3656 = vadd.f32 %v3624, 1.0
        %v3657 = vadd.f32 %v3625, 1.0
        %v3658 = vadd.f32 %v3626, 1.0
        %v3659 = vadd.f32 %v3627, 1.0
        %v3660 = vadd.f32 %v3628, 1.0
        %v3661 = vadd.f32 %v3629, 1.0
        %v3662 = vadd.f32 %v3630, 1.0
        %v3663 = vadd.f32 %v3631, 1.0
        %v3664 = vadd.f32 %v3632, 1.0
        %v3665 = vadd.f32 %v3633, 1.0
        %v3666 = vadd.f32 %v3634, 1.0
        %v3667 = vadd.f32 %v3635, 1.0
        %v3668 = vadd.f32 %v3636, 1.0
        %v3669 = vadd.f32 %v3637, 1.0
        %v3670 = vadd.f32 %v3638, 1.0
        %v3671 = vadd.f32 %v3639, 1.0
        %v3672 = vadd.f32 %v3640, 1.0
        %v3673 = vmul.f32 %v3545, %v3641
        %v3674 = vmul.f32 %v3546, %v3642
        %v3675 = vmul.f32 %v3547, %v3643
        %v3676 = vmul.f32 %v3548, %v3644
        %v3677 = vmul.f32 %v3549, %v3645
        %v3678 = vmul.f32 %v3550, %v3646
        %v3679 = vmul.f32 %v3551, %v3647
        %v3680 = vmul.f32 %v3552, %v3648
        %v3681 = vmul.f32 %v3553, %v3649
        %v3682 = vmul.f32 %v3554, %v3650
        %v3683 = vmul.f32 %v3555, %v3651
        %v3684 = vmul.f32 %v3556, %v3652
        %v3685 = vmul.f32 %v3557, %v3653
        %v3686 = vmul.f32 %v3558, %v3654
        %v3687 = vmul.f32 %v3559, %v3655
        %v3688 = vmul.f32 %v3560, %v3656
        %v3689 = vmul.f32 %v3561, %v3657
        %v3690 = vmul.f32 %v3562, %v3658
        %v3691 = vmul.f32 %v3563, %v3659
        %v3692 = vmul.f32 %v3564, %v3660
        %v3693 = vmul.f32 %v3565, %v3661
        %v3694 = vmul.f32 %v3566, %v3662
        %v3695 = vmul.f32 %v3567, %v3663
        %v3696 = vmul.f32 %v3568, %v3664
        %v3697 = vmul.f32 %v3569, %v3665
        %v3698 = vmul.f32 %v3570, %v3666
        %v3699 = vmul.f32 %v3571, %v3667
        %v3700 = vmul.f32 %v3572, %v3668
        %v3701 = vmul.f32 %v3573, %v3669
        %v3702 = vmul.f32 %v3574, %v3670
        %v3703 = vmul.f32 %v3575, %v3671
        %v3704 = vmul.f32 %v3576, %v3672
        %v3705 = vpack.c.bf16 %v3677, %v3673
        %v3706 = vpack.c.bf16 %v3678, %v3674
        %v3707 = vpack.c.bf16 %v3679, %v3675
        %v3708 = vpack.c.bf16 %v3680, %v3676
        %v3709 = vpack.c.bf16 %v3685, %v3681
        %v3710 = vpack.c.bf16 %v3686, %v3682
        %v3711 = vpack.c.bf16 %v3687, %v3683
        %v3712 = vpack.c.bf16 %v3688, %v3684
        %v3713 = vpack.c.bf16 %v3693, %v3689
        %v3714 = vpack.c.bf16 %v3694, %v3690
        %v3715 = vpack.c.bf16 %v3695, %v3691
        %v3716 = vpack.c.bf16 %v3696, %v3692
        %v3717 = vpack.c.bf16 %v3701, %v3697
        %v3718 = vpack.c.bf16 %v3702, %v3698
        %v3719 = vpack.c.bf16 %v3703, %v3699
        %v3720 = vpack.c.bf16 %v3704, %v3700
        %v3721 = vld [vmem:[#allocation9] sm:$0xf]
        %v3722 = vld [vmem:[#allocation9 + $0x4] sm:$0xf]
        %v3723 = vld [vmem:[#allocation9 + $0x8] sm:$0xf]
        %v3724 = vld [vmem:[#allocation9 + $0xc] sm:$0xf]
        %v3725 = vld [vmem:[#allocation9 + $0x10] sm:$0xf]
        %v3726 = vld [vmem:[#allocation9 + $0x14] sm:$0xf]
        %v3727 = vld [vmem:[#allocation9 + $0x18] sm:$0xf]
        %v3728 = vld [vmem:[#allocation9 + $0x1c] sm:$0xf]
        %v3729 = vld [vmem:[#allocation9 + $0x20] sm:$0xf]
        %v3730 = vld [vmem:[#allocation9 + $0x24] sm:$0xf]
        %v3731 = vld [vmem:[#allocation9 + $0x28] sm:$0xf]
        %v3732 = vld [vmem:[#allocation9 + $0x2c] sm:$0xf]
        %v3733 = vld [vmem:[#allocation9 + $0x30] sm:$0xf]
        %v3734 = vld [vmem:[#allocation9 + $0x34] sm:$0xf]
        %v3735 = vld [vmem:[#allocation9 + $0x38] sm:$0xf]
        %v3736 = vld [vmem:[#allocation9 + $0x3c] sm:$0xf]
        %v3737 = vld [vmem:[#allocation9 + $0x40] sm:$0xf]
        %v3738 = vld [vmem:[#allocation9 + $0x44] sm:$0xf]
        %v3739 = vld [vmem:[#allocation9 + $0x48] sm:$0xf]
        %v3740 = vld [vmem:[#allocation9 + $0x4c] sm:$0xf]
        %v3741 = vld [vmem:[#allocation9 + $0x50] sm:$0xf]
        %v3742 = vld [vmem:[#allocation9 + $0x54] sm:$0xf]
        %v3743 = vld [vmem:[#allocation9 + $0x58] sm:$0xf]
        %v3744 = vld [vmem:[#allocation9 + $0x5c] sm:$0xf]
        %v3745 = vld [vmem:[#allocation9 + $0x60] sm:$0xf]
        %v3746 = vld [vmem:[#allocation9 + $0x64] sm:$0xf]
        %v3747 = vld [vmem:[#allocation9 + $0x68] sm:$0xf]
        %v3748 = vld [vmem:[#allocation9 + $0x6c] sm:$0xf]
        %v3749 = vld [vmem:[#allocation9 + $0x70] sm:$0xf]
        %v3750 = vld [vmem:[#allocation9 + $0x74] sm:$0xf]
        %v3751 = vld [vmem:[#allocation9 + $0x78] sm:$0xf]
        %v3752 = vld [vmem:[#allocation9 + $0x7c] sm:$0xf]
        %v3753 = vld [vmem:[#allocation9 + $0x80] sm:$0xf]
        %v3754 = vld [vmem:[#allocation9 + $0x84] sm:$0xf]
        %v3755 = vld [vmem:[#allocation9 + $0x88] sm:$0xf]
        %v3756 = vld [vmem:[#allocation9 + $0x8c] sm:$0xf]
        %v3757 = vld [vmem:[#allocation9 + $0x90] sm:$0xf]
        %v3758 = vld [vmem:[#allocation9 + $0x94] sm:$0xf]
        %v3759 = vld [vmem:[#allocation9 + $0x98] sm:$0xf]
        %v3760 = vld [vmem:[#allocation9 + $0x9c] sm:$0xf]
        %v3761 = vld [vmem:[#allocation9 + $0xa0] sm:$0xf]
        %v3762 = vld [vmem:[#allocation9 + $0xa4] sm:$0xf]
        %v3763 = vld [vmem:[#allocation9 + $0xa8] sm:$0xf]
        %v3764 = vld [vmem:[#allocation9 + $0xac] sm:$0xf]
        %v3765 = vld [vmem:[#allocation9 + $0xb0] sm:$0xf]
        %v3766 = vld [vmem:[#allocation9 + $0xb4] sm:$0xf]
        %v3767 = vld [vmem:[#allocation9 + $0xb8] sm:$0xf]
        %v3768 = vld [vmem:[#allocation9 + $0xbc] sm:$0xf]
        %v3769 = vld [vmem:[#allocation9 + $0xc0] sm:$0xf]
        %v3770 = vld [vmem:[#allocation9 + $0xc4] sm:$0xf]
        %v3771 = vld [vmem:[#allocation9 + $0xc8] sm:$0xf]
        %v3772 = vld [vmem:[#allocation9 + $0xcc] sm:$0xf]
        %v3773 = vld [vmem:[#allocation9 + $0xd0] sm:$0xf]
        %v3774 = vld [vmem:[#allocation9 + $0xd4] sm:$0xf]
        %v3775 = vld [vmem:[#allocation9 + $0xd8] sm:$0xf]
        %v3776 = vld [vmem:[#allocation9 + $0xdc] sm:$0xf]
        %v3777 = vld [vmem:[#allocation9 + $0xe0] sm:$0xf]
        %v3778 = vld [vmem:[#allocation9 + $0xe4] sm:$0xf]
        %v3779 = vld [vmem:[#allocation9 + $0xe8] sm:$0xf]
        %v3780 = vld [vmem:[#allocation9 + $0xec] sm:$0xf]
        %v3781 = vld [vmem:[#allocation9 + $0xf0] sm:$0xf]
        %v3782 = vld [vmem:[#allocation9 + $0xf4] sm:$0xf]
        %v3783 = vld [vmem:[#allocation9 + $0xf8] sm:$0xf]
        %v3784 = vld [vmem:[#allocation9 + $0xfc] sm:$0xf]
        %v3785 = vld [vmem:[%s8] sm:$0x1]
        %v3787 = vlaneseq
        %v3788 = vshrl.u32 %v3787, 7
        %v3789 = vsub.s32 0, %v3788
        %v3790 = vrot.slane %v3785, %v3789
        %v3856 = vunpack.c.l.b16 %v3721
        %v3857 = vunpack.c.l.b16 %v3722
        %v3858 = vunpack.c.l.b16 %v3723
        %v3859 = vunpack.c.l.b16 %v3724
        %v3860 = vunpack.c.l.b16 %v3725
        %v3861 = vunpack.c.l.b16 %v3726
        %v3862 = vunpack.c.l.b16 %v3727
        %v3863 = vunpack.c.l.b16 %v3728
        %v3864 = vunpack.c.l.b16 %v3729
        %v3865 = vunpack.c.l.b16 %v3730
        %v3866 = vunpack.c.l.b16 %v3731
        %v3867 = vunpack.c.l.b16 %v3732
        %v3868 = vunpack.c.l.b16 %v3733
        %v3869 = vunpack.c.l.b16 %v3734
        %v3870 = vunpack.c.l.b16 %v3735
        %v3871 = vunpack.c.l.b16 %v3736
        %v3872 = vunpack.c.l.b16 %v3737
        %v3873 = vunpack.c.l.b16 %v3738
        %v3874 = vunpack.c.l.b16 %v3739
        %v3875 = vunpack.c.l.b16 %v3740
        %v3876 = vunpack.c.l.b16 %v3741
        %v3877 = vunpack.c.l.b16 %v3742
        %v3878 = vunpack.c.l.b16 %v3743
        %v3879 = vunpack.c.l.b16 %v3744
        %v3880 = vunpack.c.l.b16 %v3745
        %v3881 = vunpack.c.l.b16 %v3746
        %v3882 = vunpack.c.l.b16 %v3747
        %v3883 = vunpack.c.l.b16 %v3748
        %v3884 = vunpack.c.l.b16 %v3749
        %v3885 = vunpack.c.l.b16 %v3750
        %v3886 = vunpack.c.l.b16 %v3751
        %v3887 = vunpack.c.l.b16 %v3752
        %v3888 = vunpack.c.l.b16 %v3753
        %v3889 = vunpack.c.l.b16 %v3754
        %v3890 = vunpack.c.l.b16 %v3755
        %v3891 = vunpack.c.l.b16 %v3756
        %v3892 = vunpack.c.l.b16 %v3757
        %v3893 = vunpack.c.l.b16 %v3758
        %v3894 = vunpack.c.l.b16 %v3759
        %v3895 = vunpack.c.l.b16 %v3760
        %v3896 = vunpack.c.l.b16 %v3761
        %v3897 = vunpack.c.l.b16 %v3762
        %v3898 = vunpack.c.l.b16 %v3763
        %v3899 = vunpack.c.l.b16 %v3764
        %v3900 = vunpack.c.l.b16 %v3765
        %v3901 = vunpack.c.l.b16 %v3766
        %v3902 = vunpack.c.l.b16 %v3767
        %v3903 = vunpack.c.l.b16 %v3768
        %v3904 = vunpack.c.l.b16 %v3769
        %v3905 = vunpack.c.l.b16 %v3770
        %v3906 = vunpack.c.l.b16 %v3771
        %v3907 = vunpack.c.l.b16 %v3772
        %v3908 = vunpack.c.l.b16 %v3773
        %v3909 = vunpack.c.l.b16 %v3774
        %v3910 = vunpack.c.l.b16 %v3775
        %v3911 = vunpack.c.l.b16 %v3776
        %v3912 = vunpack.c.l.b16 %v3777
        %v3913 = vunpack.c.l.b16 %v3778
        %v3914 = vunpack.c.l.b16 %v3779
        %v3915 = vunpack.c.l.b16 %v3780
        %v3916 = vunpack.c.l.b16 %v3781
        %v3917 = vunpack.c.l.b16 %v3782
        %v3918 = vunpack.c.l.b16 %v3783
        %v3919 = vunpack.c.l.b16 %v3784
        %v3920 = vpack.c.b16 %v3857, %v3856
        %v3921 = vpack.c.b16 %v3859, %v3858
        %v3922 = vpack.c.b16 %v3861, %v3860
        %v3923 = vpack.c.b16 %v3863, %v3862
        %v3924 = vpack.c.b16 %v3865, %v3864
        %v3925 = vpack.c.b16 %v3867, %v3866
        %v3926 = vpack.c.b16 %v3869, %v3868
        %v3927 = vpack.c.b16 %v3871, %v3870
        %v3928 = vpack.c.b16 %v3873, %v3872
        %v3929 = vpack.c.b16 %v3875, %v3874
        %v3930 = vpack.c.b16 %v3877, %v3876
        %v3931 = vpack.c.b16 %v3879, %v3878
        %v3932 = vpack.c.b16 %v3881, %v3880
        %v3933 = vpack.c.b16 %v3883, %v3882
        %v3934 = vpack.c.b16 %v3885, %v3884
        %v3935 = vpack.c.b16 %v3887, %v3886
        %v3936 = vpack.c.b16 %v3889, %v3888
        %v3937 = vpack.c.b16 %v3891, %v3890
        %v3938 = vpack.c.b16 %v3893, %v3892
        %v3939 = vpack.c.b16 %v3895, %v3894
        %v3940 = vpack.c.b16 %v3897, %v3896
        %v3941 = vpack.c.b16 %v3899, %v3898
        %v3942 = vpack.c.b16 %v3901, %v3900
        %v3943 = vpack.c.b16 %v3903, %v3902
        %v3944 = vpack.c.b16 %v3905, %v3904
        %v3945 = vpack.c.b16 %v3907, %v3906
        %v3946 = vpack.c.b16 %v3909, %v3908
        %v3947 = vpack.c.b16 %v3911, %v3910
        %v3948 = vpack.c.b16 %v3913, %v3912
        %v3949 = vpack.c.b16 %v3915, %v3914
        %v3950 = vpack.c.b16 %v3917, %v3916
        %v3951 = vpack.c.b16 %v3919, %v3918
        %3984 = vmatprep.subr.bf16.mxu0 0
        %3985 = vmatpush1.bf16.msra.mxu0 %v3920
        %3986 = vmatprep.subr.bf16.mxu0 0
        %3987 = vmatpush1.bf16.msra.mxu0 %v3921
        %3988 = vmatprep.subr.bf16.mxu0 0
        %3989 = vmatpush1.bf16.msra.mxu0 %v3922
        %3990 = vmatprep.subr.bf16.mxu0 0
        %3991 = vmatpush1.bf16.msra.mxu0 %v3923
        %3992 = vmatprep.subr.bf16.mxu0 0
        %3993 = vmatpush1.bf16.msra.mxu0 %v3924
        %3994 = vmatprep.subr.bf16.mxu0 0
        %3995 = vmatpush1.bf16.msra.mxu0 %v3925
        %3996 = vmatprep.subr.bf16.mxu0 0
        %3997 = vmatpush1.bf16.msra.mxu0 %v3926
        %3998 = vmatprep.subr.bf16.mxu0 0
        %3999 = vmatpush1.bf16.msra.mxu0 %v3927
        %4000 = vmatprep.subr.bf16.mxu0 0
        %4001 = vmatpush1.bf16.msra.mxu0 %v3928
        %4002 = vmatprep.subr.bf16.mxu0 0
        %4003 = vmatpush1.bf16.msra.mxu0 %v3929
        %4004 = vmatprep.subr.bf16.mxu0 0
        %4005 = vmatpush1.bf16.msra.mxu0 %v3930
        %4006 = vmatprep.subr.bf16.mxu0 0
        %4007 = vmatpush1.bf16.msra.mxu0 %v3931
        %4008 = vmatprep.subr.bf16.mxu0 0
        %4009 = vmatpush1.bf16.msra.mxu0 %v3932
        %4010 = vmatprep.subr.bf16.mxu0 0
        %4011 = vmatpush1.bf16.msra.mxu0 %v3933
        %4012 = vmatprep.subr.bf16.mxu0 0
        %4013 = vmatpush1.bf16.msra.mxu0 %v3934
        %4014 = vmatprep.subr.bf16.mxu0 0
        %4015 = vmatpush1.bf16.msra.mxu0 %v3935
        %4016 = vmatprep.mubr.bf16.mxu0 %v3706
        %4017 = vmatmul.mubr.bf16.gmra.mrb[0].mxu0 %v3705
        %v4018 = vpop.f32.mrb[0].mxu0
        %v4019 = vadd.f32 %v3790, %v4018
        %v4020 = vpop.f32.mrb[0].mxu0
        %v4021 = vpop.f32.mrb[0].mxu0
        %v4022 = vadd.f32 %v3790, %v4021
        %v4023 = vpop.f32.mrb[0].mxu0
        %4024 = vmatprep.mubr.bf16.mxu0 %v3710
        %4025 = vmatmul.mubr.bf16.gmra.mrb[0].mxu0 %v3709
        %v4026 = vpop.f32.mrb[0].mxu0
        %v4027 = vadd.f32 %v3790, %v4026
        %v4028 = vpop.f32.mrb[0].mxu0
        %v4029 = vpop.f32.mrb[0].mxu0
        %v4030 = vadd.f32 %v3790, %v4029
        %v4031 = vpop.f32.mrb[0].mxu0
        %4032 = vmatprep.mubr.bf16.mxu0 %v3714
        %4033 = vmatmul.mubr.bf16.gmra.mrb[0].mxu0 %v3713
        %v4034 = vpop.f32.mrb[0].mxu0
        %v4035 = vadd.f32 %v3790, %v4034
        %v4036 = vpop.f32.mrb[0].mxu0
        %v4037 = vpop.f32.mrb[0].mxu0
        %v4038 = vadd.f32 %v3790, %v4037
        %v4039 = vpop.f32.mrb[0].mxu0
        %4040 = vmatprep.mubr.bf16.mxu0 %v3718
        %4041 = vmatmul.mubr.bf16.gmra.mrb[0].mxu0 %v3717
        %v4042 = vpop.f32.mrb[0].mxu0
        %v4043 = vadd.f32 %v3790, %v4042
        %v4044 = vpop.f32.mrb[0].mxu0
        %v4045 = vpop.f32.mrb[0].mxu0
        %v4046 = vadd.f32 %v3790, %v4045
        %v4047 = vpop.f32.mrb[0].mxu0
        %4048 = vdwg.mxu0
        %4049 = vmatprep.subr.bf16.mxu0 0
        %4050 = vmatpush1.bf16.msra.mxu0 %v3936
        %4051 = vmatprep.subr.bf16.mxu0 0
        %4052 = vmatpush1.bf16.msra.mxu0 %v3937
        %4053 = vmatprep.subr.bf16.mxu0 0
        %4054 = vmatpush1.bf16.msra.mxu0 %v3938
        %4055 = vmatprep.subr.bf16.mxu0 0
        %4056 = vmatpush1.bf16.msra.mxu0 %v3939
        %4057 = vmatprep.subr.bf16.mxu0 0
        %4058 = vmatpush1.bf16.msra.mxu0 %v3940
        %4059 = vmatprep.subr.bf16.mxu0 0
        %4060 = vmatpush1.bf16.msra.mxu0 %v3941
        %4061 = vmatprep.subr.bf16.mxu0 0
        %4062 = vmatpush1.bf16.msra.mxu0 %v3942
        %4063 = vmatprep.subr.bf16.mxu0 0
        %4064 = vmatpush1.bf16.msra.mxu0 %v3943
        %4065 = vmatprep.subr.bf16.mxu0 0
        %4066 = vmatpush1.bf16.msra.mxu0 %v3944
        %4067 = vmatprep.subr.bf16.mxu0 0
        %4068 = vmatpush1.bf16.msra.mxu0 %v3945
        %4069 = vmatprep.subr.bf16.mxu0 0
        %4070 = vmatpush1.bf16.msra.mxu0 %v3946
        %4071 = vmatprep.subr.bf16.mxu0 0
        %4072 = vmatpush1.bf16.msra.mxu0 %v3947
        %4073 = vmatprep.subr.bf16.mxu0 0
        %4074 = vmatpush1.bf16.msra.mxu0 %v3948
        %4075 = vmatprep.subr.bf16.mxu0 0
        %4076 = vmatpush1.bf16.msra.mxu0 %v3949
        %4077 = vmatprep.subr.bf16.mxu0 0
        %4078 = vmatpush1.bf16.msra.mxu0 %v3950
        %4079 = vmatprep.subr.bf16.mxu0 0
        %4080 = vmatpush1.bf16.msra.mxu0 %v3951
        %4081 = vmatprep.mubr.bf16.mxu0 %v3708
        %4082 = vmatmul.mubr.bf16.gmra.mrb[0].mxu0 %v3707
        %v4083 = vpop.f32.mrb[0].mxu0
        %v4084 = vadd.f32 %v4019, %v4083
        %v4085 = vpop.f32.mrb[0].mxu0
        %v4086 = vpop.f32.mrb[0].mxu0
        %v4087 = vadd.f32 %v4022, %v4086
        %v4088 = vpop.f32.mrb[0].mxu0
        %4089 = vmatprep.mubr.bf16.mxu0 %v3712
        %4090 = vmatmul.mubr.bf16.gmra.mrb[0].mxu0 %v3711
        %v4091 = vpop.f32.mrb[0].mxu0
        %v4092 = vadd.f32 %v4027, %v4091
        %v4093 = vpop.f32.mrb[0].mxu0
        %v4094 = vpop.f32.mrb[0].mxu0
        %v4095 = vadd.f32 %v4030, %v4094
        %v4096 = vpop.f32.mrb[0].mxu0
        %4097 = vmatprep.mubr.bf16.mxu0 %v3716
        %4098 = vmatmul.mubr.bf16.gmra.mrb[0].mxu0 %v3715
        %v4099 = vpop.f32.mrb[0].mxu0
        %v4100 = vadd.f32 %v4035, %v4099
        %v4101 = vpop.f32.mrb[0].mxu0
        %v4102 = vpop.f32.mrb[0].mxu0
        %v4103 = vadd.f32 %v4038, %v4102
        %v4104 = vpop.f32.mrb[0].mxu0
        %4105 = vmatprep.mubr.bf16.mxu0 %v3720
        %4106 = vmatmul.mubr.bf16.gmra.mrb[0].mxu0 %v3719
        %v4107 = vpop.f32.mrb[0].mxu0
        %v4108 = vadd.f32 %v4043, %v4107
        %v4109 = vpop.f32.mrb[0].mxu0
        %v4110 = vpop.f32.mrb[0].mxu0
        %v4111 = vadd.f32 %v4046, %v4110
        %v4112 = vpop.f32.mrb[0].mxu0
        %4113 = vdwg.mxu0
        %v4114 = vmul.f32 %v4084, %v428
        %v4115 = vmul.f32 %v4087, %v428
        %v4116 = vmul.f32 %v4092, %v432
        %v4117 = vmul.f32 %v4095, %v432
        %v4118 = vmul.f32 %v4100, %v428
        %v4119 = vmul.f32 %v4103, %v428
        %v4120 = vmul.f32 %v4108, %v432
        %v4121 = vmul.f32 %v4111, %v432
        %v4122 = vadd.f32 %v4114, %v3069
        %v4123 = vadd.f32 %v4115, %v3070
        %v4124 = vadd.f32 %v4116, %v3071
        %v4125 = vadd.f32 %v4117, %v3072
        %v4126 = vadd.f32 %v4118, %v3073
        %v4127 = vadd.f32 %v4119, %v3074
        %v4128 = vadd.f32 %v4120, %v3075
        %v4129 = vadd.f32 %v4121, %v3076
        %4130 = vst [vmem:[%s395] sm:$0xff] %v4122
        %4131 = vst [vmem:[%s395 + $0x8] sm:$0xff] %v4123
        %4132 = vst [vmem:[%s395 + $0x10] sm:$0xff] %v4124
        %4133 = vst [vmem:[%s395 + $0x18] sm:$0xff] %v4125
        %4134 = vst [vmem:[%s395 + $0x20] sm:$0xff] %v4126
        %4135 = vst [vmem:[%s395 + $0x28] sm:$0xff] %v4127
        %4136 = vst [vmem:[%s395 + $0x30] sm:$0xff] %v4128
        %4137 = vst [vmem:[%s395 + $0x38] sm:$0xff] %v4129
        %s4138 = sand.u32 %s230, 1
        %s4139 = scalar_lea.sflag [#allocation5], %s4138
        %s4140 = sand.u32 %s230, 1
        %s4141 = smul.addr %s4140, 64
        %s4142 = scalar_lea.vmem [#allocation11], %s4141
        // Predicated region
        $region73: #{transformer_pallas.1} parent=55 // pred_check
          %p4143 = pneg %p240
        $region74: #{transformer_pallas.1} parent=55 // pred_check_branch
          %4145 = sbr.rel (%p4143) target = $region76
        $region75: #{transformer_pallas.1} parent=55 // pred_region
          %s4146 = smul.u32 4, %s28
          %s4148 = ssub.s32 1024, 1024
          %4149 = vsyncadd %s4139, %s4148
          %s4150 = smul.addr %s4146, 2
          %s4151 = smul.addr %s4150, 128
          %s4152 = scalar_lea.hbm %s9, %s4151
          %s4153 = sshll.u32 %s4142, 4
          %s4154 = int_to_ptr.vmem [resolvable:$true] %s4153
          %4159 = dma.vmem_to_hbm [thread:$0]  %s4154, 1024, %s4152, %s4139, 128, 128, 8
        $region76: #{transformer_pallas.1} parent=55 // pred_fallthru
          _
      $region56: #{transformer_pallas.1} parent=5 // pred_fallthru
        _
      %p4160 = scmp.le.s32.totalorder 2, %s23
      // Predicated region
      $region77: #{transformer_pallas.1} parent=5 // pred_check
        %p4161 = pneg %p4160
      $region78: #{transformer_pallas.1} parent=5 // pred_check_branch
        %4163 = sbr.rel (%p4161) target = $region80
      $region79: #{transformer_pallas.1} parent=5 // pred_region
        %s4164 = ssub.s32 %s23, 2
        // Predicated region
        $region81: #{transformer_pallas.1} parent=79 // pred_check
          %p4165 = pneg %p246
        $region82: #{transformer_pallas.1} parent=79 // pred_check_branch
          %4167 = sbr.rel (%p4165) target = $region84
        $region83: #{transformer_pallas.1} parent=79 // pred_region
          %s4168 = sand.u32 %s231, 1
          %s4169 = scalar_lea.sflag [#allocation5], %s4168
          %s4170 = sand.u32 %s231, 1
          %s4171 = smul.addr %s4170, 64
          %s4172 = scalar_lea.vmem [#allocation11], %s4171
          %4173 = dma.done %s4169, 1024
        $region84: #{transformer_pallas.1} parent=79 // pred_fallthru
          _
      $region80: #{transformer_pallas.1} parent=5 // pred_fallthru
        _
    $region6: #{transformer_pallas.1} parent=1 // loop_footer
      %s27 = sadd.s32 1, %s23
    $region7: #{transformer_pallas.1} parent=1 // loop_footer_branch
      %22 = sbr.rel target = $region3
    $region8: #{transformer_pallas.1} parent=1 // loop_exit
      _
    %4174 = vsyncpa [#allocation4], 1
    %s4175 = scalar_lea.sflag [#allocation4], 1
    %4176 = vsyncpa %s4175, 1
    %4177 = vsyncpa [#allocation7], 1
    %4178 = vsyncpa [#allocation10], 1
    %4179 = vsyncpa [#allocation5], 1
    %s4180 = scalar_lea.sflag [#allocation5], 1
    %4181 = vsyncpa %s4180, 1

</llo_original>
